<compile_context>
chip_gen: v7x
topology: tpu7x:2x2x1
jax: 0.10.0
libtpu: 0.0.40
codegen_flags: <defaults>
</compile_context>

<pallas_src>
import functools

import jax
import jax.numpy as jnp
from jax import lax
from jax.experimental import pallas as pl
from jax.experimental.pallas import tpu as pltpu


# ----------------------------------------------------------------------------
# Small helpers
# ----------------------------------------------------------------------------
def _round_up(x, m):
    return ((x + m - 1) // m) * m


def _pad2d(a, rows, cols):
    pr, pc = rows - a.shape[0], cols - a.shape[1]
    if pr == 0 and pc == 0:
        return a
    return jnp.pad(a, ((0, pr), (0, pc)))


def _vmem_cap_bytes():
    try:
        cap = int(pltpu.get_tpu_info().vmem_capacity_bytes)
        if cap > 0:
            return cap
    except Exception:
        pass
    return 64 << 20  # conservative fallback: v7x per-TensorCore VMEM


def _compiler_params(vmem_est, semantics):
    # Leave ~25% headroom for compiler-internal scratch; never request all of
    # physical VMEM (important on v7x where a core only has 64 MiB).
    ceiling = (_vmem_cap_bytes() * 3) // 4
    limit = int(min(max(2 * vmem_est, 32 << 20), ceiling))
    return pltpu.CompilerParams(
        dimension_semantics=semantics, vmem_limit_bytes=limit
    )


def bn_fold(gamma, beta, mean, var, eps=1e-5):
    scale = gamma / jnp.sqrt(var + eps)
    bias = beta - mean * scale
    return scale, bias


def w_1x1_to_mat(w_oihw):
    # (O, I, 1, 1) -> (I, O)
    return jnp.transpose(w_oihw[:, :, 0, 0], (1, 0))


# ----------------------------------------------------------------------------
# GEMM kernel:  out = [relu]( X @ W_scaled + bias [+ residual | + R @ Wsc] )
#   - bias initializes the f32 accumulator (no zero-fill pass)
#   - single-K-step case has no VMEM scratch accumulator at all
#   - 'sc' mode fuses the downsample-shortcut 1x1-conv GEMM into the epilogue
# ----------------------------------------------------------------------------
def _make_gemm_kernel(*, nk, relu, mode):
    """Ref order: x, w, b, [r], [wsc], out, [acc].

    mode='plain': no residual.
    mode='res'  : r is a (tm, tn) additive residual (kept in f32).
    mode='sc'   : r is the (tm, K2p) shortcut input, wsc the (K2p, tn) folded
                  shortcut weight; the shortcut GEMM runs inside this kernel.
    """
    n_extra = {"plain": 0, "res": 1, "sc": 2}[mode]

    def init_acc(b_ref, extra, shape):
        acc = jnp.broadcast_to(b_ref[...].astype(jnp.float32), shape)
        if mode == "res":
            acc = acc + extra[0][...].astype(jnp.float32)
        elif mode == "sc":
            acc = acc + jnp.dot(
                extra[0][...], extra[1][...], preferred_element_type=jnp.float32
            )
        return acc

    def finish(y, o_ref):
        if relu:
            y = jnp.maximum(y, 0.0)
        o_ref[...] = y.astype(o_ref.dtype)

    if nk == 1:
        def kernel(x_ref, w_ref, b_ref, *rest):
            extra, o_ref = rest[:n_extra], rest[n_extra]
            y = init_acc(b_ref, extra, o_ref.shape)
            y = y + jnp.dot(
                x_ref[...], w_ref[...], preferred_element_type=jnp.float32
            )
            finish(y, o_ref)
    else:
        def kernel(x_ref, w_ref, b_ref, *rest):
            extra = rest[:n_extra]
            o_ref, acc_ref = rest[n_extra], rest[n_extra + 1]
            k = pl.program_id(2)

            @pl.when(k == 0)
            def _():
                acc_ref[...] = init_acc(b_ref, extra, acc_ref.shape)

            acc_ref[...] += jnp.dot(
                x_ref[...], w_ref[...], preferred_element_type=jnp.float32
            )

            @pl.when(k == nk - 1)
            def _():
                finish(acc_ref[...], o_ref)

    return kernel


def fused_matmul_bn(
    x,
    w,
    scale,
    bias,
    *,
    residual=None,
    sc_w=None,
    sc_scale=None,
    sc_bias=None,
    relu=True,
    out_dtype=jnp.float32,
    compute_dtype=jnp.bfloat16,
    tm=512,
    tn=256,
    tk=512,
    keep_padded_n=False,
):
    """y = [relu](x @ (w*scale) + bias [+ residual | + residual @ (sc_w*sc_scale) + sc_bias])."""
    M, K = x.shape
    N = w.shape[1]

    mode = "plain"
    if sc_w is not None:
        assert residual is not None and sc_scale is not None and sc_bias is not None
        mode = "sc"
    elif residual is not None:
        mode = "res"

    # Fold BN scale into weight columns; in 'sc' mode also fold shortcut BN.
    w = (w * scale.reshape(1, N)).astype(jnp.float32)
    bias = bias.astype(jnp.float32)
    if mode == "sc":
        sc_w = (sc_w * sc_scale.reshape(1, N)).astype(jnp.float32)
        bias = bias + sc_bias.astype(jnp.float32)

    # Tile selection (lane/sublane friendly; prefer tn multiples of 256).
    Mp = _round_up(M, 128); tm = min(tm, Mp); Mp = _round_up(M, tm)
    Kp = _round_up(K, 128); tk = min(tk, Kp); Kp = _round_up(K, tk)
    Np = _round_up(N, 128); tn = min(tn, Np); Np = _round_up(N, tn)

    # v7x megacore: keep >= 2 parallel blocks when possible.
    if (Mp // tm) * (Np // tn) < 2 and tm > 128 and Mp >= 256:
        tm = max(128, tm // 2)
        Mp = _round_up(M, tm)

    nk = Kp // tk
    grid = (Mp // tm, Np // tn, nk)

    xp = _pad2d(x, Mp, Kp).astype(compute_dtype)
    wp = _pad2d(w, Kp, Np).astype(compute_dtype)
    bp = _pad2d(bias.reshape(1, N), 1, Np)

    in_specs = [
        pl.BlockSpec((tm, tk), lambda i, j, k: (i, k)),
        pl.BlockSpec((tk, tn), lambda i, j, k: (k, j)),
        pl.BlockSpec((1, tn), lambda i, j, k: (0, j)),
    ]
    operands = [xp, wp, bp]

    in_b = jnp.dtype(compute_dtype).itemsize
    out_b = jnp.dtype(out_dtype).itemsize
    vmem_est = (
        2 * (tm * tk + tk * tn) * in_b
        + 2 * tn * 4
        + 2 * tm * tn * out_b
        + (tm * tn * 4 if nk > 1 else 0)
    )

    if mode == "res":
        # Keep the additive residual in f32 (skip-path precision).
        rp = _pad2d(residual.astype(jnp.float32), Mp, Np)
        in_specs.append(pl.BlockSpec((tm, tn), lambda i, j, k: (i, j)))
        operands.append(rp)
        vmem_est += 2 * tm * tn * 4
    elif mode == "sc":
        K2 = residual.shape[1]
        K2p = _round_up(K2, 128)
        rp = _pad2d(residual, Mp, K2p).astype(compute_dtype)
        scp = _pad2d(sc_w, K2p, Np).astype(compute_dtype)
        in_specs.append(pl.BlockSpec((tm, K2p), lambda i, j, k: (i, 0)))
        in_specs.append(pl.BlockSpec((K2p, tn), lambda i, j, k: (0, j)))
        operands.extend([rp, scp])
        vmem_est += 2 * (tm * K2p + K2p * tn) * in_b

    o_spec = pl.BlockSpec((tm, tn), lambda i, j, k: (i, j))
    scratch = [] if nk == 1 else [pltpu.VMEM((tm, tn), jnp.float32)]

    kernel = _make_gemm_kernel(nk=nk, relu=relu, mode=mode)
    out = pl.pallas_call(
        kernel,
        out_shape=jax.ShapeDtypeStruct((Mp, Np), out_dtype),
        grid_spec=pltpu.PrefetchScalarGridSpec(
            num_scalar_prefetch=0,
            grid=grid,
            in_specs=in_specs,
            out_specs=o_spec,
            scratch_shapes=scratch,
        ),
        compiler_params=_compiler_params(
            vmem_est, ("parallel", "parallel", "arbitrary")
        ),
    )(*operands)

    out = out[:M]
    return out if keep_padded_n else out[:, :N]


# ----------------------------------------------------------------------------
# Fused 3x3 conv + BN + ReLU kernel (no im2col through HBM)
#   The padded (and, for stride>1, polyphase-rearranged) input slab for one
#   image lives in VMEM; the 9 taps are 9 MXU GEMMs accumulated into an f32
#   VMEM scratch, then bias + ReLU and a lane-dense store.
# ----------------------------------------------------------------------------
def _conv3x3_kernel(x_ref, w_ref, b_ref, o_ref, acc_ref, *, stride, ho, wo):
    # x_ref: (stride*stride, hq, wq, Cin)   polyphase padded input (one image)
    # w_ref: (9, Cin, tn)                   tap-major, BN scale folded in
    # b_ref: (1, tn)   o_ref: (1, ho, wo, tn)   acc_ref: (ho*wo, tn) f32
    c = x_ref.shape[-1]
    acc_ref[...] = jnp.broadcast_to(b_ref[...], acc_ref.shape)
    for kh in range(3):
        for kw in range(3):
            p, dy = kh % stride, kh // stride
            q, dx = kw % stride, kw // stride
            xs = x_ref[p * stride + q, dy:dy + ho, dx:dx + wo, :]
            acc_ref[...] += jnp.dot(
                xs.reshape(ho * wo, c),
                w_ref[kh * 3 + kw],
                preferred_element_type=jnp.float32,
            )
    y = jnp.maximum(acc_ref[...], 0.0)
    o_ref[0] = y.reshape(ho, wo, y.shape[-1]).astype(o_ref.dtype)


def conv3x3_bn_relu(x_nhwc, w_oihw, scale, bias, stride, compute_dtype, tn=256):
    """3x3 conv (stride, pad=1, no bias) + folded BN + ReLU.

    Returns (N, Ho, Wo, Cout_padded) in compute_dtype (channels lane-padded).
    """
    n, h, w, c_in = x_nhwc.shape
    o, i, kh_, kw_ = w_oihw.shape
    assert (kh_, kw_) == (3, 3)
    ho = (h + 2 - 3) // stride + 1
    wo = (w + 2 - 3) // stride + 1
    hq = ho + (2 // stride)
    wq = wo + (2 // stride)
    cop = _round_up(o, 128)
    tn = min(tn, cop)
    cop = _round_up(o, tn)

    # Tap-major weights with BN scale folded into the output channels.
    wm = jnp.transpose(w_oihw, (2, 3, 1, 0)).reshape(9, i, o) * scale.reshape(1, 1, o)
    wm = jnp.pad(wm, ((0, 0), (0, c_in - i), (0, cop - o))).astype(compute_dtype)
    bm = jnp.pad(bias.astype(jnp.float32), (0, cop - o)).reshape(1, cop)

    # One padding / polyphase rearrangement pass (~1x HBM traffic on out1,
    # vs the previous 9x im2col expansion).
    xpad = jnp.pad(x_nhwc.astype(compute_dtype), ((0, 0), (1, 1), (1, 1), (0, 0)))
    if stride == 1:
        xph = xpad  # (n, hq, wq, c_in): a single phase
    else:
        slabs = []
        for p in range(stride):
            for q in range(stride):
                sl = xpad[:, p::stride, q::stride, :][:, :hq, :wq, :]
                sl = jnp.pad(
                    sl,
                    ((0, 0), (0, hq - sl.shape[1]), (0, wq - sl.shape[2]), (0, 0)),
                )
                slabs.append(sl)
        xph = jnp.stack(slabs, axis=1).reshape(n * stride * stride, hq, wq, c_in)

    nph = stride * stride
    in_b = jnp.dtype(compute_dtype).itemsize
    vmem_est = (
        2 * nph * hq * wq * c_in * in_b
        + 2 * 9 * c_in * tn * in_b
        + 2 * tn * 4
        + 2 * ho * wo * tn * in_b
        + ho * wo * tn * 4
    )

    kernel = functools.partial(_conv3x3_kernel, stride=stride, ho=ho, wo=wo)
    out = pl.pallas_call(
        kernel,
        out_shape=jax.ShapeDtypeStruct((n, ho, wo, cop), compute_dtype),
        grid_spec=pltpu.PrefetchScalarGridSpec(
            num_scalar_prefetch=0,
            grid=(n, cop // tn),
            in_specs=[
                pl.BlockSpec((nph, hq, wq, c_in), lambda b, j: (b, 0, 0, 0)),
                pl.BlockSpec((9, c_in, tn), lambda b, j: (0, 0, j)),
                pl.BlockSpec((1, tn), lambda b, j: (0, j)),
            ],
            out_specs=pl.BlockSpec((1, ho, wo, tn), lambda b, j: (b, 0, 0, j)),
            scratch_shapes=[pltpu.VMEM((ho * wo, tn), jnp.float32)],
        ),
        compiler_params=_compiler_params(vmem_est, ("parallel", "parallel")),
    )(xph, wm, bm)
    return out


# ----------------------------------------------------------------------------
# Bottleneck forward
# ----------------------------------------------------------------------------
def bottleneck_forward(x_nchw, params, stride, compute_dtype=jnp.bfloat16):
    """Pallas implementation of Bottleneck.forward (inference-mode BN)."""
    x = jnp.transpose(x_nchw, (0, 2, 3, 1))  # NCHW -> NHWC
    n, h, w, cin = x.shape
    planes = params["w1"].shape[0]
    cout = params["w3"].shape[0]
    ho = (h + 2 - 3) // stride + 1
    wo = (w + 2 - 3) // stride + 1

    # --- conv1 (1x1) + bn1 + relu (keep lane-padded channels for conv2) -----
    s1, b1 = bn_fold(*params["bn1"])
    out1 = fused_matmul_bn(
        x.reshape(n * h * w, cin),
        w_1x1_to_mat(params["w1"]),
        s1,
        b1,
        relu=True,
        out_dtype=compute_dtype,
        compute_dtype=compute_dtype,
        keep_padded_n=True,
    )
    c1p = out1.shape[1]
    out1 = out1.reshape(n, h, w, c1p)

    # --- conv2 (3x3, stride, pad=1) + bn2 + relu: fused 9-tap kernel ---------
    s2, b2 = bn_fold(*params["bn2"])
    out2 = conv3x3_bn_relu(out1, params["w2"], s2, b2, stride, compute_dtype)
    c2p = out2.shape[-1]
    out2_flat = out2.reshape(n * ho * wo, c2p)

    # --- conv3 (1x1) + bn3 + shortcut + relu, all in one kernel --------------
    s3, b3 = bn_fold(*params["bn3"])
    w3m = jnp.pad(w_1x1_to_mat(params["w3"]), ((0, c2p - planes), (0, 0)))
    if params.get("w_sc") is not None:
        ss, bs = bn_fold(*params["bn_sc"])
        x_sub = x[:, ::stride, ::stride, :][:, :ho, :wo, :].reshape(n * ho * wo, cin)
        out3 = fused_matmul_bn(
            out2_flat,
            w3m,
            s3,
            b3,
            residual=x_sub,
            sc_w=w_1x1_to_mat(params["w_sc"]),
            sc_scale=ss,
            sc_bias=bs,
            relu=True,
            out_dtype=jnp.float32,
            compute_dtype=compute_dtype,
            tn=512,
        )
    else:
        if stride != 1 or cin != cout:
            raise ValueError(
                "identity shortcut requires stride == 1 and in_planes == "
                "expansion * planes"
            )
        out3 = fused_matmul_bn(
            out2_flat,
            w3m,
            s3,
            b3,
            residual=x.reshape(n * h * w, cin),  # f32 residual (skip precision)
            relu=True,
            out_dtype=jnp.float32,
            compute_dtype=compute_dtype,
            tn=512,
        )
    return jnp.transpose(out3.reshape(n, ho, wo, cout), (0, 3, 1, 2))


# ----------------------------------------------------------------------------
# Pure-JAX reference (lax.conv) for verification
# ----------------------------------------------------------------------------
def _conv_ref(x_nhwc, w_oihw, stride, pad):
    w_hwio = jnp.transpose(w_oihw, (2, 3, 1, 0))
    return lax.conv_general_dilated(
        x_nhwc,
        w_hwio,
        (stride, stride),
        [(pad, pad), (pad, pad)],
        dimension_numbers=("NHWC", "HWIO", "NHWC"),
    )


def _bn_ref(y, gamma, beta, mean, var, eps=1e-5):
    return (y - mean) / jnp.sqrt(var + eps) * gamma + beta


def bottleneck_ref(x_nchw, params, stride):
    x = jnp.transpose(x_nchw, (0, 2, 3, 1))
    o = jax.nn.relu(_bn_ref(_conv_ref(x, params["w1"], 1, 0), *params["bn1"]))
    o = jax.nn.relu(_bn_ref(_conv_ref(o, params["w2"], stride, 1), *params["bn2"]))
    o = _bn_ref(_conv_ref(o, params["w3"], 1, 0), *params["bn3"])
    if params.get("w_sc") is not None:
        sc = _bn_ref(_conv_ref(x, params["w_sc"], stride, 0), *params["bn_sc"])
    else:
        sc = x
    o = jax.nn.relu(o + sc)
    return jnp.transpose(o, (0, 3, 1, 2))


# ----------------------------------------------------------------------------
def make_params(key, in_planes, planes, stride, expansion=4):
    ks = jax.random.split(key, 12)
    cout = expansion * planes

    def bn_params(k, c):
        k1, k2, k3, k4 = jax.random.split(k, 4)
        gamma = 1.0 + 0.1 * jax.random.normal(k1, (c,), jnp.float32)
        beta = 0.1 * jax.random.normal(k2, (c,), jnp.float32)
        mean = 0.1 * jax.random.normal(k3, (c,), jnp.float32)
        var = jnp.abs(0.5 + 0.1 * jax.random.normal(k4, (c,), jnp.float32))
        return (gamma, beta, mean, var)

    params = {
        "w1": 0.2 * jax.random.normal(ks[0], (planes, in_planes, 1, 1), jnp.float32),
        "bn1": bn_params(ks[1], planes),
        "w2": 0.2 * jax.random.normal(ks[2], (planes, planes, 3, 3), jnp.float32),
        "bn2": bn_params(ks[3], planes),
        "w3": 0.2 * jax.random.normal(ks[4], (cout, planes, 1, 1), jnp.float32),
        "bn3": bn_params(ks[5], cout),
        "w_sc": None,
    }
    if stride != 1 or in_planes != cout:
        params["w_sc"] = 0.2 * jax.random.normal(
            ks[6], (cout, in_planes, 1, 1), jnp.float32
        )
        params["bn_sc"] = bn_params(ks[7], cout)
    return params


if __name__ == "__main__":
    key = jax.random.PRNGKey(0)
    kx, kp1, kp2, kp3 = jax.random.split(key, 4)

    batch, hw = 2, 16
    configs = [
        # (in_planes, planes, stride, param_key, check_f32_path)
        (16, 4, 2, kp1, True),    # downsample shortcut, strided 3x3 (polyphase)
        (16, 4, 1, kp2, True),    # identity shortcut, stride-1 3x3
        (576, 8, 2, kp3, False),  # exercises multi-K-step GEMM path (K > tk)
    ]

    for in_planes, planes, stride, kp, check_f32 in configs:
        kxi = jax.random.fold_in(kx, in_planes)
        x = jax.random.normal(kxi, (batch, in_planes, hw, hw), jnp.float32)  # NCHW
        params = make_params(kp, in_planes, planes, stride)
        ref = jax.block_until_ready(bottleneck_ref(x, params, stride))

        if check_f32:
            fwd_f32 = jax.jit(
                lambda xx, pp, s=stride: bottleneck_forward(xx, pp, s, jnp.float32)
            )
            out_f32 = jax.block_until_ready(fwd_f32(x, params))
            assert out_f32.shape == ref.shape
            err_f32 = float(jnp.max(jnp.abs(out_f32 - ref)))
            if err_f32 > 5e-3:
                raise AssertionError(f"f32 path mismatch vs reference: {err_f32}")

        fwd_bf16 = jax.jit(
            lambda xx, pp, s=stride: bottleneck_forward(xx, pp, s, jnp.bfloat16)
        )
        out_bf16 = jax.block_until_ready(fwd_bf16(x, params))
        assert out_bf16.shape == ref.shape
        err_bf16 = float(jnp.max(jnp.abs(out_bf16 - ref)))
        tol = 5e-2 * (1.0 + float(jnp.max(jnp.abs(ref))))
        if err_bf16 > tol:
            raise AssertionError(f"bf16 path mismatch vs reference: {err_bf16} > {tol}")

    print("KERNEL_OK")
</pallas_src>

<mosaic_0001>
module attributes {stable_mosaic.version = 11 : i64} {
  func.func @kernel(%arg0: i32, %arg1: i32, %arg2: i32, %arg3: memref<256x128xf32, #tpu.memory_space<vmem>>, %arg4: memref<128x128xf32, #tpu.memory_space<vmem>>, %arg5: memref<1x128xf32, #tpu.memory_space<vmem>>, %arg6: memref<256x128xf32, #tpu.memory_space<vmem>>) attributes {dimension_semantics = [#tpu.dimension_semantics<parallel>, #tpu.dimension_semantics<parallel>, #tpu.dimension_semantics<arbitrary>], iteration_bounds = array<i64: 2, 1, 1>, scalar_prefetch = 0 : i64, scratch_operands = 0 : i64, tpu.core_type = #tpu.core_type<tc>, window_params = [{transform_indices = @transform_0, window_bounds = array<i64: 256, 128>}, {transform_indices = @transform_1, window_bounds = array<i64: 128, 128>}, {transform_indices = @transform_2, window_bounds = array<i64: 1, 128>}, {transform_indices = @transform_3, window_bounds = array<i64: 256, 128>}]} {
    %c0 = arith.constant 0 : index
    %c0_0 = arith.constant 0 : index
    %0 = vector.load %arg5[%c0, %c0_0] : memref<1x128xf32, #tpu.memory_space<vmem>>, vector<1x128xf32>
    %1 = vector.shape_cast %0 : vector<1x128xf32> to vector<1x128xf32>
    %2 = vector.broadcast %1 : vector<1x128xf32> to vector<256x128xf32>
    %c0_1 = arith.constant 0 : index
    %c0_2 = arith.constant 0 : index
    %3 = vector.load %arg3[%c0_1, %c0_2] : memref<256x128xf32, #tpu.memory_space<vmem>>, vector<256x128xf32>
    %c0_3 = arith.constant 0 : index
    %c0_4 = arith.constant 0 : index
    %4 = vector.load %arg4[%c0_3, %c0_4] : memref<128x128xf32, #tpu.memory_space<vmem>>, vector<128x128xf32>
    %cst = arith.constant dense<0.000000e+00> : vector<256x128xf32>
    %5 = tpu.matmul %3, %4, %cst {dimension_numbers = #tpu.dot_dimension_numbers<[1], [0], [0], [1], [0, 0, 1, 1], [], []>} : vector<256x128xf32>, vector<128x128xf32>, vector<256x128xf32> -> vector<256x128xf32>
    %6 = arith.addf %2, %5 : vector<256x128xf32>
    %cst_5 = arith.constant 0.000000e+00 : f32
    %7 = vector.broadcast %cst_5 : f32 to vector<256x128xf32>
    %8 = arith.maximumf %6, %7 : vector<256x128xf32>
    %c0_6 = arith.constant 0 : index
    %c0_7 = arith.constant 0 : index
    %9 = vector.load %arg6[%c0_6, %c0_7] : memref<256x128xf32, #tpu.memory_space<vmem>>, vector<256x128xf32>
    tpu.vector_store %arg6[%c0_6, %c0_7], %8 {strides = array<i32>} : memref<256x128xf32, #tpu.memory_space<vmem>>, vector<256x128xf32>,
    return
  }
  func.func @transform_0(%arg0: i32, %arg1: i32, %arg2: i32) -> (i32, i32) {
    %c0_i32 = arith.constant 0 : i32
    return %arg0, %arg2 : i32, i32
  }
  func.func @transform_1(%arg0: i32, %arg1: i32, %arg2: i32) -> (i32, i32) {
    %c0_i32 = arith.constant 0 : i32
    return %arg2, %arg1 : i32, i32
  }
  func.func @transform_2(%arg0: i32, %arg1: i32, %arg2: i32) -> (i32, i32) {
    %c0_i32 = arith.constant 0 : i32
    %c0_i32_0 = arith.constant 0 : i32
    return %c0_i32, %arg1 : i32, i32
  }
  func.func @transform_3(%arg0: i32, %arg1: i32, %arg2: i32) -> (i32, i32) {
    %c0_i32 = arith.constant 0 : i32
    return %arg0, %arg1 : i32, i32
  }
}

module attributes {stable_mosaic.version = 11 : i64} {
  func.func @_conv3x3_kernel(%arg0: i32, %arg1: i32, %arg2: memref<4x9x9x128xf32, #tpu.memory_space<vmem>>, %arg3: memref<9x128x128xf32, #tpu.memory_space<vmem>>, %arg4: memref<1x128xf32, #tpu.memory_space<vmem>>, %arg5: memref<1x8x8x128xf32, #tpu.memory_space<vmem>>, %arg6: memref<64x128xf32, #tpu.memory_space<vmem>>) attributes {dimension_semantics = [#tpu.dimension_semantics<parallel>, #tpu.dimension_semantics<parallel>], iteration_bounds = array<i64: 2, 1>, scalar_prefetch = 0 : i64, scratch_operands = 1 : i64, tpu.core_type = #tpu.core_type<tc>, window_params = [{transform_indices = @transform_0, window_bounds = array<i64: 4, 9, 9, 128>}, {transform_indices = @transform_1, window_bounds = array<i64: 9, 128, 128>}, {transform_indices = @transform_2, window_bounds = array<i64: 1, 128>}, {transform_indices = @transform_3, window_bounds = array<i64: 1, 8, 8, 128>}]} {
    %c0 = arith.constant 0 : index
    %c0_0 = arith.constant 0 : index
    %0 = vector.load %arg4[%c0, %c0_0] : memref<1x128xf32, #tpu.memory_space<vmem>>, vector<1x128xf32>
    %1 = vector.shape_cast %0 : vector<1x128xf32> to vector<1x128xf32>
    %2 = vector.broadcast %1 : vector<1x128xf32> to vector<64x128xf32>
    %c0_1 = arith.constant 0 : index
    %c0_2 = arith.constant 0 : index
    %3 = vector.load %arg6[%c0_1, %c0_2] : memref<64x128xf32, #tpu.memory_space<vmem>>, vector<64x128xf32>
    tpu.vector_store %arg6[%c0_1, %c0_2], %2 {strides = array<i32>} : memref<64x128xf32, #tpu.memory_space<vmem>>, vector<64x128xf32>,
    %c0_3 = arith.constant 0 : index
    %c0_4 = arith.constant 0 : index
    %c0_5 = arith.constant 0 : index
    %c0_6 = arith.constant 0 : index
    %4 = vector.load %arg2[%c0_3, %c0_4, %c0_5, %c0_6] : memref<4x9x9x128xf32, #tpu.memory_space<vmem>>, vector<1x8x8x128xf32>
    %5 = vector.shape_cast %4 : vector<1x8x8x128xf32> to vector<8x8x128xf32>
    %c0_7 = arith.constant 0 : index
    %c0_8 = arith.constant 0 : index
    %6 = vector.load %arg6[%c0_7, %c0_8] : memref<64x128xf32, #tpu.memory_space<vmem>>, vector<64x128xf32>
    %7 = vector.shape_cast %5 : vector<8x8x128xf32> to vector<64x128xf32>
    %c0_9 = arith.constant 0 : index
    %c0_10 = arith.constant 0 : index
    %c0_11 = arith.constant 0 : index
    %8 = vector.load %arg3[%c0_9, %c0_10, %c0_11] : memref<9x128x128xf32, #tpu.memory_space<vmem>>, vector<1x128x128xf32>
    %9 = vector.shape_cast %8 : vector<1x128x128xf32> to vector<128x128xf32>
    %cst = arith.constant dense<0.000000e+00> : vector<64x128xf32>
    %10 = tpu.matmul %7, %9, %cst {dimension_numbers = #tpu.dot_dimension_numbers<[1], [0], [0], [1], [0, 0, 1, 1], [], []>} : vector<64x128xf32>, vector<128x128xf32>, vector<64x128xf32> -> vector<64x128xf32>
    %11 = arith.addf %6, %10 : vector<64x128xf32>
    %c0_12 = arith.constant 0 : index
    %c0_13 = arith.constant 0 : index
    %12 = vector.load %arg6[%c0_12, %c0_13] : memref<64x128xf32, #tpu.memory_space<vmem>>, vector<64x128xf32>
    tpu.vector_store %arg6[%c0_12, %c0_13], %11 {strides = array<i32>} : memref<64x128xf32, #tpu.memory_space<vmem>>, vector<64x128xf32>,
    %c1 = arith.constant 1 : index
    %c0_14 = arith.constant 0 : index
    %c0_15 = arith.constant 0 : index
    %c0_16 = arith.constant 0 : index
    %13 = vector.load %arg2[%c1, %c0_14, %c0_15, %c0_16] : memref<4x9x9x128xf32, #tpu.memory_space<vmem>>, vector<1x8x8x128xf32>
    %14 = vector.shape_cast %13 : vector<1x8x8x128xf32> to vector<8x8x128xf32>
    %c0_17 = arith.constant 0 : index
    %c0_18 = arith.constant 0 : index
    %15 = vector.load %arg6[%c0_17, %c0_18] : memref<64x128xf32, #tpu.memory_space<vmem>>, vector<64x128xf32>
    %16 = vector.shape_cast %14 : vector<8x8x128xf32> to vector<64x128xf32>
    %c1_19 = arith.constant 1 : index
    %c0_20 = arith.constant 0 : index
    %c0_21 = arith.constant 0 : index
    %17 = vector.load %arg3[%c1_19, %c0_20, %c0_21] : memref<9x128x128xf32, #tpu.memory_space<vmem>>, vector<1x128x128xf32>
    %18 = vector.shape_cast %17 : vector<1x128x128xf32> to vector<128x128xf32>
    %cst_22 = arith.constant dense<0.000000e+00> : vector<64x128xf32>
    %19 = tpu.matmul %16, %18, %cst_22 {dimension_numbers = #tpu.dot_dimension_numbers<[1], [0], [0], [1], [0, 0, 1, 1], [], []>} : vector<64x128xf32>, vector<128x128xf32>, vector<64x128xf32> -> vector<64x128xf32>
    %20 = arith.addf %15, %19 : vector<64x128xf32>
    %c0_23 = arith.constant 0 : index
    %c0_24 = arith.constant 0 : index
    %21 = vector.load %arg6[%c0_23, %c0_24] : memref<64x128xf32, #tpu.memory_space<vmem>>, vector<64x128xf32>
    tpu.vector_store %arg6[%c0_23, %c0_24], %20 {strides = array<i32>} : memref<64x128xf32, #tpu.memory_space<vmem>>, vector<64x128xf32>,
    %c0_25 = arith.constant 0 : index
    %c0_26 = arith.constant 0 : index
    %c1_27 = arith.constant 1 : index
    %c0_28 = arith.constant 0 : index
    %22 = vector.load %arg2[%c0_25, %c0_26, %c1_27, %c0_28] : memref<4x9x9x128xf32, #tpu.memory_space<vmem>>, vector<1x8x8x128xf32>
    %23 = vector.shape_cast %22 : vector<1x8x8x128xf32> to vector<8x8x128xf32>
    %c0_29 = arith.constant 0 : index
    %c0_30 = arith.constant 0 : index
    %24 = vector.load %arg6[%c0_29, %c0_30] : memref<64x128xf32, #tpu.memory_space<vmem>>, vector<64x128xf32>
    %25 = vector.shape_cast %23 : vector<8x8x128xf32> to vector<64x128xf32>
    %c2 = arith.constant 2 : index
    %c0_31 = arith.constant 0 : index
    %c0_32 = arith.constant 0 : index
    %26 = vector.load %arg3[%c2, %c0_31, %c0_32] : memref<9x128x128xf32, #tpu.memory_space<vmem>>, vector<1x128x128xf32>
    %27 = vector.shape_cast %26 : vector<1x128x128xf32> to vector<128x128xf32>
    %cst_33 = arith.constant dense<0.000000e+00> : vector<64x128xf32>
    %28 = tpu.matmul %25, %27, %cst_33 {dimension_numbers = #tpu.dot_dimension_numbers<[1], [0], [0], [1], [0, 0, 1, 1], [], []>} : vector<64x128xf32>, vector<128x128xf32>, vector<64x128xf32> -> vector<64x128xf32>
    %29 = arith.addf %24, %28 : vector<64x128xf32>
    %c0_34 = arith.constant 0 : index
    %c0_35 = arith.constant 0 : index
    %30 = vector.load %arg6[%c0_34, %c0_35] : memref<64x128xf32, #tpu.memory_space<vmem>>, vector<64x128xf32>
    tpu.vector_store %arg6[%c0_34, %c0_35], %29 {strides = array<i32>} : memref<64x128xf32, #tpu.memory_space<vmem>>, vector<64x128xf32>,
    %c2_36 = arith.constant 2 : index
    %c0_37 = arith.constant 0 : index
    %c0_38 = arith.constant 0 : index
    %c0_39 = arith.constant 0 : index
    %31 = vector.load %arg2[%c2_36, %c0_37, %c0_38, %c0_39] : memref<4x9x9x128xf32, #tpu.memory_space<vmem>>, vector<1x8x8x128xf32>
    %32 = vector.shape_cast %31 : vector<1x8x8x128xf32> to vector<8x8x128xf32>
    %c0_40 = arith.constant 0 : index
    %c0_41 = arith.constant 0 : index
    %33 = vector.load %arg6[%c0_40, %c0_41] : memref<64x128xf32, #tpu.memory_space<vmem>>, vector<64x128xf32>
    %34 = vector.shape_cast %32 : vector<8x8x128xf32> to vector<64x128xf32>
    %c3 = arith.constant 3 : index
    %c0_42 = arith.constant 0 : index
    %c0_43 = arith.constant 0 : index
    %35 = vector.load %arg3[%c3, %c0_42, %c0_43] : memref<9x128x128xf32, #tpu.memory_space<vmem>>, vector<1x128x128xf32>
    %36 = vector.shape_cast %35 : vector<1x128x128xf32> to vector<128x128xf32>
    %cst_44 = arith.constant dense<0.000000e+00> : vector<64x128xf32>
    %37 = tpu.matmul %34, %36, %cst_44 {dimension_numbers = #tpu.dot_dimension_numbers<[1], [0], [0], [1], [0, 0, 1, 1], [], []>} : vector<64x128xf32>, vector<128x128xf32>, vector<64x128xf32> -> vector<64x128xf32>
    %38 = arith.addf %33, %37 : vector<64x128xf32>
    %c0_45 = arith.constant 0 : index
    %c0_46 = arith.constant 0 : index
    %39 = vector.load %arg6[%c0_45, %c0_46] : memref<64x128xf32, #tpu.memory_space<vmem>>, vector<64x128xf32>
    tpu.vector_store %arg6[%c0_45, %c0_46], %38 {strides = array<i32>} : memref<64x128xf32, #tpu.memory_space<vmem>>, vector<64x128xf32>,
    %c3_47 = arith.constant 3 : index
    %c0_48 = arith.constant 0 : index
    %c0_49 = arith.constant 0 : index
    %c0_50 = arith.constant 0 : index
    %40 = vector.load %arg2[%c3_47, %c0_48, %c0_49, %c0_50] : memref<4x9x9x128xf32, #tpu.memory_space<vmem>>, vector<1x8x8x128xf32>
    %41 = vector.shape_cast %40 : vector<1x8x8x128xf32> to vector<8x8x128xf32>
    %c0_51 = arith.constant 0 : index
    %c0_52 = arith.constant 0 : index
    %42 = vector.load %arg6[%c0_51, %c0_52] : memref<64x128xf32, #tpu.memory_space<vmem>>, vector<64x128xf32>
    %43 = vector.shape_cast %41 : vector<8x8x128xf32> to vector<64x128xf32>
    %c4 = arith.constant 4 : index
    %c0_53 = arith.constant 0 : index
    %c0_54 = arith.constant 0 : index
    %44 = vector.load %arg3[%c4, %c0_53, %c0_54] : memref<9x128x128xf32, #tpu.memory_space<vmem>>, vector<1x128x128xf32>
    %45 = vector.shape_cast %44 : vector<1x128x128xf32> to vector<128x128xf32>
    %cst_55 = arith.constant dense<0.000000e+00> : vector<64x128xf32>
    %46 = tpu.matmul %43, %45, %cst_55 {dimension_numbers = #tpu.dot_dimension_numbers<[1], [0], [0], [1], [0, 0, 1, 1], [], []>} : vector<64x128xf32>, vector<128x128xf32>, vector<64x128xf32> -> vector<64x128xf32>
    %47 = arith.addf %42, %46 : vector<64x128xf32>
    %c0_56 = arith.constant 0 : index
    %c0_57 = arith.constant 0 : index
    %48 = vector.load %arg6[%c0_56, %c0_57] : memref<64x128xf32, #tpu.memory_space<vmem>>, vector<64x128xf32>
    tpu.vector_store %arg6[%c0_56, %c0_57], %47 {strides = array<i32>} : memref<64x128xf32, #tpu.memory_space<vmem>>, vector<64x128xf32>,
    %c2_58 = arith.constant 2 : index
    %c0_59 = arith.constant 0 : index
    %c1_60 = arith.constant 1 : index
    %c0_61 = arith.constant 0 : index
    %49 = vector.load %arg2[%c2_58, %c0_59, %c1_60, %c0_61] : memref<4x9x9x128xf32, #tpu.memory_space<vmem>>, vector<1x8x8x128xf32>
    %50 = vector.shape_cast %49 : vector<1x8x8x128xf32> to vector<8x8x128xf32>
    %c0_62 = arith.constant 0 : index
    %c0_63 = arith.constant 0 : index
    %51 = vector.load %arg6[%c0_62, %c0_63] : memref<64x128xf32, #tpu.memory_space<vmem>>, vector<64x128xf32>
    %52 = vector.shape_cast %50 : vector<8x8x128xf32> to vector<64x128xf32>
    %c5 = arith.constant 5 : index
    %c0_64 = arith.constant 0 : index
    %c0_65 = arith.constant 0 : index
    %53 = vector.load %arg3[%c5, %c0_64, %c0_65] : memref<9x128x128xf32, #tpu.memory_space<vmem>>, vector<1x128x128xf32>
    %54 = vector.shape_cast %53 : vector<1x128x128xf32> to vector<128x128xf32>
    %cst_66 = arith.constant dense<0.000000e+00> : vector<64x128xf32>
    %55 = tpu.matmul %52, %54, %cst_66 {dimension_numbers = #tpu.dot_dimension_numbers<[1], [0], [0], [1], [0, 0, 1, 1], [], []>} : vector<64x128xf32>, vector<128x128xf32>, vector<64x128xf32> -> vector<64x128xf32>
    %56 = arith.addf %51, %55 : vector<64x128xf32>
    %c0_67 = arith.constant 0 : index
    %c0_68 = arith.constant 0 : index
    %57 = vector.load %arg6[%c0_67, %c0_68] : memref<64x128xf32, #tpu.memory_space<vmem>>, vector<64x128xf32>
    tpu.vector_store %arg6[%c0_67, %c0_68], %56 {strides = array<i32>} : memref<64x128xf32, #tpu.memory_space<vmem>>, vector<64x128xf32>,
    %c0_69 = arith.constant 0 : index
    %c1_70 = arith.constant 1 : index
    %c0_71 = arith.constant 0 : index
    %c0_72 = arith.constant 0 : index
    %58 = vector.load %arg2[%c0_69, %c1_70, %c0_71, %c0_72] : memref<4x9x9x128xf32, #tpu.memory_space<vmem>>, vector<1x8x8x128xf32>
    %59 = vector.shape_cast %58 : vector<1x8x8x128xf32> to vector<8x8x128xf32>
    %c0_73 = arith.constant 0 : index
    %c0_74 = arith.constant 0 : index
    %60 = vector.load %arg6[%c0_73, %c0_74] : memref<64x128xf32, #tpu.memory_space<vmem>>, vector<64x128xf32>
    %61 = vector.shape_cast %59 : vector<8x8x128xf32> to vector<64x128xf32>
    %c6 = arith.constant 6 : index
    %c0_75 = arith.constant 0 : index
    %c0_76 = arith.constant 0 : index
    %62 = vector.load %arg3[%c6, %c0_75, %c0_76] : memref<9x128x128xf32, #tpu.memory_space<vmem>>, vector<1x128x128xf32>
    %63 = vector.shape_cast %62 : vector<1x128x128xf32> to vector<128x128xf32>
    %cst_77 = arith.constant dense<0.000000e+00> : vector<64x128xf32>
    %64 = tpu.matmul %61, %63, %cst_77 {dimension_numbers = #tpu.dot_dimension_numbers<[1], [0], [0], [1], [0, 0, 1, 1], [], []>} : vector<64x128xf32>, vector<128x128xf32>, vector<64x128xf32> -> vector<64x128xf32>
    %65 = arith.addf %60, %64 : vector<64x128xf32>
    %c0_78 = arith.constant 0 : index
    %c0_79 = arith.constant 0 : index
    %66 = vector.load %arg6[%c0_78, %c0_79] : memref<64x128xf32, #tpu.memory_space<vmem>>, vector<64x128xf32>
    tpu.vector_store %arg6[%c0_78, %c0_79], %65 {strides = array<i32>} : memref<64x128xf32, #tpu.memory_space<vmem>>, vector<64x128xf32>,
    %c1_80 = arith.constant 1 : index
    %c1_81 = arith.constant 1 : index
    %c0_82 = arith.constant 0 : index
    %c0_83 = arith.constant 0 : index
    %67 = vector.load %arg2[%c1_80, %c1_81, %c0_82, %c0_83] : memref<4x9x9x128xf32, #tpu.memory_space<vmem>>, vector<1x8x8x128xf32>
    %68 = vector.shape_cast %67 : vector<1x8x8x128xf32> to vector<8x8x128xf32>
    %c0_84 = arith.constant 0 : index
    %c0_85 = arith.constant 0 : index
    %69 = vector.load %arg6[%c0_84, %c0_85] : memref<64x128xf32, #tpu.memory_space<vmem>>, vector<64x128xf32>
    %70 = vector.shape_cast %68 : vector<8x8x128xf32> to vector<64x128xf32>
    %c7 = arith.constant 7 : index
    %c0_86 = arith.constant 0 : index
    %c0_87 = arith.constant 0 : index
    %71 = vector.load %arg3[%c7, %c0_86, %c0_87] : memref<9x128x128xf32, #tpu.memory_space<vmem>>, vector<1x128x128xf32>
    %72 = vector.shape_cast %71 : vector<1x128x128xf32> to vector<128x128xf32>
    %cst_88 = arith.constant dense<0.000000e+00> : vector<64x128xf32>
    %73 = tpu.matmul %70, %72, %cst_88 {dimension_numbers = #tpu.dot_dimension_numbers<[1], [0], [0], [1], [0, 0, 1, 1], [], []>} : vector<64x128xf32>, vector<128x128xf32>, vector<64x128xf32> -> vector<64x128xf32>
    %74 = arith.addf %69, %73 : vector<64x128xf32>
    %c0_89 = arith.constant 0 : index
    %c0_90 = arith.constant 0 : index
    %75 = vector.load %arg6[%c0_89, %c0_90] : memref<64x128xf32, #tpu.memory_space<vmem>>, vector<64x128xf32>
    tpu.vector_store %arg6[%c0_89, %c0_90], %74 {strides = array<i32>} : memref<64x128xf32, #tpu.memory_space<vmem>>, vector<64x128xf32>,
    %c0_91 = arith.constant 0 : index
    %c1_92 = arith.constant 1 : index
    %c1_93 = arith.constant 1 : index
    %c0_94 = arith.constant 0 : index
    %76 = vector.load %arg2[%c0_91, %c1_92, %c1_93, %c0_94] : memref<4x9x9x128xf32, #tpu.memory_space<vmem>>, vector<1x8x8x128xf32>
    %77 = vector.shape_cast %76 : vector<1x8x8x128xf32> to vector<8x8x128xf32>
    %c0_95 = arith.constant 0 : index
    %c0_96 = arith.constant 0 : index
    %78 = vector.load %arg6[%c0_95, %c0_96] : memref<64x128xf32, #tpu.memory_space<vmem>>, vector<64x128xf32>
    %79 = vector.shape_cast %77 : vector<8x8x128xf32> to vector<64x128xf32>
    %c8 = arith.constant 8 : index
    %c0_97 = arith.constant 0 : index
    %c0_98 = arith.constant 0 : index
    %80 = vector.load %arg3[%c8, %c0_97, %c0_98] : memref<9x128x128xf32, #tpu.memory_space<vmem>>, vector<1x128x128xf32>
    %81 = vector.shape_cast %80 : vector<1x128x128xf32> to vector<128x128xf32>
    %cst_99 = arith.constant dense<0.000000e+00> : vector<64x128xf32>
    %82 = tpu.matmul %79, %81, %cst_99 {dimension_numbers = #tpu.dot_dimension_numbers<[1], [0], [0], [1], [0, 0, 1, 1], [], []>} : vector<64x128xf32>, vector<128x128xf32>, vector<64x128xf32> -> vector<64x128xf32>
    %83 = arith.addf %78, %82 : vector<64x128xf32>
    %c0_100 = arith.constant 0 : index
    %c0_101 = arith.constant 0 : index
    %84 = vector.load %arg6[%c0_100, %c0_101] : memref<64x128xf32, #tpu.memory_space<vmem>>, vector<64x128xf32>
    tpu.vector_store %arg6[%c0_100, %c0_101], %83 {strides = array<i32>} : memref<64x128xf32, #tpu.memory_space<vmem>>, vector<64x128xf32>,
    %c0_102 = arith.constant 0 : index
    %c0_103 = arith.constant 0 : index
    %85 = vector.load %arg6[%c0_102, %c0_103] : memref<64x128xf32, #tpu.memory_space<vmem>>, vector<64x128xf32>
    %cst_104 = arith.constant 0.000000e+00 : f32
    %86 = vector.broadcast %cst_104 : f32 to vector<64x128xf32>
    %87 = arith.maximumf %85, %86 : vector<64x128xf32>
    %88 = vector.shape_cast %87 : vector<64x128xf32> to vector<8x8x128xf32>
    %c0_105 = arith.constant 0 : index
    %c0_106 = arith.constant 0 : index
    %c0_107 = arith.constant 0 : index
    %c0_108 = arith.constant 0 : index
    %89 = vector.load %arg5[%c0_105, %c0_106, %c0_107, %c0_108] : memref<1x8x8x128xf32, #tpu.memory_space<vmem>>, vector<1x8x8x128xf32>
    %90 = vector.shape_cast %89 : vector<1x8x8x128xf32> to vector<8x8x128xf32>
    %91 = vector.shape_cast %88 : vector<8x8x128xf32> to vector<1x8x8x128xf32>
    tpu.vector_store %arg5[%c0_105, %c0_106, %c0_107, %c0_108], %91 {strides = array<i32>} : memref<1x8x8x128xf32, #tpu.memory_space<vmem>>, vector<1x8x8x128xf32>,
    return
  }
  func.func @transform_0(%arg0: i32, %arg1: i32) -> (i32, i32, i32, i32) {
    %c0_i32 = arith.constant 0 : i32
    %c0_i32_0 = arith.constant 0 : i32
    %c0_i32_1 = arith.constant 0 : i32
    %c0_i32_2 = arith.constant 0 : i32
    return %arg0, %c0_i32, %c0_i32_0, %c0_i32_1 : i32, i32, i32, i32
  }
  func.func @transform_1(%arg0: i32, %arg1: i32) -> (i32, i32, i32) {
    %c0_i32 = arith.constant 0 : i32
    %c0_i32_0 = arith.constant 0 : i32
    %c0_i32_1 = arith.constant 0 : i32
    return %c0_i32, %c0_i32_0, %arg1 : i32, i32, i32
  }
  func.func @transform_2(%arg0: i32, %arg1: i32) -> (i32, i32) {
    %c0_i32 = arith.constant 0 : i32
    %c0_i32_0 = arith.constant 0 : i32
    return %c0_i32, %arg1 : i32, i32
  }
  func.func @transform_3(%arg0: i32, %arg1: i32) -> (i32, i32, i32, i32) {
    %c0_i32 = arith.constant 0 : i32
    %c0_i32_0 = arith.constant 0 : i32
    %c0_i32_1 = arith.constant 0 : i32
    return %arg0, %c0_i32, %c0_i32_0, %arg1 : i32, i32, i32, i32
  }
}

module attributes {stable_mosaic.version = 11 : i64} {
  func.func @kernel(%arg0: i32, %arg1: i32, %arg2: i32, %arg3: memref<128x128xf32, #tpu.memory_space<vmem>>, %arg4: memref<128x128xf32, #tpu.memory_space<vmem>>, %arg5: memref<1x128xf32, #tpu.memory_space<vmem>>, %arg6: memref<128x128xf32, #tpu.memory_space<vmem>>, %arg7: memref<128x128xf32, #tpu.memory_space<vmem>>, %arg8: memref<128x128xf32, #tpu.memory_space<vmem>>) attributes {dimension_semantics = [#tpu.dimension_semantics<parallel>, #tpu.dimension_semantics<parallel>, #tpu.dimension_semantics<arbitrary>], iteration_bounds = array<i64: 1, 1, 1>, scalar_prefetch = 0 : i64, scratch_operands = 0 : i64, tpu.core_type = #tpu.core_type<tc>, window_params = [{transform_indices = @transform_0, window_bounds = array<i64: 128, 128>}, {transform_indices = @transform_1, window_bounds = array<i64: 128, 128>}, {transform_indices = @transform_2, window_bounds = array<i64: 1, 128>}, {transform_indices = @transform_3, window_bounds = array<i64: 128, 128>}, {transform_indices = @transform_4, window_bounds = array<i64: 128, 128>}, {transform_indices = @transform_5, window_bounds = array<i64: 128, 128>}]} {
    %c0 = arith.constant 0 : index
    %c0_0 = arith.constant 0 : index
    %0 = vector.load %arg5[%c0, %c0_0] : memref<1x128xf32, #tpu.memory_space<vmem>>, vector<1x128xf32>
    %1 = vector.shape_cast %0 : vector<1x128xf32> to vector<1x128xf32>
    %2 = vector.broadcast %1 : vector<1x128xf32> to vector<128x128xf32>
    %c0_1 = arith.constant 0 : index
    %c0_2 = arith.constant 0 : index
    %3 = vector.load %arg6[%c0_1, %c0_2] : memref<128x128xf32, #tpu.memory_space<vmem>>, vector<128x128xf32>
    %c0_3 = arith.constant 0 : index
    %c0_4 = arith.constant 0 : index
    %4 = vector.load %arg7[%c0_3, %c0_4] : memref<128x128xf32, #tpu.memory_space<vmem>>, vector<128x128xf32>
    %cst = arith.constant dense<0.000000e+00> : vector<128x128xf32>
    %5 = tpu.matmul %3, %4, %cst {dimension_numbers = #tpu.dot_dimension_numbers<[1], [0], [0], [1], [0, 0, 1, 1], [], []>} : vector<128x128xf32>, vector<128x128xf32>, vector<128x128xf32> -> vector<128x128xf32>
    %6 = arith.addf %2, %5 : vector<128x128xf32>
    %c0_5 = arith.constant 0 : index
    %c0_6 = arith.constant 0 : index
    %7 = vector.load %arg3[%c0_5, %c0_6] : memref<128x128xf32, #tpu.memory_space<vmem>>, vector<128x128xf32>
    %c0_7 = arith.constant 0 : index
    %c0_8 = arith.constant 0 : index
    %8 = vector.load %arg4[%c0_7, %c0_8] : memref<128x128xf32, #tpu.memory_space<vmem>>, vector<128x128xf32>
    %cst_9 = arith.constant dense<0.000000e+00> : vector<128x128xf32>
    %9 = tpu.matmul %7, %8, %cst_9 {dimension_numbers = #tpu.dot_dimension_numbers<[1], [0], [0], [1], [0, 0, 1, 1], [], []>} : vector<128x128xf32>, vector<128x128xf32>, vector<128x128xf32> -> vector<128x128xf32>
    %10 = arith.addf %6, %9 : vector<128x128xf32>
    %cst_10 = arith.constant 0.000000e+00 : f32
    %11 = vector.broadcast %cst_10 : f32 to vector<128x128xf32>
    %12 = arith.maximumf %10, %11 : vector<128x128xf32>
    %c0_11 = arith.constant 0 : index
    %c0_12 = arith.constant 0 : index
    %13 = vector.load %arg8[%c0_11, %c0_12] : memref<128x128xf32, #tpu.memory_space<vmem>>, vector<128x128xf32>
    tpu.vector_store %arg8[%c0_11, %c0_12], %12 {strides = array<i32>} : memref<128x128xf32, #tpu.memory_space<vmem>>, vector<128x128xf32>,
    return
  }
  func.func @transform_0(%arg0: i32, %arg1: i32, %arg2: i32) -> (i32, i32) {
    %c0_i32 = arith.constant 0 : i32
    return %arg0, %arg2 : i32, i32
  }
  func.func @transform_1(%arg0: i32, %arg1: i32, %arg2: i32) -> (i32, i32) {
    %c0_i32 = arith.constant 0 : i32
    return %arg2, %arg1 : i32, i32
  }
  func.func @transform_2(%arg0: i32, %arg1: i32, %arg2: i32) -> (i32, i32) {
    %c0_i32 = arith.constant 0 : i32
    %c0_i32_0 = arith.constant 0 : i32
    return %c0_i32, %arg1 : i32, i32
  }
  func.func @transform_3(%arg0: i32, %arg1: i32, %arg2: i32) -> (i32, i32) {
    %c0_i32 = arith.constant 0 : i32
    %c0_i32_0 = arith.constant 0 : i32
    return %arg0, %c0_i32 : i32, i32
  }
  func.func @transform_4(%arg0: i32, %arg1: i32, %arg2: i32) -> (i32, i32) {
    %c0_i32 = arith.constant 0 : i32
    %c0_i32_0 = arith.constant 0 : i32
    return %c0_i32, %arg1 : i32, i32
  }
  func.func @transform_5(%arg0: i32, %arg1: i32, %arg2: i32) -> (i32, i32) {
    %c0_i32 = arith.constant 0 : i32
    return %arg0, %arg1 : i32, i32
  }
}

</mosaic_0001>

<llo_original>
// kernel: _lambda_.3
$region0: #{_lambda_.3}
  #allocation0 [shape = 'u32[]', space=smem, size = 0x4, offset = 0x4, fixed_abs, tag = 'smem constant byte address 0x4 - core index']
  #allocation1 [shape = 'u32[144,128]{1,0:T(1,128)}', space=vmem, size = 0x12000, scoped, tag = 'internal scratch']
  %s0 = inlined_call_operand.vmem [shape: f32[512,128], index: 0, kind: input, shape index: {}]
  %s1 = inlined_call_operand.vmem [shape: f32[128,128], index: 1, kind: input, shape index: {}]
  %s2 = inlined_call_operand.vmem [shape: f32[1,128], index: 2, kind: input, shape index: {}]
  %s3 = inlined_call_operand.vmem [shape: f32[512,128], index: 3, kind: output, shape index: {}]
  %s4 = sld [smem:[#allocation0]]
  $region45: #{_lambda_.3} parent=0
    _
  %s6 = ssub.s32 1, %s4
  %s7 = scalar_select 0, %s6, %s4
  loop: start=0, step=1, limit=4
  $region2: #{_lambda_.3} parent=0 // loop_pre_header
    _
  $region3: #{_lambda_.3} parent=0 // loop_header
    %s9 = sphi 0, %s13
    %p10 = scmp.ge.s32.totalorder %s9, 4
    %s16 = sphi 0, %s35
    %s17 = sphi 0, %s31
    %s18 = sphi 0, %s27
    %s19 = sphi 0, %s16
    %s20 = sphi 0, %s17
    %s21 = sphi 0, %s18
    %s22 = sphi 0, %s19
    %s23 = sphi 0, %s20
    %s24 = sphi 0, %s21
    %s40 = sphi 0, %s42
    %s43 = sphi 0, %s40
    %s44 = sphi 0, %s43
    %s60 = sphi 0, %s44
    %s68 = sphi 0, %s70
    %s71 = sphi 0, %s68
    %s72 = sphi 0, %s71
    %s88 = sphi 0, %s72
    %s94 = sphi 0, %s96
    %s97 = sphi 0, %s94
    %s98 = sphi 0, %s97
    %s114 = sphi 0, %s98
    %s122 = sphi 0, %s124
    %s125 = sphi 0, %s122
    %s126 = sphi 0, %s125
    %s142 = sphi 0, %s126
  $region4: #{_lambda_.3} parent=0 // loop_header_branch
    %12 = sbr.rel (%p10) target = $region8
  $region5: #{_lambda_.3} parent=0 // loop_body
    %s14 = ssub.s32 %s9, 1
    %s15 = ssub.s32 %s9, 2
    %s25 = sadd.s32 1, %s18
    %p26 = scmp.ge.s32.totalorder %s25, 1
    %s27 = scalar_select %p26, 0, %s25
    %s28 = sadd.s32 1, %s17
    %s29 = scalar_select %p26, %s28, %s17
    %p30 = scmp.ge.s32.totalorder %s29, 1
    %s31 = scalar_select %p30, 0, %s29
    %s32 = sadd.s32 1, %s16
    %s33 = scalar_select %p30, %s32, %s16
    %p34 = scmp.ge.s32.totalorder %s33, 2
    %s35 = scalar_select %p34, 0, %s33
    %s36 = ssub.s32 %s16, %s35
    %s37 = ssub.s32 %s18, %s27
    %s38 = sor.u32 %s36, %s37
    %p39 = scmp.eq.s32.totalorder %s38, 0
    %s41 = sadd.s32 %s40, 1
    %s42 = scalar_select %p39, %s40, %s41
    %p45 = pneg %p39
    %p46 = scmp.eq.s32.totalorder %s9, 1
    %p47 = por %p45, %p46
    %p48 = scmp.ne.s32.totalorder %s40, %s43
    %p49 = scmp.eq.s32.totalorder %s9, 0
    %p50 = por %p48, %p49
    %p51 = scmp.ne.s32.totalorder %s40, %s43
    %p52 = scmp.eq.s32.totalorder %s14, 1
    %p53 = por %p51, %p52
    %p54 = scmp.ne.s32.totalorder %s43, %s44
    %p55 = scmp.eq.s32.totalorder %s14, 0
    %p56 = por %p54, %p55
    %p57 = scmp.ne.s32.totalorder %s43, %s44
    %p58 = scmp.eq.s32.totalorder %s15, 1
    %p59 = por %p57, %p58
    %p61 = scmp.ne.s32.totalorder %s44, %s60
    %p62 = scmp.eq.s32.totalorder %s15, 0
    %p63 = por %p61, %p62
    %s64 = ssub.s32 %s18, %s27
    %s65 = ssub.s32 %s17, %s31
    %s66 = sor.u32 %s64, %s65
    %p67 = scmp.eq.s32.totalorder %s66, 0
    %s69 = sadd.s32 %s68, 1
    %s70 = scalar_select %p67, %s68, %s69
    %p73 = pneg %p67
    %p74 = scmp.eq.s32.totalorder %s9, 1
    %p75 = por %p73, %p74
    %p76 = scmp.ne.s32.totalorder %s68, %s71
    %p77 = scmp.eq.s32.totalorder %s9, 0
    %p78 = por %p76, %p77
    %p79 = scmp.ne.s32.totalorder %s68, %s71
    %p80 = scmp.eq.s32.totalorder %s14, 1
    %p81 = por %p79, %p80
    %p82 = scmp.ne.s32.totalorder %s71, %s72
    %p83 = scmp.eq.s32.totalorder %s14, 0
    %p84 = por %p82, %p83
    %p85 = scmp.ne.s32.totalorder %s71, %s72
    %p86 = scmp.eq.s32.totalorder %s15, 1
    %p87 = por %p85, %p86
    %p89 = scmp.ne.s32.totalorder %s72, %s88
    %p90 = scmp.eq.s32.totalorder %s15, 0
    %p91 = por %p89, %p90
    %s92 = ssub.s32 %s17, %s31
    %p93 = scmp.eq.s32.totalorder %s92, 0
    %s95 = sadd.s32 %s94, 1
    %s96 = scalar_select %p93, %s94, %s95
    %p99 = pneg %p93
    %p100 = scmp.eq.s32.totalorder %s9, 1
    %p101 = por %p99, %p100
    %p102 = scmp.ne.s32.totalorder %s94, %s97
    %p103 = scmp.eq.s32.totalorder %s9, 0
    %p104 = por %p102, %p103
    %p105 = scmp.ne.s32.totalorder %s94, %s97
    %p106 = scmp.eq.s32.totalorder %s14, 1
    %p107 = por %p105, %p106
    %p108 = scmp.ne.s32.totalorder %s97, %s98
    %p109 = scmp.eq.s32.totalorder %s14, 0
    %p110 = por %p108, %p109
    %p111 = scmp.ne.s32.totalorder %s97, %s98
    %p112 = scmp.eq.s32.totalorder %s15, 1
    %p113 = por %p111, %p112
    %p115 = scmp.ne.s32.totalorder %s98, %s114
    %p116 = scmp.eq.s32.totalorder %s15, 0
    %p117 = por %p115, %p116
    %s118 = ssub.s32 %s16, %s35
    %s119 = ssub.s32 %s17, %s31
    %s120 = sor.u32 %s118, %s119
    %p121 = scmp.eq.s32.totalorder %s120, 0
    %s123 = sadd.s32 %s122, 1
    %s124 = scalar_select %p121, %s122, %s123
    %p127 = pneg %p121
    %p128 = scmp.eq.s32.totalorder %s9, 1
    %p129 = por %p127, %p128
    %p130 = scmp.ne.s32.totalorder %s122, %s125
    %p131 = scmp.eq.s32.totalorder %s9, 0
    %p132 = por %p130, %p131
    %p133 = scmp.ne.s32.totalorder %s122, %s125
    %p134 = scmp.eq.s32.totalorder %s14, 1
    %p135 = por %p133, %p134
    %p136 = scmp.ne.s32.totalorder %s125, %s126
    %p137 = scmp.eq.s32.totalorder %s14, 0
    %p138 = por %p136, %p137
    %p139 = scmp.ne.s32.totalorder %s125, %s126
    %p140 = scmp.eq.s32.totalorder %s15, 1
    %p141 = por %p139, %p140
    %p143 = scmp.ne.s32.totalorder %s126, %s142
    %p144 = scmp.eq.s32.totalorder %s15, 0
    %p145 = por %p143, %p144
    %p146 = scmp.le.s32.totalorder 1, %s9
    %p147 = scmp.lt.s32.totalorder %s9, 3
    %p148 = pnand %p146, %p147
    %p149 = pneg %p148
    // Predicated region
    $region9: #{_lambda_.3} parent=5 // pred_check
      _
    $region10: #{_lambda_.3} parent=5 // pred_check_branch
      %151 = sbr.rel (%p148) target = $region12
    $region11: #{_lambda_.3} parent=5 // pred_region
      %s152 = ssub.s32 %s9, 1
      // Predicated region
      $region13: #{_lambda_.3} parent=11 // pred_check
        %p153 = pneg %p84
      $region14: #{_lambda_.3} parent=11 // pred_check_branch
        %155 = sbr.rel (%p153) target = $region16
      $region15: #{_lambda_.3} parent=11 // pred_region
        %s156 = smul.u32 16, %s21
        %p157 = scmp.lt.s32.totalorder %s156, 15
        %s158 = scalar_select %p157, %s156, 15
        %p159 = scmp.lt.s32.totalorder %s20, 0
        %s160 = scalar_select %p159, %s20, 0
        %s161 = sadd.s32 %s160, %s158
        %s162 = smul.addr %s161, 8
        %s163 = scalar_lea.vmem %s1, %s162
        %s164 = smul.u32 16, %s21
      $region16: #{_lambda_.3} parent=11 // pred_fallthru
        _
      // Predicated region
      $region17: #{_lambda_.3} parent=11 // pred_check
        %p165 = pneg %p110
      $region18: #{_lambda_.3} parent=11 // pred_check_branch
        %167 = sbr.rel (%p165) target = $region20
      $region19: #{_lambda_.3} parent=11 // pred_region
        %p168 = scmp.lt.s32.totalorder %s20, 0
        %s169 = scalar_select %p168, %s20, 0
        %s170 = scalar_lea.vmem %s2, %s169
      $region20: #{_lambda_.3} parent=11 // pred_fallthru
        _
    $region12: #{_lambda_.3} parent=5 // pred_fallthru
      _
    %p171 = scmp.lt.s32.totalorder %s9, 2
    // Predicated region
    $region21: #{_lambda_.3} parent=5 // pred_check
      %p172 = pneg %p171
    $region22: #{_lambda_.3} parent=5 // pred_check_branch
      %174 = sbr.rel (%p172) target = $region24
    $region23: #{_lambda_.3} parent=5 // pred_region
      // Predicated region
      $region25: #{_lambda_.3} parent=23 // pred_check
        %p175 = pneg %p50
      $region26: #{_lambda_.3} parent=23 // pred_check_branch
        %177 = sbr.rel (%p175) target = $region28
      $region27: #{_lambda_.3} parent=23 // pred_region
        %s178 = smul.u32 32, %s16
        %p179 = scmp.lt.s32.totalorder %s178, 63
        %s180 = scalar_select %p179, %s178, 63
        %p181 = scmp.lt.s32.totalorder %s18, 0
        %s182 = scalar_select %p181, %s18, 0
        %s183 = sadd.s32 %s182, %s180
        %s184 = smul.addr %s183, 8
        %s185 = scalar_lea.vmem %s0, %s184
        %s186 = smul.u32 32, %s16
      $region28: #{_lambda_.3} parent=23 // pred_fallthru
        _
    $region24: #{_lambda_.3} parent=5 // pred_fallthru
      _
    %p187 = scmp.le.s32.totalorder 1, %s9
    %p188 = scmp.lt.s32.totalorder %s9, 3
    %p189 = pnand %p187, %p188
    %p190 = pneg %p189
    // Predicated region
    $region29: #{_lambda_.3} parent=5 // pred_check
      _
    $region30: #{_lambda_.3} parent=5 // pred_check_branch
      %192 = sbr.rel (%p189) target = $region32
    $region31: #{_lambda_.3} parent=5 // pred_region
      %s193 = ssub.s32 %s9, 1
      %s194 = smul.u32 32, %s19
      %p195 = scmp.lt.s32.totalorder %s194, 63
      %s196 = scalar_select %p195, %s194, 63
      %p197 = scmp.lt.s32.totalorder %s21, 0
      %s198 = scalar_select %p197, %s21, 0
      %s199 = sadd.s32 %s198, %s196
      %s200 = smul.addr %s199, 8
      %s201 = scalar_lea.vmem %s0, %s200
      %p202 = pneg %p56
      %p203 = pneg %p53
      %s204 = smul.u32 16, %s21
      %p205 = scmp.lt.s32.totalorder %s204, 15
      %s206 = scalar_select %p205, %s204, 15
      %p207 = scmp.lt.s32.totalorder %s20, 0
      %s208 = scalar_select %p207, %s20, 0
      %s209 = sadd.s32 %s208, %s206
      %s210 = smul.addr %s209, 8
      %s211 = scalar_lea.vmem %s1, %s210
      %p212 = pneg %p84
      %p213 = pneg %p81
      %p214 = scmp.lt.s32.totalorder %s20, 0
      %s215 = scalar_select %p214, %s20, 0
      %s216 = scalar_lea.vmem %s2, %s215
      %p217 = pneg %p110
      %p218 = pneg %p107
      %p219 = pneg %p138
      %p220 = pneg %p135
      %s221 = smul.u32 32, %s19
      %p222 = scmp.lt.s32.totalorder %s221, 63
      %s223 = scalar_select %p222, %s221, 63
      %p224 = scmp.lt.s32.totalorder %s20, 0
      %s225 = scalar_select %p224, %s20, 0
      %s226 = sadd.s32 %s225, %s223
      %s227 = smul.addr %s226, 8
      %s228 = scalar_lea.vmem %s3, %s227
      %s229 = smul.u32 32, %s19
      %p230 = scmp.lt.s32.totalorder %s229, 63
      %s231 = scalar_select %p230, %s229, 63
      %p232 = scmp.lt.s32.totalorder %s21, 0
      %s233 = scalar_select %p232, %s21, 0
      %s234 = sadd.s32 %s233, %s231
      %s235 = smul.addr %s234, 8
      %s236 = scalar_lea.vmem %s0, %s235
      %s237 = smul.u32 32, %s19
      %s238 = smul.u32 16, %s21
      %p239 = scmp.lt.s32.totalorder %s238, 15
      %s240 = scalar_select %p239, %s238, 15
      %p241 = scmp.lt.s32.totalorder %s20, 0
      %s242 = scalar_select %p241, %s20, 0
      %s243 = sadd.s32 %s242, %s240
      %s244 = smul.addr %s243, 8
      %s245 = scalar_lea.vmem %s1, %s244
      %s246 = smul.u32 16, %s21
      %p247 = scmp.lt.s32.totalorder %s20, 0
      %s248 = scalar_select %p247, %s20, 0
      %s249 = scalar_lea.vmem %s2, %s248
      %s250 = smul.u32 32, %s19
      %p251 = scmp.lt.s32.totalorder %s250, 63
      %s252 = scalar_select %p251, %s250, 63
      %p253 = scmp.lt.s32.totalorder %s20, 0
      %s254 = scalar_select %p253, %s20, 0
      %s255 = sadd.s32 %s254, %s252
      %s256 = smul.addr %s255, 8
      %s257 = scalar_lea.vmem %s3, %s256
      %s258 = smul.u32 32, %s19
      %v259 = vld [vmem:[%s249] sm:$0x1]
      %v261 = vlaneseq
      %v262 = vshrl.u32 %v261, 7
      %v263 = vsub.s32 0, %v262
      %v264 = vrot.slane %v259, %v263
      %v266 = vld [vmem:[%s236] sm:$0xff]
      %v267 = vld [vmem:[%s236 + $0x8] sm:$0xff]
      %v268 = vld [vmem:[%s236 + $0x10] sm:$0xff]
      %v269 = vld [vmem:[%s236 + $0x18] sm:$0xff]
      %v270 = vld [vmem:[%s236 + $0x20] sm:$0xff]
      %v271 = vld [vmem:[%s236 + $0x28] sm:$0xff]
      %v272 = vld [vmem:[%s236 + $0x30] sm:$0xff]
      %v273 = vld [vmem:[%s236 + $0x38] sm:$0xff]
      %v274 = vld [vmem:[%s236 + $0x40] sm:$0xff]
      %v275 = vld [vmem:[%s236 + $0x48] sm:$0xff]
      %v276 = vld [vmem:[%s236 + $0x50] sm:$0xff]
      %v277 = vld [vmem:[%s236 + $0x58] sm:$0xff]
      %v278 = vld [vmem:[%s236 + $0x60] sm:$0xff]
      %v279 = vld [vmem:[%s236 + $0x68] sm:$0xff]
      %v280 = vld [vmem:[%s236 + $0x70] sm:$0xff]
      %v281 = vld [vmem:[%s236 + $0x78] sm:$0xff]
      %v282 = vld [vmem:[%s236 + $0x80] sm:$0xff]
      %v283 = vld [vmem:[%s236 + $0x88] sm:$0xff]
      %v284 = vld [vmem:[%s236 + $0x90] sm:$0xff]
      %v285 = vld [vmem:[%s236 + $0x98] sm:$0xff]
      %v286 = vld [vmem:[%s236 + $0xa0] sm:$0xff]
      %v287 = vld [vmem:[%s236 + $0xa8] sm:$0xff]
      %v288 = vld [vmem:[%s236 + $0xb0] sm:$0xff]
      %v289 = vld [vmem:[%s236 + $0xb8] sm:$0xff]
      %v290 = vld [vmem:[%s236 + $0xc0] sm:$0xff]
      %v291 = vld [vmem:[%s236 + $0xc8] sm:$0xff]
      %v292 = vld [vmem:[%s236 + $0xd0] sm:$0xff]
      %v293 = vld [vmem:[%s236 + $0xd8] sm:$0xff]
      %v294 = vld [vmem:[%s236 + $0xe0] sm:$0xff]
      %v295 = vld [vmem:[%s236 + $0xe8] sm:$0xff]
      %v296 = vld [vmem:[%s236 + $0xf0] sm:$0xff]
      %v297 = vld [vmem:[%s236 + $0xf8] sm:$0xff]
      %v298 = vld [vmem:[%s245] sm:$0xff]
      %v299 = vld [vmem:[%s245 + $0x8] sm:$0xff]
      %v300 = vld [vmem:[%s245 + $0x10] sm:$0xff]
      %v301 = vld [vmem:[%s245 + $0x18] sm:$0xff]
      %v302 = vld [vmem:[%s245 + $0x20] sm:$0xff]
      %v303 = vld [vmem:[%s245 + $0x28] sm:$0xff]
      %v304 = vld [vmem:[%s245 + $0x30] sm:$0xff]
      %v305 = vld [vmem:[%s245 + $0x38] sm:$0xff]
      %v306 = vld [vmem:[%s245 + $0x40] sm:$0xff]
      %v307 = vld [vmem:[%s245 + $0x48] sm:$0xff]
      %v308 = vld [vmem:[%s245 + $0x50] sm:$0xff]
      %v309 = vld [vmem:[%s245 + $0x58] sm:$0xff]
      %v310 = vld [vmem:[%s245 + $0x60] sm:$0xff]
      %v311 = vld [vmem:[%s245 + $0x68] sm:$0xff]
      %v312 = vld [vmem:[%s245 + $0x70] sm:$0xff]
      %v313 = vld [vmem:[%s245 + $0x78] sm:$0xff]
      %314 = vmatprep.subr.mxu0 0.0
      %315 = vmatpush1.msra.mxu0 %v298
      %316 = vmatprep.subr.mxu0 0.0
      %317 = vmatpush1.msra.mxu0 %v299
      %318 = vmatprep.subr.mxu0 0.0
      %319 = vmatpush1.msra.mxu0 %v300
      %320 = vmatprep.subr.mxu0 0.0
      %321 = vmatpush1.msra.mxu0 %v301
      %322 = vmatprep.subr.mxu0 0.0
      %323 = vmatpush1.msra.mxu0 %v302
      %324 = vmatprep.subr.mxu0 0.0
      %325 = vmatpush1.msra.mxu0 %v303
      %326 = vmatprep.subr.mxu0 0.0
      %327 = vmatpush1.msra.mxu0 %v304
      %328 = vmatprep.subr.mxu0 0.0
      %329 = vmatpush1.msra.mxu0 %v305
      %330 = vmatprep.subr.mxu0 0.0
      %331 = vmatpush1.msra.mxu0 %v306
      %332 = vmatprep.subr.mxu0 0.0
      %333 = vmatpush1.msra.mxu0 %v307
      %334 = vmatprep.subr.mxu0 0.0
      %335 = vmatpush1.msra.mxu0 %v308
      %336 = vmatprep.subr.mxu0 0.0
      %337 = vmatpush1.msra.mxu0 %v309
      %338 = vmatprep.subr.mxu0 0.0
      %339 = vmatpush1.msra.mxu0 %v310
      %340 = vmatprep.subr.mxu0 0.0
      %341 = vmatpush1.msra.mxu0 %v311
      %342 = vmatprep.subr.mxu0 0.0
      %343 = vmatpush1.msra.mxu0 %v312
      %344 = vmatprep.subr.mxu0 0.0
      %345 = vmatpush1.msra.mxu0 %v313
      %346 = vmatprep.subr.mxu0 0.0
      %347 = vmatpush1.msra.mxu0 0.0
      %348 = vmatprep.subr.mxu0 0.0
      %349 = vmatpush1.msra.mxu0 0.0
      %350 = vmatprep.subr.mxu0 0.0
      %351 = vmatpush1.msra.mxu0 0.0
      %352 = vmatprep.subr.mxu0 0.0
      %353 = vmatpush1.msra.mxu0 0.0
      %354 = vmatprep.subr.mxu0 0.0
      %355 = vmatpush1.msra.mxu0 0.0
      %356 = vmatprep.subr.mxu0 0.0
      %357 = vmatpush1.msra.mxu0 0.0
      %358 = vmatprep.subr.mxu0 0.0
      %359 = vmatpush1.msra.mxu0 0.0
      %360 = vmatprep.subr.mxu0 0.0
      %361 = vmatpush1.msra.mxu0 0.0
      %362 = vmatprep.subr.mxu0 0.0
      %363 = vmatpush1.msra.mxu0 0.0
      %364 = vmatprep.subr.mxu0 0.0
      %365 = vmatpush1.msra.mxu0 0.0
      %366 = vmatprep.subr.mxu0 0.0
      %367 = vmatpush1.msra.mxu0 0.0
      %368 = vmatprep.subr.mxu0 0.0
      %369 = vmatpush1.msra.mxu0 0.0
      %370 = vmatprep.subr.mxu0 0.0
      %371 = vmatpush1.msra.mxu0 0.0
      %372 = vmatprep.subr.mxu0 0.0
      %373 = vmatpush1.msra.mxu0 0.0
      %374 = vmatprep.subr.mxu0 0.0
      %375 = vmatpush1.msra.mxu0 0.0
      %376 = vmatprep.subr.mxu0 0.0
      %377 = vmatpush1.msra.mxu0 0.0
      %378 = vmatprep.mubr.f32.mxu0 0.0
      %379 = vmatmul.mubr.f32.gmra.mrb[0].mxu0 %v266
      %v380 = vpop.f32.mrb[0].mxu0
      %v381 = vadd.f32 0.0, %v380
      %v382 = vpop.f32.mrb[0].mxu0
      %383 = vmatprep.mubr.f32.mxu0 0.0
      %384 = vmatmul.mubr.f32.gmra.mrb[0].mxu0 %v267
      %v385 = vpop.f32.mrb[0].mxu0
      %v386 = vadd.f32 0.0, %v385
      %v387 = vpop.f32.mrb[0].mxu0
      %388 = vmatprep.mubr.f32.mxu0 0.0
      %389 = vmatmul.mubr.f32.gmra.mrb[0].mxu0 %v268
      %v390 = vpop.f32.mrb[0].mxu0
      %v391 = vadd.f32 0.0, %v390
      %v392 = vpop.f32.mrb[0].mxu0
      %393 = vmatprep.mubr.f32.mxu0 0.0
      %394 = vmatmul.mubr.f32.gmra.mrb[0].mxu0 %v269
      %v395 = vpop.f32.mrb[0].mxu0
      %v396 = vadd.f32 0.0, %v395
      %v397 = vpop.f32.mrb[0].mxu0
      %398 = vmatprep.mubr.f32.mxu0 0.0
      %399 = vmatmul.mubr.f32.gmra.mrb[0].mxu0 %v270
      %v400 = vpop.f32.mrb[0].mxu0
      %v401 = vadd.f32 0.0, %v400
      %v402 = vpop.f32.mrb[0].mxu0
      %403 = vmatprep.mubr.f32.mxu0 0.0
      %404 = vmatmul.mubr.f32.gmra.mrb[0].mxu0 %v271
      %v405 = vpop.f32.mrb[0].mxu0
      %v406 = vadd.f32 0.0, %v405
      %v407 = vpop.f32.mrb[0].mxu0
      %408 = vmatprep.mubr.f32.mxu0 0.0
      %409 = vmatmul.mubr.f32.gmra.mrb[0].mxu0 %v272
      %v410 = vpop.f32.mrb[0].mxu0
      %v411 = vadd.f32 0.0, %v410
      %v412 = vpop.f32.mrb[0].mxu0
      %413 = vmatprep.mubr.f32.mxu0 0.0
      %414 = vmatmul.mubr.f32.gmra.mrb[0].mxu0 %v273
      %v415 = vpop.f32.mrb[0].mxu0
      %v416 = vadd.f32 0.0, %v415
      %v417 = vpop.f32.mrb[0].mxu0
      %418 = vmatprep.mubr.f32.mxu0 0.0
      %419 = vmatmul.mubr.f32.gmra.mrb[0].mxu0 %v274
      %v420 = vpop.f32.mrb[0].mxu0
      %v421 = vadd.f32 0.0, %v420
      %v422 = vpop.f32.mrb[0].mxu0
      %423 = vmatprep.mubr.f32.mxu0 0.0
      %424 = vmatmul.mubr.f32.gmra.mrb[0].mxu0 %v275
      %v425 = vpop.f32.mrb[0].mxu0
      %v426 = vadd.f32 0.0, %v425
      %v427 = vpop.f32.mrb[0].mxu0
      %428 = vmatprep.mubr.f32.mxu0 0.0
      %429 = vmatmul.mubr.f32.gmra.mrb[0].mxu0 %v276
      %v430 = vpop.f32.mrb[0].mxu0
      %v431 = vadd.f32 0.0, %v430
      %v432 = vpop.f32.mrb[0].mxu0
      %433 = vmatprep.mubr.f32.mxu0 0.0
      %434 = vmatmul.mubr.f32.gmra.mrb[0].mxu0 %v277
      %v435 = vpop.f32.mrb[0].mxu0
      %v436 = vadd.f32 0.0, %v435
      %v437 = vpop.f32.mrb[0].mxu0
      %438 = vmatprep.mubr.f32.mxu0 0.0
      %439 = vmatmul.mubr.f32.gmra.mrb[0].mxu0 %v278
      %v440 = vpop.f32.mrb[0].mxu0
      %v441 = vadd.f32 0.0, %v440
      %v442 = vpop.f32.mrb[0].mxu0
      %443 = vmatprep.mubr.f32.mxu0 0.0
      %444 = vmatmul.mubr.f32.gmra.mrb[0].mxu0 %v279
      %v445 = vpop.f32.mrb[0].mxu0
      %v446 = vadd.f32 0.0, %v445
      %v447 = vpop.f32.mrb[0].mxu0
      %448 = vmatprep.mubr.f32.mxu0 0.0
      %449 = vmatmul.mubr.f32.gmra.mrb[0].mxu0 %v280
      %v450 = vpop.f32.mrb[0].mxu0
      %v451 = vadd.f32 0.0, %v450
      %v452 = vpop.f32.mrb[0].mxu0
      %453 = vmatprep.mubr.f32.mxu0 0.0
      %454 = vmatmul.mubr.f32.gmra.mrb[0].mxu0 %v281
      %v455 = vpop.f32.mrb[0].mxu0
      %v456 = vadd.f32 0.0, %v455
      %v457 = vpop.f32.mrb[0].mxu0
      %458 = vmatprep.mubr.f32.mxu0 0.0
      %459 = vmatmul.mubr.f32.gmra.mrb[0].mxu0 %v282
      %v460 = vpop.f32.mrb[0].mxu0
      %v461 = vadd.f32 0.0, %v460
      %v462 = vpop.f32.mrb[0].mxu0
      %463 = vmatprep.mubr.f32.mxu0 0.0
      %464 = vmatmul.mubr.f32.gmra.mrb[0].mxu0 %v283
      %v465 = vpop.f32.mrb[0].mxu0
      %v466 = vadd.f32 0.0, %v465
      %v467 = vpop.f32.mrb[0].mxu0
      %468 = vmatprep.mubr.f32.mxu0 0.0
      %469 = vmatmul.mubr.f32.gmra.mrb[0].mxu0 %v284
      %v470 = vpop.f32.mrb[0].mxu0
      %v471 = vadd.f32 0.0, %v470
      %v472 = vpop.f32.mrb[0].mxu0
      %473 = vmatprep.mubr.f32.mxu0 0.0
      %474 = vmatmul.mubr.f32.gmra.mrb[0].mxu0 %v285
      %v475 = vpop.f32.mrb[0].mxu0
      %v476 = vadd.f32 0.0, %v475
      %v477 = vpop.f32.mrb[0].mxu0
      %478 = vmatprep.mubr.f32.mxu0 0.0
      %479 = vmatmul.mubr.f32.gmra.mrb[0].mxu0 %v286
      %v480 = vpop.f32.mrb[0].mxu0
      %v481 = vadd.f32 0.0, %v480
      %v482 = vpop.f32.mrb[0].mxu0
      %483 = vmatprep.mubr.f32.mxu0 0.0
      %484 = vmatmul.mubr.f32.gmra.mrb[0].mxu0 %v287
      %v485 = vpop.f32.mrb[0].mxu0
      %v486 = vadd.f32 0.0, %v485
      %v487 = vpop.f32.mrb[0].mxu0
      %488 = vmatprep.mubr.f32.mxu0 0.0
      %489 = vmatmul.mubr.f32.gmra.mrb[0].mxu0 %v288
      %v490 = vpop.f32.mrb[0].mxu0
      %v491 = vadd.f32 0.0, %v490
      %v492 = vpop.f32.mrb[0].mxu0
      %493 = vmatprep.mubr.f32.mxu0 0.0
      %494 = vmatmul.mubr.f32.gmra.mrb[0].mxu0 %v289
      %v495 = vpop.f32.mrb[0].mxu0
      %v496 = vadd.f32 0.0, %v495
      %v497 = vpop.f32.mrb[0].mxu0
      %498 = vmatprep.mubr.f32.mxu0 0.0
      %499 = vmatmul.mubr.f32.gmra.mrb[0].mxu0 %v290
      %v500 = vpop.f32.mrb[0].mxu0
      %v501 = vadd.f32 0.0, %v500
      %v502 = vpop.f32.mrb[0].mxu0
      %503 = vmatprep.mubr.f32.mxu0 0.0
      %504 = vmatmul.mubr.f32.gmra.mrb[0].mxu0 %v291
      %v505 = vpop.f32.mrb[0].mxu0
      %v506 = vadd.f32 0.0, %v505
      %v507 = vpop.f32.mrb[0].mxu0
      %508 = vmatprep.mubr.f32.mxu0 0.0
      %509 = vmatmul.mubr.f32.gmra.mrb[0].mxu0 %v292
      %v510 = vpop.f32.mrb[0].mxu0
      %v511 = vadd.f32 0.0, %v510
      %v512 = vpop.f32.mrb[0].mxu0
      %513 = vmatprep.mubr.f32.mxu0 0.0
      %514 = vmatmul.mubr.f32.gmra.mrb[0].mxu0 %v293
      %v515 = vpop.f32.mrb[0].mxu0
      %v516 = vadd.f32 0.0, %v515
      %v517 = vpop.f32.mrb[0].mxu0
      %518 = vmatprep.mubr.f32.mxu0 0.0
      %519 = vmatmul.mubr.f32.gmra.mrb[0].mxu0 %v294
      %v520 = vpop.f32.mrb[0].mxu0
      %v521 = vadd.f32 0.0, %v520
      %v522 = vpop.f32.mrb[0].mxu0
      %523 = vmatprep.mubr.f32.mxu0 0.0
      %524 = vmatmul.mubr.f32.gmra.mrb[0].mxu0 %v295
      %v525 = vpop.f32.mrb[0].mxu0
      %v526 = vadd.f32 0.0, %v525
      %v527 = vpop.f32.mrb[0].mxu0
      %528 = vmatprep.mubr.f32.mxu0 0.0
      %529 = vmatmul.mubr.f32.gmra.mrb[0].mxu0 %v296
      %v530 = vpop.f32.mrb[0].mxu0
      %v531 = vadd.f32 0.0, %v530
      %v532 = vpop.f32.mrb[0].mxu0
      %533 = vmatprep.mubr.f32.mxu0 0.0
      %534 = vmatmul.mubr.f32.gmra.mrb[0].mxu0 %v297
      %v535 = vpop.f32.mrb[0].mxu0
      %v536 = vadd.f32 0.0, %v535
      %v537 = vpop.f32.mrb[0].mxu0
      %538 = vdwg.mxu0
      %v539 = vadd.f32 %v264, %v381
      %v540 = vadd.f32 %v264, %v386
      %v541 = vadd.f32 %v264, %v391
      %v542 = vadd.f32 %v264, %v396
      %v543 = vadd.f32 %v264, %v401
      %v544 = vadd.f32 %v264, %v406
      %v545 = vadd.f32 %v264, %v411
      %v546 = vadd.f32 %v264, %v416
      %v547 = vadd.f32 %v264, %v421
      %v548 = vadd.f32 %v264, %v426
      %v549 = vadd.f32 %v264, %v431
      %v550 = vadd.f32 %v264, %v436
      %v551 = vadd.f32 %v264, %v441
      %v552 = vadd.f32 %v264, %v446
      %v553 = vadd.f32 %v264, %v451
      %v554 = vadd.f32 %v264, %v456
      %v555 = vadd.f32 %v264, %v461
      %v556 = vadd.f32 %v264, %v466
      %v557 = vadd.f32 %v264, %v471
      %v558 = vadd.f32 %v264, %v476
      %v559 = vadd.f32 %v264, %v481
      %v560 = vadd.f32 %v264, %v486
      %v561 = vadd.f32 %v264, %v491
      %v562 = vadd.f32 %v264, %v496
      %v563 = vadd.f32 %v264, %v501
      %v564 = vadd.f32 %v264, %v506
      %v565 = vadd.f32 %v264, %v511
      %v566 = vadd.f32 %v264, %v516
      %v567 = vadd.f32 %v264, %v521
      %v568 = vadd.f32 %v264, %v526
      %v569 = vadd.f32 %v264, %v531
      %v570 = vadd.f32 %v264, %v536
      %v571 = vmax.f32 %v539, 0.0
      %v572 = vmax.f32 %v540, 0.0
      %v573 = vmax.f32 %v541, 0.0
      %v574 = vmax.f32 %v542, 0.0
      %v575 = vmax.f32 %v543, 0.0
      %v576 = vmax.f32 %v544, 0.0
      %v577 = vmax.f32 %v545, 0.0
      %v578 = vmax.f32 %v546, 0.0
      %v579 = vmax.f32 %v547, 0.0
      %v580 = vmax.f32 %v548, 0.0
      %v581 = vmax.f32 %v549, 0.0
      %v582 = vmax.f32 %v550, 0.0
      %v583 = vmax.f32 %v551, 0.0
      %v584 = vmax.f32 %v552, 0.0
      %v585 = vmax.f32 %v553, 0.0
      %v586 = vmax.f32 %v554, 0.0
      %v587 = vmax.f32 %v555, 0.0
      %v588 = vmax.f32 %v556, 0.0
      %v589 = vmax.f32 %v557, 0.0
      %v590 = vmax.f32 %v558, 0.0
      %v591 = vmax.f32 %v559, 0.0
      %v592 = vmax.f32 %v560, 0.0
      %v593 = vmax.f32 %v561, 0.0
      %v594 = vmax.f32 %v562, 0.0
      %v595 = vmax.f32 %v563, 0.0
      %v596 = vmax.f32 %v564, 0.0
      %v597 = vmax.f32 %v565, 0.0
      %v598 = vmax.f32 %v566, 0.0
      %v599 = vmax.f32 %v567, 0.0
      %v600 = vmax.f32 %v568, 0.0
      %v601 = vmax.f32 %v569, 0.0
      %v602 = vmax.f32 %v570, 0.0
      %603 = vst [vmem:[%s257] sm:$0xff] %v571
      %604 = vst [vmem:[%s257 + $0x8] sm:$0xff] %v572
      %605 = vst [vmem:[%s257 + $0x10] sm:$0xff] %v573
      %606 = vst [vmem:[%s257 + $0x18] sm:$0xff] %v574
      %607 = vst [vmem:[%s257 + $0x20] sm:$0xff] %v575
      %608 = vst [vmem:[%s257 + $0x28] sm:$0xff] %v576
      %609 = vst [vmem:[%s257 + $0x30] sm:$0xff] %v577
      %610 = vst [vmem:[%s257 + $0x38] sm:$0xff] %v578
      %611 = vst [vmem:[%s257 + $0x40] sm:$0xff] %v579
      %612 = vst [vmem:[%s257 + $0x48] sm:$0xff] %v580
      %613 = vst [vmem:[%s257 + $0x50] sm:$0xff] %v581
      %614 = vst [vmem:[%s257 + $0x58] sm:$0xff] %v582
      %615 = vst [vmem:[%s257 + $0x60] sm:$0xff] %v583
      %616 = vst [vmem:[%s257 + $0x68] sm:$0xff] %v584
      %617 = vst [vmem:[%s257 + $0x70] sm:$0xff] %v585
      %618 = vst [vmem:[%s257 + $0x78] sm:$0xff] %v586
      %619 = vst [vmem:[%s257 + $0x80] sm:$0xff] %v587
      %620 = vst [vmem:[%s257 + $0x88] sm:$0xff] %v588
      %621 = vst [vmem:[%s257 + $0x90] sm:$0xff] %v589
      %622 = vst [vmem:[%s257 + $0x98] sm:$0xff] %v590
      %623 = vst [vmem:[%s257 + $0xa0] sm:$0xff] %v591
      %624 = vst [vmem:[%s257 + $0xa8] sm:$0xff] %v592
      %625 = vst [vmem:[%s257 + $0xb0] sm:$0xff] %v593
      %626 = vst [vmem:[%s257 + $0xb8] sm:$0xff] %v594
      %627 = vst [vmem:[%s257 + $0xc0] sm:$0xff] %v595
      %628 = vst [vmem:[%s257 + $0xc8] sm:$0xff] %v596
      %629 = vst [vmem:[%s257 + $0xd0] sm:$0xff] %v597
      %630 = vst [vmem:[%s257 + $0xd8] sm:$0xff] %v598
      %631 = vst [vmem:[%s257 + $0xe0] sm:$0xff] %v599
      %632 = vst [vmem:[%s257 + $0xe8] sm:$0xff] %v600
      %633 = vst [vmem:[%s257 + $0xf0] sm:$0xff] %v601
      %634 = vst [vmem:[%s257 + $0xf8] sm:$0xff] %v602
      %s635 = smul.u32 32, %s19
      %p636 = scmp.lt.s32.totalorder %s635, 63
      %s637 = scalar_select %p636, %s635, 63
      %p638 = scmp.lt.s32.totalorder %s20, 0
      %s639 = scalar_select %p638, %s20, 0
      %s640 = sadd.s32 %s639, %s637
      %s641 = smul.addr %s640, 8
      %s642 = scalar_lea.vmem %s3, %s641
      // Predicated region
      $region33: #{_lambda_.3} parent=31 // pred_check
        %p643 = pneg %p135
      $region34: #{_lambda_.3} parent=31 // pred_check_branch
        %645 = sbr.rel (%p643) target = $region36
      $region35: #{_lambda_.3} parent=31 // pred_region
        %s646 = smul.u32 32, %s19
      $region36: #{_lambda_.3} parent=31 // pred_fallthru
        _
    $region32: #{_lambda_.3} parent=5 // pred_fallthru
      _
    %p647 = scmp.le.s32.totalorder 2, %s9
    // Predicated region
    $region37: #{_lambda_.3} parent=5 // pred_check
      %p648 = pneg %p647
    $region38: #{_lambda_.3} parent=5 // pred_check_branch
      %650 = sbr.rel (%p648) target = $region40
    $region39: #{_lambda_.3} parent=5 // pred_region
      %s651 = ssub.s32 %s9, 2
      // Predicated region
      $region41: #{_lambda_.3} parent=39 // pred_check
        %p652 = pneg %p141
      $region42: #{_lambda_.3} parent=39 // pred_check_branch
        %654 = sbr.rel (%p652) target = $region44
      $region43: #{_lambda_.3} parent=39 // pred_region
        %s655 = smul.u32 32, %s22
        %p656 = scmp.lt.s32.totalorder %s655, 63
        %s657 = scalar_select %p656, %s655, 63
        %p658 = scmp.lt.s32.totalorder %s23, 0
        %s659 = scalar_select %p658, %s23, 0
        %s660 = sadd.s32 %s659, %s657
        %s661 = smul.addr %s660, 8
        %s662 = scalar_lea.vmem %s3, %s661
      $region44: #{_lambda_.3} parent=39 // pred_fallthru
        _
    $region40: #{_lambda_.3} parent=5 // pred_fallthru
      _
  $region6: #{_lambda_.3} parent=0 // loop_footer
    %s13 = sadd.s32 1, %s9
  $region7: #{_lambda_.3} parent=0 // loop_footer_branch
    %8 = sbr.rel target = $region3
  $region8: #{_lambda_.3} parent=0 // loop_exit
    _

// kernel: _lambda_.4
$region0: #{_lambda_.4}
  #allocation0 [shape = 'u32[]', space=smem, size = 0x4, offset = 0x4, fixed_abs, tag = 'smem constant byte address 0x4 - core index']
  #allocation1 [shape = 'u32[144,128]{1,0:T(1,128)}', space=vmem, size = 0x12000, scoped, tag = 'internal scratch']
  #allocation2 [shape = 'f32[64,128]{1,0:T(8,128)}', space=vmem, size = 0x8000, scoped, tag = 'scratch operand']
  %s0 = inlined_call_operand.vmem [shape: f32[8,9,9,128], index: 0, kind: input, shape index: {}]
  %s1 = inlined_call_operand.vmem [shape: f32[9,128,128], index: 1, kind: input, shape index: {}]
  %s2 = inlined_call_operand.vmem [shape: f32[1,128], index: 2, kind: input, shape index: {}]
  %s3 = inlined_call_operand.vmem [shape: f32[2,8,8,128], index: 3, kind: output, shape index: {}]
  %s4 = sld [smem:[#allocation0]]
  $region45: #{_lambda_.4} parent=0
    _
  %s6 = ssub.s32 1, %s4
  %s7 = scalar_select 0, %s6, %s4
  loop: start=0, step=1, limit=4
  $region2: #{_lambda_.4} parent=0 // loop_pre_header
    _
  $region3: #{_lambda_.4} parent=0 // loop_header
    %s9 = sphi 0, %s13
    %p10 = scmp.ge.s32.totalorder %s9, 4
    %s16 = sphi 0, %s28
    %s17 = sphi 0, %s24
    %s18 = sphi 0, %s16
    %s19 = sphi 0, %s17
    %s20 = sphi 0, %s18
    %s21 = sphi 0, %s19
    %s31 = sphi 0, %s33
    %s34 = sphi 0, %s31
    %s35 = sphi 0, %s34
    %s51 = sphi 0, %s35
    %s57 = sphi 0, %s59
    %s60 = sphi 0, %s57
    %s61 = sphi 0, %s60
    %s77 = sphi 0, %s61
    %s83 = sphi 0, %s85
    %s86 = sphi 0, %s83
    %s87 = sphi 0, %s86
    %s103 = sphi 0, %s87
    %s111 = sphi 0, %s113
    %s114 = sphi 0, %s111
    %s115 = sphi 0, %s114
    %s131 = sphi 0, %s115
  $region4: #{_lambda_.4} parent=0 // loop_header_branch
    %12 = sbr.rel (%p10) target = $region8
  $region5: #{_lambda_.4} parent=0 // loop_body
    %s14 = ssub.s32 %s9, 1
    %s15 = ssub.s32 %s9, 2
    %s22 = sadd.s32 1, %s17
    %p23 = scmp.ge.s32.totalorder %s22, 1
    %s24 = scalar_select %p23, 0, %s22
    %s25 = sadd.s32 1, %s16
    %s26 = scalar_select %p23, %s25, %s16
    %p27 = scmp.ge.s32.totalorder %s26, 2
    %s28 = scalar_select %p27, 0, %s26
    %s29 = ssub.s32 %s16, %s28
    %p30 = scmp.eq.s32.totalorder %s29, 0
    %s32 = sadd.s32 %s31, 1
    %s33 = scalar_select %p30, %s31, %s32
    %p36 = pneg %p30
    %p37 = scmp.eq.s32.totalorder %s9, 1
    %p38 = por %p36, %p37
    %p39 = scmp.ne.s32.totalorder %s31, %s34
    %p40 = scmp.eq.s32.totalorder %s9, 0
    %p41 = por %p39, %p40
    %p42 = scmp.ne.s32.totalorder %s31, %s34
    %p43 = scmp.eq.s32.totalorder %s14, 1
    %p44 = por %p42, %p43
    %p45 = scmp.ne.s32.totalorder %s34, %s35
    %p46 = scmp.eq.s32.totalorder %s14, 0
    %p47 = por %p45, %p46
    %p48 = scmp.ne.s32.totalorder %s34, %s35
    %p49 = scmp.eq.s32.totalorder %s15, 1
    %p50 = por %p48, %p49
    %p52 = scmp.ne.s32.totalorder %s35, %s51
    %p53 = scmp.eq.s32.totalorder %s15, 0
    %p54 = por %p52, %p53
    %s55 = ssub.s32 %s17, %s24
    %p56 = scmp.eq.s32.totalorder %s55, 0
    %s58 = sadd.s32 %s57, 1
    %s59 = scalar_select %p56, %s57, %s58
    %p62 = pneg %p56
    %p63 = scmp.eq.s32.totalorder %s9, 1
    %p64 = por %p62, %p63
    %p65 = scmp.ne.s32.totalorder %s57, %s60
    %p66 = scmp.eq.s32.totalorder %s9, 0
    %p67 = por %p65, %p66
    %p68 = scmp.ne.s32.totalorder %s57, %s60
    %p69 = scmp.eq.s32.totalorder %s14, 1
    %p70 = por %p68, %p69
    %p71 = scmp.ne.s32.totalorder %s60, %s61
    %p72 = scmp.eq.s32.totalorder %s14, 0
    %p73 = por %p71, %p72
    %p74 = scmp.ne.s32.totalorder %s60, %s61
    %p75 = scmp.eq.s32.totalorder %s15, 1
    %p76 = por %p74, %p75
    %p78 = scmp.ne.s32.totalorder %s61, %s77
    %p79 = scmp.eq.s32.totalorder %s15, 0
    %p80 = por %p78, %p79
    %s81 = ssub.s32 %s17, %s24
    %p82 = scmp.eq.s32.totalorder %s81, 0
    %s84 = sadd.s32 %s83, 1
    %s85 = scalar_select %p82, %s83, %s84
    %p88 = pneg %p82
    %p89 = scmp.eq.s32.totalorder %s9, 1
    %p90 = por %p88, %p89
    %p91 = scmp.ne.s32.totalorder %s83, %s86
    %p92 = scmp.eq.s32.totalorder %s9, 0
    %p93 = por %p91, %p92
    %p94 = scmp.ne.s32.totalorder %s83, %s86
    %p95 = scmp.eq.s32.totalorder %s14, 1
    %p96 = por %p94, %p95
    %p97 = scmp.ne.s32.totalorder %s86, %s87
    %p98 = scmp.eq.s32.totalorder %s14, 0
    %p99 = por %p97, %p98
    %p100 = scmp.ne.s32.totalorder %s86, %s87
    %p101 = scmp.eq.s32.totalorder %s15, 1
    %p102 = por %p100, %p101
    %p104 = scmp.ne.s32.totalorder %s87, %s103
    %p105 = scmp.eq.s32.totalorder %s15, 0
    %p106 = por %p104, %p105
    %s107 = ssub.s32 %s16, %s28
    %s108 = ssub.s32 %s17, %s24
    %s109 = sor.u32 %s107, %s108
    %p110 = scmp.eq.s32.totalorder %s109, 0
    %s112 = sadd.s32 %s111, 1
    %s113 = scalar_select %p110, %s111, %s112
    %p116 = pneg %p110
    %p117 = scmp.eq.s32.totalorder %s9, 1
    %p118 = por %p116, %p117
    %p119 = scmp.ne.s32.totalorder %s111, %s114
    %p120 = scmp.eq.s32.totalorder %s9, 0
    %p121 = por %p119, %p120
    %p122 = scmp.ne.s32.totalorder %s111, %s114
    %p123 = scmp.eq.s32.totalorder %s14, 1
    %p124 = por %p122, %p123
    %p125 = scmp.ne.s32.totalorder %s114, %s115
    %p126 = scmp.eq.s32.totalorder %s14, 0
    %p127 = por %p125, %p126
    %p128 = scmp.ne.s32.totalorder %s114, %s115
    %p129 = scmp.eq.s32.totalorder %s15, 1
    %p130 = por %p128, %p129
    %p132 = scmp.ne.s32.totalorder %s115, %s131
    %p133 = scmp.eq.s32.totalorder %s15, 0
    %p134 = por %p132, %p133
    %p135 = scmp.le.s32.totalorder 1, %s9
    %p136 = scmp.lt.s32.totalorder %s9, 3
    %p137 = pnand %p135, %p136
    %p138 = pneg %p137
    // Predicated region
    $region9: #{_lambda_.4} parent=5 // pred_check
      _
    $region10: #{_lambda_.4} parent=5 // pred_check_branch
      %140 = sbr.rel (%p137) target = $region12
    $region11: #{_lambda_.4} parent=5 // pred_region
      %s141 = ssub.s32 %s9, 1
      // Predicated region
      $region13: #{_lambda_.4} parent=11 // pred_check
        %p142 = pneg %p73
      $region14: #{_lambda_.4} parent=11 // pred_check_branch
        %144 = sbr.rel (%p142) target = $region16
      $region15: #{_lambda_.4} parent=11 // pred_region
        %p145 = scmp.lt.s32.totalorder %s19, 0
        %s146 = scalar_select %p145, %s19, 0
        %s147 = smul.addr %s146, 8
        %s148 = scalar_lea.vmem %s1, %s147
      $region16: #{_lambda_.4} parent=11 // pred_fallthru
        _
      // Predicated region
      $region17: #{_lambda_.4} parent=11 // pred_check
        %p149 = pneg %p99
      $region18: #{_lambda_.4} parent=11 // pred_check_branch
        %151 = sbr.rel (%p149) target = $region20
      $region19: #{_lambda_.4} parent=11 // pred_region
        %p152 = scmp.lt.s32.totalorder %s19, 0
        %s153 = scalar_select %p152, %s19, 0
        %s154 = scalar_lea.vmem %s2, %s153
      $region20: #{_lambda_.4} parent=11 // pred_fallthru
        _
    $region12: #{_lambda_.4} parent=5 // pred_fallthru
      _
    %p155 = scmp.lt.s32.totalorder %s9, 2
    // Predicated region
    $region21: #{_lambda_.4} parent=5 // pred_check
      %p156 = pneg %p155
    $region22: #{_lambda_.4} parent=5 // pred_check_branch
      %158 = sbr.rel (%p156) target = $region24
    $region23: #{_lambda_.4} parent=5 // pred_region
      // Predicated region
      $region25: #{_lambda_.4} parent=23 // pred_check
        %p159 = pneg %p41
      $region26: #{_lambda_.4} parent=23 // pred_check_branch
        %161 = sbr.rel (%p159) target = $region28
      $region27: #{_lambda_.4} parent=23 // pred_region
        %s162 = smul.u32 4, %s16
        %p163 = scmp.lt.s32.totalorder %s162, 7
        %s164 = scalar_select %p163, %s162, 7
        %s165 = smul.addr %s164, 18
        %s166 = smul.addr %s165, 8
        %s167 = scalar_lea.vmem %s0, %s166
        %s168 = smul.u32 4, %s16
      $region28: #{_lambda_.4} parent=23 // pred_fallthru
        _
    $region24: #{_lambda_.4} parent=5 // pred_fallthru
      _
    %p169 = scmp.le.s32.totalorder 1, %s9
    %p170 = scmp.lt.s32.totalorder %s9, 3
    %p171 = pnand %p169, %p170
    %p172 = pneg %p171
    // Predicated region
    $region29: #{_lambda_.4} parent=5 // pred_check
      _
    $region30: #{_lambda_.4} parent=5 // pred_check_branch
      %174 = sbr.rel (%p171) target = $region32
    $region31: #{_lambda_.4} parent=5 // pred_region
      %s175 = ssub.s32 %s9, 1
      %s176 = smul.u32 4, %s18
      %p177 = scmp.lt.s32.totalorder %s176, 7
      %s178 = scalar_select %p177, %s176, 7
      %s179 = smul.addr %s178, 18
      %s180 = smul.addr %s179, 8
      %s181 = scalar_lea.vmem %s0, %s180
      %p182 = pneg %p47
      %p183 = pneg %p44
      %p184 = scmp.lt.s32.totalorder %s19, 0
      %s185 = scalar_select %p184, %s19, 0
      %s186 = smul.addr %s185, 8
      %s187 = scalar_lea.vmem %s1, %s186
      %p188 = pneg %p73
      %p189 = pneg %p70
      %p190 = scmp.lt.s32.totalorder %s19, 0
      %s191 = scalar_select %p190, %s19, 0
      %s192 = scalar_lea.vmem %s2, %s191
      %p193 = pneg %p99
      %p194 = pneg %p96
      %p195 = pneg %p127
      %p196 = pneg %p124
      %p197 = scmp.lt.s32.totalorder %s18, 1
      %s198 = scalar_select %p197, %s18, 1
      %p199 = scmp.lt.s32.totalorder %s19, 0
      %s200 = scalar_select %p199, %s19, 0
      %s201 = smul.addr %s198, 8
      %s202 = sadd.s32 %s200, %s201
      %s203 = smul.addr %s202, 8
      %s204 = scalar_lea.vmem %s3, %s203
      %s205 = smul.u32 4, %s18
      %p206 = scmp.lt.s32.totalorder %s205, 7
      %s207 = scalar_select %p206, %s205, 7
      %s208 = smul.addr %s207, 18
      %s209 = smul.addr %s208, 8
      %s210 = scalar_lea.vmem %s0, %s209
      %s211 = smul.u32 4, %s18
      %p212 = scmp.lt.s32.totalorder %s19, 0
      %s213 = scalar_select %p212, %s19, 0
      %s214 = smul.addr %s213, 8
      %s215 = scalar_lea.vmem %s1, %s214
      %p216 = scmp.lt.s32.totalorder %s19, 0
      %s217 = scalar_select %p216, %s19, 0
      %s218 = scalar_lea.vmem %s2, %s217
      %p219 = scmp.lt.s32.totalorder %s18, 1
      %s220 = scalar_select %p219, %s18, 1
      %p221 = scmp.lt.s32.totalorder %s19, 0
      %s222 = scalar_select %p221, %s19, 0
      %s223 = smul.addr %s220, 8
      %s224 = sadd.s32 %s222, %s223
      %s225 = smul.addr %s224, 8
      %s226 = scalar_lea.vmem %s3, %s225
      %v227 = vld [vmem:[%s218] sm:$0x1]
      %v229 = vlaneseq
      %v230 = vshrl.u32 %v229, 7
      %v231 = vsub.s32 0, %v230
      %v232 = vrot.slane %v227, %v231
      %234 = vst [vmem:[#allocation2] sm:$0xff] %v232
      %235 = vst [vmem:[#allocation2 + $0x8] sm:$0xff] %v232
      %236 = vst [vmem:[#allocation2 + $0x10] sm:$0xff] %v232
      %237 = vst [vmem:[#allocation2 + $0x18] sm:$0xff] %v232
      %238 = vst [vmem:[#allocation2 + $0x20] sm:$0xff] %v232
      %239 = vst [vmem:[#allocation2 + $0x28] sm:$0xff] %v232
      %240 = vst [vmem:[#allocation2 + $0x30] sm:$0xff] %v232
      %241 = vst [vmem:[#allocation2 + $0x38] sm:$0xff] %v232
      %v242 = vld [vmem:[%s210] sm:$0xff]
      %v243 = vld [vmem:[%s210 + $0x10] sm:$0xff]
      %v244 = vld [vmem:[%s210 + $0x20] sm:$0xff]
      %v245 = vld [vmem:[%s210 + $0x30] sm:$0xff]
      %v246 = vld [vmem:[%s210 + $0x40] sm:$0xff]
      %v247 = vld [vmem:[%s210 + $0x50] sm:$0xff]
      %v248 = vld [vmem:[%s210 + $0x60] sm:$0xff]
      %v249 = vld [vmem:[%s210 + $0x70] sm:$0xff]
      %v250 = vld [vmem:[#allocation2] sm:$0xff]
      %v251 = vld [vmem:[#allocation2 + $0x8] sm:$0xff]
      %v252 = vld [vmem:[#allocation2 + $0x10] sm:$0xff]
      %v253 = vld [vmem:[#allocation2 + $0x18] sm:$0xff]
      %v254 = vld [vmem:[#allocation2 + $0x20] sm:$0xff]
      %v255 = vld [vmem:[#allocation2 + $0x28] sm:$0xff]
      %v256 = vld [vmem:[#allocation2 + $0x30] sm:$0xff]
      %v257 = vld [vmem:[#allocation2 + $0x38] sm:$0xff]
      %v258 = vld [vmem:[%s215] sm:$0xff]
      %v259 = vld [vmem:[%s215 + $0x8] sm:$0xff]
      %v260 = vld [vmem:[%s215 + $0x10] sm:$0xff]
      %v261 = vld [vmem:[%s215 + $0x18] sm:$0xff]
      %v262 = vld [vmem:[%s215 + $0x20] sm:$0xff]
      %v263 = vld [vmem:[%s215 + $0x28] sm:$0xff]
      %v264 = vld [vmem:[%s215 + $0x30] sm:$0xff]
      %v265 = vld [vmem:[%s215 + $0x38] sm:$0xff]
      %v266 = vld [vmem:[%s215 + $0x40] sm:$0xff]
      %v267 = vld [vmem:[%s215 + $0x48] sm:$0xff]
      %v268 = vld [vmem:[%s215 + $0x50] sm:$0xff]
      %v269 = vld [vmem:[%s215 + $0x58] sm:$0xff]
      %v270 = vld [vmem:[%s215 + $0x60] sm:$0xff]
      %v271 = vld [vmem:[%s215 + $0x68] sm:$0xff]
      %v272 = vld [vmem:[%s215 + $0x70] sm:$0xff]
      %v273 = vld [vmem:[%s215 + $0x78] sm:$0xff]
      %274 = vmatprep.subr.mxu0 0.0
      %275 = vmatpush1.msra.mxu0 %v258
      %276 = vmatprep.subr.mxu0 0.0
      %277 = vmatpush1.msra.mxu0 %v259
      %278 = vmatprep.subr.mxu0 0.0
      %279 = vmatpush1.msra.mxu0 %v260
      %280 = vmatprep.subr.mxu0 0.0
      %281 = vmatpush1.msra.mxu0 %v261
      %282 = vmatprep.subr.mxu0 0.0
      %283 = vmatpush1.msra.mxu0 %v262
      %284 = vmatprep.subr.mxu0 0.0
      %285 = vmatpush1.msra.mxu0 %v263
      %286 = vmatprep.subr.mxu0 0.0
      %287 = vmatpush1.msra.mxu0 %v264
      %288 = vmatprep.subr.mxu0 0.0
      %289 = vmatpush1.msra.mxu0 %v265
      %290 = vmatprep.subr.mxu0 0.0
      %291 = vmatpush1.msra.mxu0 %v266
      %292 = vmatprep.subr.mxu0 0.0
      %293 = vmatpush1.msra.mxu0 %v267
      %294 = vmatprep.subr.mxu0 0.0
      %295 = vmatpush1.msra.mxu0 %v268
      %296 = vmatprep.subr.mxu0 0.0
      %297 = vmatpush1.msra.mxu0 %v269
      %298 = vmatprep.subr.mxu0 0.0
      %299 = vmatpush1.msra.mxu0 %v270
      %300 = vmatprep.subr.mxu0 0.0
      %301 = vmatpush1.msra.mxu0 %v271
      %302 = vmatprep.subr.mxu0 0.0
      %303 = vmatpush1.msra.mxu0 %v272
      %304 = vmatprep.subr.mxu0 0.0
      %305 = vmatpush1.msra.mxu0 %v273
      %306 = vmatprep.subr.mxu0 0.0
      %307 = vmatpush1.msra.mxu0 0.0
      %308 = vmatprep.subr.mxu0 0.0
      %309 = vmatpush1.msra.mxu0 0.0
      %310 = vmatprep.subr.mxu0 0.0
      %311 = vmatpush1.msra.mxu0 0.0
      %312 = vmatprep.subr.mxu0 0.0
      %313 = vmatpush1.msra.mxu0 0.0
      %314 = vmatprep.subr.mxu0 0.0
      %315 = vmatpush1.msra.mxu0 0.0
      %316 = vmatprep.subr.mxu0 0.0
      %317 = vmatpush1.msra.mxu0 0.0
      %318 = vmatprep.subr.mxu0 0.0
      %319 = vmatpush1.msra.mxu0 0.0
      %320 = vmatprep.subr.mxu0 0.0
      %321 = vmatpush1.msra.mxu0 0.0
      %322 = vmatprep.subr.mxu0 0.0
      %323 = vmatpush1.msra.mxu0 0.0
      %324 = vmatprep.subr.mxu0 0.0
      %325 = vmatpush1.msra.mxu0 0.0
      %326 = vmatprep.subr.mxu0 0.0
      %327 = vmatpush1.msra.mxu0 0.0
      %328 = vmatprep.subr.mxu0 0.0
      %329 = vmatpush1.msra.mxu0 0.0
      %330 = vmatprep.subr.mxu0 0.0
      %331 = vmatpush1.msra.mxu0 0.0
      %332 = vmatprep.subr.mxu0 0.0
      %333 = vmatpush1.msra.mxu0 0.0
      %334 = vmatprep.subr.mxu0 0.0
      %335 = vmatpush1.msra.mxu0 0.0
      %336 = vmatprep.subr.mxu0 0.0
      %337 = vmatpush1.msra.mxu0 0.0
      %338 = vmatprep.mubr.f32.mxu0 0.0
      %339 = vmatmul.mubr.f32.gmra.mrb[0].mxu0 %v242
      %v340 = vpop.f32.mrb[0].mxu0
      %v341 = vadd.f32 0.0, %v340
      %v342 = vpop.f32.mrb[0].mxu0
      %343 = vmatprep.mubr.f32.mxu0 0.0
      %344 = vmatmul.mubr.f32.gmra.mrb[0].mxu0 %v243
      %v345 = vpop.f32.mrb[0].mxu0
      %v346 = vadd.f32 0.0, %v345
      %v347 = vpop.f32.mrb[0].mxu0
      %348 = vmatprep.mubr.f32.mxu0 0.0
      %349 = vmatmul.mubr.f32.gmra.mrb[0].mxu0 %v244
      %v350 = vpop.f32.mrb[0].mxu0
      %v351 = vadd.f32 0.0, %v350
      %v352 = vpop.f32.mrb[0].mxu0
      %353 = vmatprep.mubr.f32.mxu0 0.0
      %354 = vmatmul.mubr.f32.gmra.mrb[0].mxu0 %v245
      %v355 = vpop.f32.mrb[0].mxu0
      %v356 = vadd.f32 0.0, %v355
      %v357 = vpop.f32.mrb[0].mxu0
      %358 = vmatprep.mubr.f32.mxu0 0.0
      %359 = vmatmul.mubr.f32.gmra.mrb[0].mxu0 %v246
      %v360 = vpop.f32.mrb[0].mxu0
      %v361 = vadd.f32 0.0, %v360
      %v362 = vpop.f32.mrb[0].mxu0
      %363 = vmatprep.mubr.f32.mxu0 0.0
      %364 = vmatmul.mubr.f32.gmra.mrb[0].mxu0 %v247
      %v365 = vpop.f32.mrb[0].mxu0
      %v366 = vadd.f32 0.0, %v365
      %v367 = vpop.f32.mrb[0].mxu0
      %368 = vmatprep.mubr.f32.mxu0 0.0
      %369 = vmatmul.mubr.f32.gmra.mrb[0].mxu0 %v248
      %v370 = vpop.f32.mrb[0].mxu0
      %v371 = vadd.f32 0.0, %v370
      %v372 = vpop.f32.mrb[0].mxu0
      %373 = vmatprep.mubr.f32.mxu0 0.0
      %374 = vmatmul.mubr.f32.gmra.mrb[0].mxu0 %v249
      %v375 = vpop.f32.mrb[0].mxu0
      %v376 = vadd.f32 0.0, %v375
      %v377 = vpop.f32.mrb[0].mxu0
      %378 = vdwg.mxu0
      %v379 = vadd.f32 %v250, %v341
      %v380 = vadd.f32 %v251, %v346
      %v381 = vadd.f32 %v252, %v351
      %v382 = vadd.f32 %v253, %v356
      %v383 = vadd.f32 %v254, %v361
      %v384 = vadd.f32 %v255, %v366
      %v385 = vadd.f32 %v256, %v371
      %v386 = vadd.f32 %v257, %v376
      %387 = vst [vmem:[#allocation2] sm:$0xff] %v379
      %388 = vst [vmem:[#allocation2 + $0x8] sm:$0xff] %v380
      %389 = vst [vmem:[#allocation2 + $0x10] sm:$0xff] %v381
      %390 = vst [vmem:[#allocation2 + $0x18] sm:$0xff] %v382
      %391 = vst [vmem:[#allocation2 + $0x20] sm:$0xff] %v383
      %392 = vst [vmem:[#allocation2 + $0x28] sm:$0xff] %v384
      %393 = vst [vmem:[#allocation2 + $0x30] sm:$0xff] %v385
      %394 = vst [vmem:[#allocation2 + $0x38] sm:$0xff] %v386
      %s395 = scalar_lea.vmem %s210, 144
      %v396 = vld [vmem:[%s395] sm:$0xff]
      %v397 = vld [vmem:[%s395 + $0x10] sm:$0xff]
      %v398 = vld [vmem:[%s395 + $0x20] sm:$0xff]
      %v399 = vld [vmem:[%s395 + $0x30] sm:$0xff]
      %v400 = vld [vmem:[%s395 + $0x40] sm:$0xff]
      %v401 = vld [vmem:[%s395 + $0x50] sm:$0xff]
      %v402 = vld [vmem:[%s395 + $0x60] sm:$0xff]
      %v403 = vld [vmem:[%s395 + $0x70] sm:$0xff]
      %v404 = vld [vmem:[#allocation2] sm:$0xff]
      %v405 = vld [vmem:[#allocation2 + $0x8] sm:$0xff]
      %v406 = vld [vmem:[#allocation2 + $0x10] sm:$0xff]
      %v407 = vld [vmem:[#allocation2 + $0x18] sm:$0xff]
      %v408 = vld [vmem:[#allocation2 + $0x20] sm:$0xff]
      %v409 = vld [vmem:[#allocation2 + $0x28] sm:$0xff]
      %v410 = vld [vmem:[#allocation2 + $0x30] sm:$0xff]
      %v411 = vld [vmem:[#allocation2 + $0x38] sm:$0xff]
      %s412 = scalar_lea.vmem %s215, 128
      %v413 = vld [vmem:[%s412] sm:$0xff]
      %v414 = vld [vmem:[%s412 + $0x8] sm:$0xff]
      %v415 = vld [vmem:[%s412 + $0x10] sm:$0xff]
      %v416 = vld [vmem:[%s412 + $0x18] sm:$0xff]
      %v417 = vld [vmem:[%s412 + $0x20] sm:$0xff]
      %v418 = vld [vmem:[%s412 + $0x28] sm:$0xff]
      %v419 = vld [vmem:[%s412 + $0x30] sm:$0xff]
      %v420 = vld [vmem:[%s412 + $0x38] sm:$0xff]
      %v421 = vld [vmem:[%s412 + $0x40] sm:$0xff]
      %v422 = vld [vmem:[%s412 + $0x48] sm:$0xff]
      %v423 = vld [vmem:[%s412 + $0x50] sm:$0xff]
      %v424 = vld [vmem:[%s412 + $0x58] sm:$0xff]
      %v425 = vld [vmem:[%s412 + $0x60] sm:$0xff]
      %v426 = vld [vmem:[%s412 + $0x68] sm:$0xff]
      %v427 = vld [vmem:[%s412 + $0x70] sm:$0xff]
      %v428 = vld [vmem:[%s412 + $0x78] sm:$0xff]
      %429 = vmatprep.subr.mxu0 0.0
      %430 = vmatpush1.msra.mxu0 %v413
      %431 = vmatprep.subr.mxu0 0.0
      %432 = vmatpush1.msra.mxu0 %v414
      %433 = vmatprep.subr.mxu0 0.0
      %434 = vmatpush1.msra.mxu0 %v415
      %435 = vmatprep.subr.mxu0 0.0
      %436 = vmatpush1.msra.mxu0 %v416
      %437 = vmatprep.subr.mxu0 0.0
      %438 = vmatpush1.msra.mxu0 %v417
      %439 = vmatprep.subr.mxu0 0.0
      %440 = vmatpush1.msra.mxu0 %v418
      %441 = vmatprep.subr.mxu0 0.0
      %442 = vmatpush1.msra.mxu0 %v419
      %443 = vmatprep.subr.mxu0 0.0
      %444 = vmatpush1.msra.mxu0 %v420
      %445 = vmatprep.subr.mxu0 0.0
      %446 = vmatpush1.msra.mxu0 %v421
      %447 = vmatprep.subr.mxu0 0.0
      %448 = vmatpush1.msra.mxu0 %v422
      %449 = vmatprep.subr.mxu0 0.0
      %450 = vmatpush1.msra.mxu0 %v423
      %451 = vmatprep.subr.mxu0 0.0
      %452 = vmatpush1.msra.mxu0 %v424
      %453 = vmatprep.subr.mxu0 0.0
      %454 = vmatpush1.msra.mxu0 %v425
      %455 = vmatprep.subr.mxu0 0.0
      %456 = vmatpush1.msra.mxu0 %v426
      %457 = vmatprep.subr.mxu0 0.0
      %458 = vmatpush1.msra.mxu0 %v427
      %459 = vmatprep.subr.mxu0 0.0
      %460 = vmatpush1.msra.mxu0 %v428
      %461 = vmatprep.subr.mxu0 0.0
      %462 = vmatpush1.msra.mxu0 0.0
      %463 = vmatprep.subr.mxu0 0.0
      %464 = vmatpush1.msra.mxu0 0.0
      %465 = vmatprep.subr.mxu0 0.0
      %466 = vmatpush1.msra.mxu0 0.0
      %467 = vmatprep.subr.mxu0 0.0
      %468 = vmatpush1.msra.mxu0 0.0
      %469 = vmatprep.subr.mxu0 0.0
      %470 = vmatpush1.msra.mxu0 0.0
      %471 = vmatprep.subr.mxu0 0.0
      %472 = vmatpush1.msra.mxu0 0.0
      %473 = vmatprep.subr.mxu0 0.0
      %474 = vmatpush1.msra.mxu0 0.0
      %475 = vmatprep.subr.mxu0 0.0
      %476 = vmatpush1.msra.mxu0 0.0
      %477 = vmatprep.subr.mxu0 0.0
      %478 = vmatpush1.msra.mxu0 0.0
      %479 = vmatprep.subr.mxu0 0.0
      %480 = vmatpush1.msra.mxu0 0.0
      %481 = vmatprep.subr.mxu0 0.0
      %482 = vmatpush1.msra.mxu0 0.0
      %483 = vmatprep.subr.mxu0 0.0
      %484 = vmatpush1.msra.mxu0 0.0
      %485 = vmatprep.subr.mxu0 0.0
      %486 = vmatpush1.msra.mxu0 0.0
      %487 = vmatprep.subr.mxu0 0.0
      %488 = vmatpush1.msra.mxu0 0.0
      %489 = vmatprep.subr.mxu0 0.0
      %490 = vmatpush1.msra.mxu0 0.0
      %491 = vmatprep.subr.mxu0 0.0
      %492 = vmatpush1.msra.mxu0 0.0
      %493 = vmatprep.mubr.f32.mxu0 0.0
      %494 = vmatmul.mubr.f32.gmra.mrb[0].mxu0 %v396
      %v495 = vpop.f32.mrb[0].mxu0
      %v496 = vadd.f32 0.0, %v495
      %v497 = vpop.f32.mrb[0].mxu0
      %498 = vmatprep.mubr.f32.mxu0 0.0
      %499 = vmatmul.mubr.f32.gmra.mrb[0].mxu0 %v397
      %v500 = vpop.f32.mrb[0].mxu0
      %v501 = vadd.f32 0.0, %v500
      %v502 = vpop.f32.mrb[0].mxu0
      %503 = vmatprep.mubr.f32.mxu0 0.0
      %504 = vmatmul.mubr.f32.gmra.mrb[0].mxu0 %v398
      %v505 = vpop.f32.mrb[0].mxu0
      %v506 = vadd.f32 0.0, %v505
      %v507 = vpop.f32.mrb[0].mxu0
      %508 = vmatprep.mubr.f32.mxu0 0.0
      %509 = vmatmul.mubr.f32.gmra.mrb[0].mxu0 %v399
      %v510 = vpop.f32.mrb[0].mxu0
      %v511 = vadd.f32 0.0, %v510
      %v512 = vpop.f32.mrb[0].mxu0
      %513 = vmatprep.mubr.f32.mxu0 0.0
      %514 = vmatmul.mubr.f32.gmra.mrb[0].mxu0 %v400
      %v515 = vpop.f32.mrb[0].mxu0
      %v516 = vadd.f32 0.0, %v515
      %v517 = vpop.f32.mrb[0].mxu0
      %518 = vmatprep.mubr.f32.mxu0 0.0
      %519 = vmatmul.mubr.f32.gmra.mrb[0].mxu0 %v401
      %v520 = vpop.f32.mrb[0].mxu0
      %v521 = vadd.f32 0.0, %v520
      %v522 = vpop.f32.mrb[0].mxu0
      %523 = vmatprep.mubr.f32.mxu0 0.0
      %524 = vmatmul.mubr.f32.gmra.mrb[0].mxu0 %v402
      %v525 = vpop.f32.mrb[0].mxu0
      %v526 = vadd.f32 0.0, %v525
      %v527 = vpop.f32.mrb[0].mxu0
      %528 = vmatprep.mubr.f32.mxu0 0.0
      %529 = vmatmul.mubr.f32.gmra.mrb[0].mxu0 %v403
      %v530 = vpop.f32.mrb[0].mxu0
      %v531 = vadd.f32 0.0, %v530
      %v532 = vpop.f32.mrb[0].mxu0
      %533 = vdwg.mxu0
      %v534 = vadd.f32 %v404, %v496
      %v535 = vadd.f32 %v405, %v501
      %v536 = vadd.f32 %v406, %v506
      %v537 = vadd.f32 %v407, %v511
      %v538 = vadd.f32 %v408, %v516
      %v539 = vadd.f32 %v409, %v521
      %v540 = vadd.f32 %v410, %v526
      %v541 = vadd.f32 %v411, %v531
      %542 = vst [vmem:[#allocation2] sm:$0xff] %v534
      %543 = vst [vmem:[#allocation2 + $0x8] sm:$0xff] %v535
      %544 = vst [vmem:[#allocation2 + $0x10] sm:$0xff] %v536
      %545 = vst [vmem:[#allocation2 + $0x18] sm:$0xff] %v537
      %546 = vst [vmem:[#allocation2 + $0x20] sm:$0xff] %v538
      %547 = vst [vmem:[#allocation2 + $0x28] sm:$0xff] %v539
      %548 = vst [vmem:[#allocation2 + $0x30] sm:$0xff] %v540
      %549 = vst [vmem:[#allocation2 + $0x38] sm:$0xff] %v541
      %v550 = vld [vmem:[%s210 + $0x1] sm:$0xff]
      %v551 = vld [vmem:[%s210 + $0x11] sm:$0xff]
      %v552 = vld [vmem:[%s210 + $0x21] sm:$0xff]
      %v553 = vld [vmem:[%s210 + $0x31] sm:$0xff]
      %v554 = vld [vmem:[%s210 + $0x41] sm:$0xff]
      %v555 = vld [vmem:[%s210 + $0x51] sm:$0xff]
      %v556 = vld [vmem:[%s210 + $0x61] sm:$0xff]
      %v557 = vld [vmem:[%s210 + $0x71] sm:$0xff]
      %v558 = vld [vmem:[#allocation2] sm:$0xff]
      %v559 = vld [vmem:[#allocation2 + $0x8] sm:$0xff]
      %v560 = vld [vmem:[#allocation2 + $0x10] sm:$0xff]
      %v561 = vld [vmem:[#allocation2 + $0x18] sm:$0xff]
      %v562 = vld [vmem:[#allocation2 + $0x20] sm:$0xff]
      %v563 = vld [vmem:[#allocation2 + $0x28] sm:$0xff]
      %v564 = vld [vmem:[#allocation2 + $0x30] sm:$0xff]
      %v565 = vld [vmem:[#allocation2 + $0x38] sm:$0xff]
      %s566 = scalar_lea.vmem %s215, 256
      %v567 = vld [vmem:[%s566] sm:$0xff]
      %v568 = vld [vmem:[%s566 + $0x8] sm:$0xff]
      %v569 = vld [vmem:[%s566 + $0x10] sm:$0xff]
      %v570 = vld [vmem:[%s566 + $0x18] sm:$0xff]
      %v571 = vld [vmem:[%s566 + $0x20] sm:$0xff]
      %v572 = vld [vmem:[%s566 + $0x28] sm:$0xff]
      %v573 = vld [vmem:[%s566 + $0x30] sm:$0xff]
      %v574 = vld [vmem:[%s566 + $0x38] sm:$0xff]
      %v575 = vld [vmem:[%s566 + $0x40] sm:$0xff]
      %v576 = vld [vmem:[%s566 + $0x48] sm:$0xff]
      %v577 = vld [vmem:[%s566 + $0x50] sm:$0xff]
      %v578 = vld [vmem:[%s566 + $0x58] sm:$0xff]
      %v579 = vld [vmem:[%s566 + $0x60] sm:$0xff]
      %v580 = vld [vmem:[%s566 + $0x68] sm:$0xff]
      %v581 = vld [vmem:[%s566 + $0x70] sm:$0xff]
      %v582 = vld [vmem:[%s566 + $0x78] sm:$0xff]
      %583 = vmatprep.subr.mxu0 0.0
      %584 = vmatpush1.msra.mxu0 %v567
      %585 = vmatprep.subr.mxu0 0.0
      %586 = vmatpush1.msra.mxu0 %v568
      %587 = vmatprep.subr.mxu0 0.0
      %588 = vmatpush1.msra.mxu0 %v569
      %589 = vmatprep.subr.mxu0 0.0
      %590 = vmatpush1.msra.mxu0 %v570
      %591 = vmatprep.subr.mxu0 0.0
      %592 = vmatpush1.msra.mxu0 %v571
      %593 = vmatprep.subr.mxu0 0.0
      %594 = vmatpush1.msra.mxu0 %v572
      %595 = vmatprep.subr.mxu0 0.0
      %596 = vmatpush1.msra.mxu0 %v573
      %597 = vmatprep.subr.mxu0 0.0
      %598 = vmatpush1.msra.mxu0 %v574
      %599 = vmatprep.subr.mxu0 0.0
      %600 = vmatpush1.msra.mxu0 %v575
      %601 = vmatprep.subr.mxu0 0.0
      %602 = vmatpush1.msra.mxu0 %v576
      %603 = vmatprep.subr.mxu0 0.0
      %604 = vmatpush1.msra.mxu0 %v577
      %605 = vmatprep.subr.mxu0 0.0
      %606 = vmatpush1.msra.mxu0 %v578
      %607 = vmatprep.subr.mxu0 0.0
      %608 = vmatpush1.msra.mxu0 %v579
      %609 = vmatprep.subr.mxu0 0.0
      %610 = vmatpush1.msra.mxu0 %v580
      %611 = vmatprep.subr.mxu0 0.0
      %612 = vmatpush1.msra.mxu0 %v581
      %613 = vmatprep.subr.mxu0 0.0
      %614 = vmatpush1.msra.mxu0 %v582
      %615 = vmatprep.subr.mxu0 0.0
      %616 = vmatpush1.msra.mxu0 0.0
      %617 = vmatprep.subr.mxu0 0.0
      %618 = vmatpush1.msra.mxu0 0.0
      %619 = vmatprep.subr.mxu0 0.0
      %620 = vmatpush1.msra.mxu0 0.0
      %621 = vmatprep.subr.mxu0 0.0
      %622 = vmatpush1.msra.mxu0 0.0
      %623 = vmatprep.subr.mxu0 0.0
      %624 = vmatpush1.msra.mxu0 0.0
      %625 = vmatprep.subr.mxu0 0.0
      %626 = vmatpush1.msra.mxu0 0.0
      %627 = vmatprep.subr.mxu0 0.0
      %628 = vmatpush1.msra.mxu0 0.0
      %629 = vmatprep.subr.mxu0 0.0
      %630 = vmatpush1.msra.mxu0 0.0
      %631 = vmatprep.subr.mxu0 0.0
      %632 = vmatpush1.msra.mxu0 0.0
      %633 = vmatprep.subr.mxu0 0.0
      %634 = vmatpush1.msra.mxu0 0.0
      %635 = vmatprep.subr.mxu0 0.0
      %636 = vmatpush1.msra.mxu0 0.0
      %637 = vmatprep.subr.mxu0 0.0
      %638 = vmatpush1.msra.mxu0 0.0
      %639 = vmatprep.subr.mxu0 0.0
      %640 = vmatpush1.msra.mxu0 0.0
      %641 = vmatprep.subr.mxu0 0.0
      %642 = vmatpush1.msra.mxu0 0.0
      %643 = vmatprep.subr.mxu0 0.0
      %644 = vmatpush1.msra.mxu0 0.0
      %645 = vmatprep.subr.mxu0 0.0
      %646 = vmatpush1.msra.mxu0 0.0
      %647 = vmatprep.mubr.f32.mxu0 0.0
      %648 = vmatmul.mubr.f32.gmra.mrb[0].mxu0 %v550
      %v649 = vpop.f32.mrb[0].mxu0
      %v650 = vadd.f32 0.0, %v649
      %v651 = vpop.f32.mrb[0].mxu0
      %652 = vmatprep.mubr.f32.mxu0 0.0
      %653 = vmatmul.mubr.f32.gmra.mrb[0].mxu0 %v551
      %v654 = vpop.f32.mrb[0].mxu0
      %v655 = vadd.f32 0.0, %v654
      %v656 = vpop.f32.mrb[0].mxu0
      %657 = vmatprep.mubr.f32.mxu0 0.0
      %658 = vmatmul.mubr.f32.gmra.mrb[0].mxu0 %v552
      %v659 = vpop.f32.mrb[0].mxu0
      %v660 = vadd.f32 0.0, %v659
      %v661 = vpop.f32.mrb[0].mxu0
      %662 = vmatprep.mubr.f32.mxu0 0.0
      %663 = vmatmul.mubr.f32.gmra.mrb[0].mxu0 %v553
      %v664 = vpop.f32.mrb[0].mxu0
      %v665 = vadd.f32 0.0, %v664
      %v666 = vpop.f32.mrb[0].mxu0
      %667 = vmatprep.mubr.f32.mxu0 0.0
      %668 = vmatmul.mubr.f32.gmra.mrb[0].mxu0 %v554
      %v669 = vpop.f32.mrb[0].mxu0
      %v670 = vadd.f32 0.0, %v669
      %v671 = vpop.f32.mrb[0].mxu0
      %672 = vmatprep.mubr.f32.mxu0 0.0
      %673 = vmatmul.mubr.f32.gmra.mrb[0].mxu0 %v555
      %v674 = vpop.f32.mrb[0].mxu0
      %v675 = vadd.f32 0.0, %v674
      %v676 = vpop.f32.mrb[0].mxu0
      %677 = vmatprep.mubr.f32.mxu0 0.0
      %678 = vmatmul.mubr.f32.gmra.mrb[0].mxu0 %v556
      %v679 = vpop.f32.mrb[0].mxu0
      %v680 = vadd.f32 0.0, %v679
      %v681 = vpop.f32.mrb[0].mxu0
      %682 = vmatprep.mubr.f32.mxu0 0.0
      %683 = vmatmul.mubr.f32.gmra.mrb[0].mxu0 %v557
      %v684 = vpop.f32.mrb[0].mxu0
      %v685 = vadd.f32 0.0, %v684
      %v686 = vpop.f32.mrb[0].mxu0
      %687 = vdwg.mxu0
      %v688 = vadd.f32 %v558, %v650
      %v689 = vadd.f32 %v559, %v655
      %v690 = vadd.f32 %v560, %v660
      %v691 = vadd.f32 %v561, %v665
      %v692 = vadd.f32 %v562, %v670
      %v693 = vadd.f32 %v563, %v675
      %v694 = vadd.f32 %v564, %v680
      %v695 = vadd.f32 %v565, %v685
      %696 = vst [vmem:[#allocation2] sm:$0xff] %v688
      %697 = vst [vmem:[#allocation2 + $0x8] sm:$0xff] %v689
      %698 = vst [vmem:[#allocation2 + $0x10] sm:$0xff] %v690
      %699 = vst [vmem:[#allocation2 + $0x18] sm:$0xff] %v691
      %700 = vst [vmem:[#allocation2 + $0x20] sm:$0xff] %v692
      %701 = vst [vmem:[#allocation2 + $0x28] sm:$0xff] %v693
      %702 = vst [vmem:[#allocation2 + $0x30] sm:$0xff] %v694
      %703 = vst [vmem:[#allocation2 + $0x38] sm:$0xff] %v695
      %s704 = scalar_lea.vmem %s210, 288
      %v705 = vld [vmem:[%s704] sm:$0xff]
      %v706 = vld [vmem:[%s704 + $0x10] sm:$0xff]
      %v707 = vld [vmem:[%s704 + $0x20] sm:$0xff]
      %v708 = vld [vmem:[%s704 + $0x30] sm:$0xff]
      %v709 = vld [vmem:[%s704 + $0x40] sm:$0xff]
      %v710 = vld [vmem:[%s704 + $0x50] sm:$0xff]
      %v711 = vld [vmem:[%s704 + $0x60] sm:$0xff]
      %v712 = vld [vmem:[%s704 + $0x70] sm:$0xff]
      %v713 = vld [vmem:[#allocation2] sm:$0xff]
      %v714 = vld [vmem:[#allocation2 + $0x8] sm:$0xff]
      %v715 = vld [vmem:[#allocation2 + $0x10] sm:$0xff]
      %v716 = vld [vmem:[#allocation2 + $0x18] sm:$0xff]
      %v717 = vld [vmem:[#allocation2 + $0x20] sm:$0xff]
      %v718 = vld [vmem:[#allocation2 + $0x28] sm:$0xff]
      %v719 = vld [vmem:[#allocation2 + $0x30] sm:$0xff]
      %v720 = vld [vmem:[#allocation2 + $0x38] sm:$0xff]
      %s721 = scalar_lea.vmem %s215, 384
      %v722 = vld [vmem:[%s721] sm:$0xff]
      %v723 = vld [vmem:[%s721 + $0x8] sm:$0xff]
      %v724 = vld [vmem:[%s721 + $0x10] sm:$0xff]
      %v725 = vld [vmem:[%s721 + $0x18] sm:$0xff]
      %v726 = vld [vmem:[%s721 + $0x20] sm:$0xff]
      %v727 = vld [vmem:[%s721 + $0x28] sm:$0xff]
      %v728 = vld [vmem:[%s721 + $0x30] sm:$0xff]
      %v729 = vld [vmem:[%s721 + $0x38] sm:$0xff]
      %v730 = vld [vmem:[%s721 + $0x40] sm:$0xff]
      %v731 = vld [vmem:[%s721 + $0x48] sm:$0xff]
      %v732 = vld [vmem:[%s721 + $0x50] sm:$0xff]
      %v733 = vld [vmem:[%s721 + $0x58] sm:$0xff]
      %v734 = vld [vmem:[%s721 + $0x60] sm:$0xff]
      %v735 = vld [vmem:[%s721 + $0x68] sm:$0xff]
      %v736 = vld [vmem:[%s721 + $0x70] sm:$0xff]
      %v737 = vld [vmem:[%s721 + $0x78] sm:$0xff]
      %738 = vmatprep.subr.mxu0 0.0
      %739 = vmatpush1.msra.mxu0 %v722
      %740 = vmatprep.subr.mxu0 0.0
      %741 = vmatpush1.msra.mxu0 %v723
      %742 = vmatprep.subr.mxu0 0.0
      %743 = vmatpush1.msra.mxu0 %v724
      %744 = vmatprep.subr.mxu0 0.0
      %745 = vmatpush1.msra.mxu0 %v725
      %746 = vmatprep.subr.mxu0 0.0
      %747 = vmatpush1.msra.mxu0 %v726
      %748 = vmatprep.subr.mxu0 0.0
      %749 = vmatpush1.msra.mxu0 %v727
      %750 = vmatprep.subr.mxu0 0.0
      %751 = vmatpush1.msra.mxu0 %v728
      %752 = vmatprep.subr.mxu0 0.0
      %753 = vmatpush1.msra.mxu0 %v729
      %754 = vmatprep.subr.mxu0 0.0
      %755 = vmatpush1.msra.mxu0 %v730
      %756 = vmatprep.subr.mxu0 0.0
      %757 = vmatpush1.msra.mxu0 %v731
      %758 = vmatprep.subr.mxu0 0.0
      %759 = vmatpush1.msra.mxu0 %v732
      %760 = vmatprep.subr.mxu0 0.0
      %761 = vmatpush1.msra.mxu0 %v733
      %762 = vmatprep.subr.mxu0 0.0
      %763 = vmatpush1.msra.mxu0 %v734
      %764 = vmatprep.subr.mxu0 0.0
      %765 = vmatpush1.msra.mxu0 %v735
      %766 = vmatprep.subr.mxu0 0.0
      %767 = vmatpush1.msra.mxu0 %v736
      %768 = vmatprep.subr.mxu0 0.0
      %769 = vmatpush1.msra.mxu0 %v737
      %770 = vmatprep.subr.mxu0 0.0
      %771 = vmatpush1.msra.mxu0 0.0
      %772 = vmatprep.subr.mxu0 0.0
      %773 = vmatpush1.msra.mxu0 0.0
      %774 = vmatprep.subr.mxu0 0.0
      %775 = vmatpush1.msra.mxu0 0.0
      %776 = vmatprep.subr.mxu0 0.0
      %777 = vmatpush1.msra.mxu0 0.0
      %778 = vmatprep.subr.mxu0 0.0
      %779 = vmatpush1.msra.mxu0 0.0
      %780 = vmatprep.subr.mxu0 0.0
      %781 = vmatpush1.msra.mxu0 0.0
      %782 = vmatprep.subr.mxu0 0.0
      %783 = vmatpush1.msra.mxu0 0.0
      %784 = vmatprep.subr.mxu0 0.0
      %785 = vmatpush1.msra.mxu0 0.0
      %786 = vmatprep.subr.mxu0 0.0
      %787 = vmatpush1.msra.mxu0 0.0
      %788 = vmatprep.subr.mxu0 0.0
      %789 = vmatpush1.msra.mxu0 0.0
      %790 = vmatprep.subr.mxu0 0.0
      %791 = vmatpush1.msra.mxu0 0.0
      %792 = vmatprep.subr.mxu0 0.0
      %793 = vmatpush1.msra.mxu0 0.0
      %794 = vmatprep.subr.mxu0 0.0
      %795 = vmatpush1.msra.mxu0 0.0
      %796 = vmatprep.subr.mxu0 0.0
      %797 = vmatpush1.msra.mxu0 0.0
      %798 = vmatprep.subr.mxu0 0.0
      %799 = vmatpush1.msra.mxu0 0.0
      %800 = vmatprep.subr.mxu0 0.0
      %801 = vmatpush1.msra.mxu0 0.0
      %802 = vmatprep.mubr.f32.mxu0 0.0
      %803 = vmatmul.mubr.f32.gmra.mrb[0].mxu0 %v705
      %v804 = vpop.f32.mrb[0].mxu0
      %v805 = vadd.f32 0.0, %v804
      %v806 = vpop.f32.mrb[0].mxu0
      %807 = vmatprep.mubr.f32.mxu0 0.0
      %808 = vmatmul.mubr.f32.gmra.mrb[0].mxu0 %v706
      %v809 = vpop.f32.mrb[0].mxu0
      %v810 = vadd.f32 0.0, %v809
      %v811 = vpop.f32.mrb[0].mxu0
      %812 = vmatprep.mubr.f32.mxu0 0.0
      %813 = vmatmul.mubr.f32.gmra.mrb[0].mxu0 %v707
      %v814 = vpop.f32.mrb[0].mxu0
      %v815 = vadd.f32 0.0, %v814
      %v816 = vpop.f32.mrb[0].mxu0
      %817 = vmatprep.mubr.f32.mxu0 0.0
      %818 = vmatmul.mubr.f32.gmra.mrb[0].mxu0 %v708
      %v819 = vpop.f32.mrb[0].mxu0
      %v820 = vadd.f32 0.0, %v819
      %v821 = vpop.f32.mrb[0].mxu0
      %822 = vmatprep.mubr.f32.mxu0 0.0
      %823 = vmatmul.mubr.f32.gmra.mrb[0].mxu0 %v709
      %v824 = vpop.f32.mrb[0].mxu0
      %v825 = vadd.f32 0.0, %v824
      %v826 = vpop.f32.mrb[0].mxu0
      %827 = vmatprep.mubr.f32.mxu0 0.0
      %828 = vmatmul.mubr.f32.gmra.mrb[0].mxu0 %v710
      %v829 = vpop.f32.mrb[0].mxu0
      %v830 = vadd.f32 0.0, %v829
      %v831 = vpop.f32.mrb[0].mxu0
      %832 = vmatprep.mubr.f32.mxu0 0.0
      %833 = vmatmul.mubr.f32.gmra.mrb[0].mxu0 %v711
      %v834 = vpop.f32.mrb[0].mxu0
      %v835 = vadd.f32 0.0, %v834
      %v836 = vpop.f32.mrb[0].mxu0
      %837 = vmatprep.mubr.f32.mxu0 0.0
      %838 = vmatmul.mubr.f32.gmra.mrb[0].mxu0 %v712
      %v839 = vpop.f32.mrb[0].mxu0
      %v840 = vadd.f32 0.0, %v839
      %v841 = vpop.f32.mrb[0].mxu0
      %842 = vdwg.mxu0
      %v843 = vadd.f32 %v713, %v805
      %v844 = vadd.f32 %v714, %v810
      %v845 = vadd.f32 %v715, %v815
      %v846 = vadd.f32 %v716, %v820
      %v847 = vadd.f32 %v717, %v825
      %v848 = vadd.f32 %v718, %v830
      %v849 = vadd.f32 %v719, %v835
      %v850 = vadd.f32 %v720, %v840
      %851 = vst [vmem:[#allocation2] sm:$0xff] %v843
      %852 = vst [vmem:[#allocation2 + $0x8] sm:$0xff] %v844
      %853 = vst [vmem:[#allocation2 + $0x10] sm:$0xff] %v845
      %854 = vst [vmem:[#allocation2 + $0x18] sm:$0xff] %v846
      %855 = vst [vmem:[#allocation2 + $0x20] sm:$0xff] %v847
      %856 = vst [vmem:[#allocation2 + $0x28] sm:$0xff] %v848
      %857 = vst [vmem:[#allocation2 + $0x30] sm:$0xff] %v849
      %858 = vst [vmem:[#allocation2 + $0x38] sm:$0xff] %v850
      %s859 = scalar_lea.vmem %s210, 432
      %v860 = vld [vmem:[%s859] sm:$0xff]
      %v861 = vld [vmem:[%s859 + $0x10] sm:$0xff]
      %v862 = vld [vmem:[%s859 + $0x20] sm:$0xff]
      %v863 = vld [vmem:[%s859 + $0x30] sm:$0xff]
      %v864 = vld [vmem:[%s859 + $0x40] sm:$0xff]
      %v865 = vld [vmem:[%s859 + $0x50] sm:$0xff]
      %v866 = vld [vmem:[%s859 + $0x60] sm:$0xff]
      %v867 = vld [vmem:[%s859 + $0x70] sm:$0xff]
      %v868 = vld [vmem:[#allocation2] sm:$0xff]
      %v869 = vld [vmem:[#allocation2 + $0x8] sm:$0xff]
      %v870 = vld [vmem:[#allocation2 + $0x10] sm:$0xff]
      %v871 = vld [vmem:[#allocation2 + $0x18] sm:$0xff]
      %v872 = vld [vmem:[#allocation2 + $0x20] sm:$0xff]
      %v873 = vld [vmem:[#allocation2 + $0x28] sm:$0xff]
      %v874 = vld [vmem:[#allocation2 + $0x30] sm:$0xff]
      %v875 = vld [vmem:[#allocation2 + $0x38] sm:$0xff]
      %s876 = scalar_lea.vmem %s215, 512
      %v877 = vld [vmem:[%s876] sm:$0xff]
      %v878 = vld [vmem:[%s876 + $0x8] sm:$0xff]
      %v879 = vld [vmem:[%s876 + $0x10] sm:$0xff]
      %v880 = vld [vmem:[%s876 + $0x18] sm:$0xff]
      %v881 = vld [vmem:[%s876 + $0x20] sm:$0xff]
      %v882 = vld [vmem:[%s876 + $0x28] sm:$0xff]
      %v883 = vld [vmem:[%s876 + $0x30] sm:$0xff]
      %v884 = vld [vmem:[%s876 + $0x38] sm:$0xff]
      %v885 = vld [vmem:[%s876 + $0x40] sm:$0xff]
      %v886 = vld [vmem:[%s876 + $0x48] sm:$0xff]
      %v887 = vld [vmem:[%s876 + $0x50] sm:$0xff]
      %v888 = vld [vmem:[%s876 + $0x58] sm:$0xff]
      %v889 = vld [vmem:[%s876 + $0x60] sm:$0xff]
      %v890 = vld [vmem:[%s876 + $0x68] sm:$0xff]
      %v891 = vld [vmem:[%s876 + $0x70] sm:$0xff]
      %v892 = vld [vmem:[%s876 + $0x78] sm:$0xff]
      %893 = vmatprep.subr.mxu0 0.0
      %894 = vmatpush1.msra.mxu0 %v877
      %895 = vmatprep.subr.mxu0 0.0
      %896 = vmatpush1.msra.mxu0 %v878
      %897 = vmatprep.subr.mxu0 0.0
      %898 = vmatpush1.msra.mxu0 %v879
      %899 = vmatprep.subr.mxu0 0.0
      %900 = vmatpush1.msra.mxu0 %v880
      %901 = vmatprep.subr.mxu0 0.0
      %902 = vmatpush1.msra.mxu0 %v881
      %903 = vmatprep.subr.mxu0 0.0
      %904 = vmatpush1.msra.mxu0 %v882
      %905 = vmatprep.subr.mxu0 0.0
      %906 = vmatpush1.msra.mxu0 %v883
      %907 = vmatprep.subr.mxu0 0.0
      %908 = vmatpush1.msra.mxu0 %v884
      %909 = vmatprep.subr.mxu0 0.0
      %910 = vmatpush1.msra.mxu0 %v885
      %911 = vmatprep.subr.mxu0 0.0
      %912 = vmatpush1.msra.mxu0 %v886
      %913 = vmatprep.subr.mxu0 0.0
      %914 = vmatpush1.msra.mxu0 %v887
      %915 = vmatprep.subr.mxu0 0.0
      %916 = vmatpush1.msra.mxu0 %v888
      %917 = vmatprep.subr.mxu0 0.0
      %918 = vmatpush1.msra.mxu0 %v889
      %919 = vmatprep.subr.mxu0 0.0
      %920 = vmatpush1.msra.mxu0 %v890
      %921 = vmatprep.subr.mxu0 0.0
      %922 = vmatpush1.msra.mxu0 %v891
      %923 = vmatprep.subr.mxu0 0.0
      %924 = vmatpush1.msra.mxu0 %v892
      %925 = vmatprep.subr.mxu0 0.0
      %926 = vmatpush1.msra.mxu0 0.0
      %927 = vmatprep.subr.mxu0 0.0
      %928 = vmatpush1.msra.mxu0 0.0
      %929 = vmatprep.subr.mxu0 0.0
      %930 = vmatpush1.msra.mxu0 0.0
      %931 = vmatprep.subr.mxu0 0.0
      %932 = vmatpush1.msra.mxu0 0.0
      %933 = vmatprep.subr.mxu0 0.0
      %934 = vmatpush1.msra.mxu0 0.0
      %935 = vmatprep.subr.mxu0 0.0
      %936 = vmatpush1.msra.mxu0 0.0
      %937 = vmatprep.subr.mxu0 0.0
      %938 = vmatpush1.msra.mxu0 0.0
      %939 = vmatprep.subr.mxu0 0.0
      %940 = vmatpush1.msra.mxu0 0.0
      %941 = vmatprep.subr.mxu0 0.0
      %942 = vmatpush1.msra.mxu0 0.0
      %943 = vmatprep.subr.mxu0 0.0
      %944 = vmatpush1.msra.mxu0 0.0
      %945 = vmatprep.subr.mxu0 0.0
      %946 = vmatpush1.msra.mxu0 0.0
      %947 = vmatprep.subr.mxu0 0.0
      %948 = vmatpush1.msra.mxu0 0.0
      %949 = vmatprep.subr.mxu0 0.0
      %950 = vmatpush1.msra.mxu0 0.0
      %951 = vmatprep.subr.mxu0 0.0
      %952 = vmatpush1.msra.mxu0 0.0
      %953 = vmatprep.subr.mxu0 0.0
      %954 = vmatpush1.msra.mxu0 0.0
      %955 = vmatprep.subr.mxu0 0.0
      %956 = vmatpush1.msra.mxu0 0.0
      %957 = vmatprep.mubr.f32.mxu0 0.0
      %958 = vmatmul.mubr.f32.gmra.mrb[0].mxu0 %v860
      %v959 = vpop.f32.mrb[0].mxu0
      %v960 = vadd.f32 0.0, %v959
      %v961 = vpop.f32.mrb[0].mxu0
      %962 = vmatprep.mubr.f32.mxu0 0.0
      %963 = vmatmul.mubr.f32.gmra.mrb[0].mxu0 %v861
      %v964 = vpop.f32.mrb[0].mxu0
      %v965 = vadd.f32 0.0, %v964
      %v966 = vpop.f32.mrb[0].mxu0
      %967 = vmatprep.mubr.f32.mxu0 0.0
      %968 = vmatmul.mubr.f32.gmra.mrb[0].mxu0 %v862
      %v969 = vpop.f32.mrb[0].mxu0
      %v970 = vadd.f32 0.0, %v969
      %v971 = vpop.f32.mrb[0].mxu0
      %972 = vmatprep.mubr.f32.mxu0 0.0
      %973 = vmatmul.mubr.f32.gmra.mrb[0].mxu0 %v863
      %v974 = vpop.f32.mrb[0].mxu0
      %v975 = vadd.f32 0.0, %v974
      %v976 = vpop.f32.mrb[0].mxu0
      %977 = vmatprep.mubr.f32.mxu0 0.0
      %978 = vmatmul.mubr.f32.gmra.mrb[0].mxu0 %v864
      %v979 = vpop.f32.mrb[0].mxu0
      %v980 = vadd.f32 0.0, %v979
      %v981 = vpop.f32.mrb[0].mxu0
      %982 = vmatprep.mubr.f32.mxu0 0.0
      %983 = vmatmul.mubr.f32.gmra.mrb[0].mxu0 %v865
      %v984 = vpop.f32.mrb[0].mxu0
      %v985 = vadd.f32 0.0, %v984
      %v986 = vpop.f32.mrb[0].mxu0
      %987 = vmatprep.mubr.f32.mxu0 0.0
      %988 = vmatmul.mubr.f32.gmra.mrb[0].mxu0 %v866
      %v989 = vpop.f32.mrb[0].mxu0
      %v990 = vadd.f32 0.0, %v989
      %v991 = vpop.f32.mrb[0].mxu0
      %992 = vmatprep.mubr.f32.mxu0 0.0
      %993 = vmatmul.mubr.f32.gmra.mrb[0].mxu0 %v867
      %v994 = vpop.f32.mrb[0].mxu0
      %v995 = vadd.f32 0.0, %v994
      %v996 = vpop.f32.mrb[0].mxu0
      %997 = vdwg.mxu0
      %v998 = vadd.f32 %v868, %v960
      %v999 = vadd.f32 %v869, %v965
      %v1000 = vadd.f32 %v870, %v970
      %v1001 = vadd.f32 %v871, %v975
      %v1002 = vadd.f32 %v872, %v980
      %v1003 = vadd.f32 %v873, %v985
      %v1004 = vadd.f32 %v874, %v990
      %v1005 = vadd.f32 %v875, %v995
      %1006 = vst [vmem:[#allocation2] sm:$0xff] %v998
      %1007 = vst [vmem:[#allocation2 + $0x8] sm:$0xff] %v999
      %1008 = vst [vmem:[#allocation2 + $0x10] sm:$0xff] %v1000
      %1009 = vst [vmem:[#allocation2 + $0x18] sm:$0xff] %v1001
      %1010 = vst [vmem:[#allocation2 + $0x20] sm:$0xff] %v1002
      %1011 = vst [vmem:[#allocation2 + $0x28] sm:$0xff] %v1003
      %1012 = vst [vmem:[#allocation2 + $0x30] sm:$0xff] %v1004
      %1013 = vst [vmem:[#allocation2 + $0x38] sm:$0xff] %v1005
      %v1014 = vld [vmem:[%s704 + $0x1] sm:$0xff]
      %v1015 = vld [vmem:[%s704 + $0x11] sm:$0xff]
      %v1016 = vld [vmem:[%s704 + $0x21] sm:$0xff]
      %v1017 = vld [vmem:[%s704 + $0x31] sm:$0xff]
      %v1018 = vld [vmem:[%s704 + $0x41] sm:$0xff]
      %v1019 = vld [vmem:[%s704 + $0x51] sm:$0xff]
      %v1020 = vld [vmem:[%s704 + $0x61] sm:$0xff]
      %v1021 = vld [vmem:[%s704 + $0x71] sm:$0xff]
      %v1022 = vld [vmem:[#allocation2] sm:$0xff]
      %v1023 = vld [vmem:[#allocation2 + $0x8] sm:$0xff]
      %v1024 = vld [vmem:[#allocation2 + $0x10] sm:$0xff]
      %v1025 = vld [vmem:[#allocation2 + $0x18] sm:$0xff]
      %v1026 = vld [vmem:[#allocation2 + $0x20] sm:$0xff]
      %v1027 = vld [vmem:[#allocation2 + $0x28] sm:$0xff]
      %v1028 = vld [vmem:[#allocation2 + $0x30] sm:$0xff]
      %v1029 = vld [vmem:[#allocation2 + $0x38] sm:$0xff]
      %s1030 = scalar_lea.vmem %s215, 640
      %v1031 = vld [vmem:[%s1030] sm:$0xff]
      %v1032 = vld [vmem:[%s1030 + $0x8] sm:$0xff]
      %v1033 = vld [vmem:[%s1030 + $0x10] sm:$0xff]
      %v1034 = vld [vmem:[%s1030 + $0x18] sm:$0xff]
      %v1035 = vld [vmem:[%s1030 + $0x20] sm:$0xff]
      %v1036 = vld [vmem:[%s1030 + $0x28] sm:$0xff]
      %v1037 = vld [vmem:[%s1030 + $0x30] sm:$0xff]
      %v1038 = vld [vmem:[%s1030 + $0x38] sm:$0xff]
      %v1039 = vld [vmem:[%s1030 + $0x40] sm:$0xff]
      %v1040 = vld [vmem:[%s1030 + $0x48] sm:$0xff]
      %v1041 = vld [vmem:[%s1030 + $0x50] sm:$0xff]
      %v1042 = vld [vmem:[%s1030 + $0x58] sm:$0xff]
      %v1043 = vld [vmem:[%s1030 + $0x60] sm:$0xff]
      %v1044 = vld [vmem:[%s1030 + $0x68] sm:$0xff]
      %v1045 = vld [vmem:[%s1030 + $0x70] sm:$0xff]
      %v1046 = vld [vmem:[%s1030 + $0x78] sm:$0xff]
      %1047 = vmatprep.subr.mxu0 0.0
      %1048 = vmatpush1.msra.mxu0 %v1031
      %1049 = vmatprep.subr.mxu0 0.0
      %1050 = vmatpush1.msra.mxu0 %v1032
      %1051 = vmatprep.subr.mxu0 0.0
      %1052 = vmatpush1.msra.mxu0 %v1033
      %1053 = vmatprep.subr.mxu0 0.0
      %1054 = vmatpush1.msra.mxu0 %v1034
      %1055 = vmatprep.subr.mxu0 0.0
      %1056 = vmatpush1.msra.mxu0 %v1035
      %1057 = vmatprep.subr.mxu0 0.0
      %1058 = vmatpush1.msra.mxu0 %v1036
      %1059 = vmatprep.subr.mxu0 0.0
      %1060 = vmatpush1.msra.mxu0 %v1037
      %1061 = vmatprep.subr.mxu0 0.0
      %1062 = vmatpush1.msra.mxu0 %v1038
      %1063 = vmatprep.subr.mxu0 0.0
      %1064 = vmatpush1.msra.mxu0 %v1039
      %1065 = vmatprep.subr.mxu0 0.0
      %1066 = vmatpush1.msra.mxu0 %v1040
      %1067 = vmatprep.subr.mxu0 0.0
      %1068 = vmatpush1.msra.mxu0 %v1041
      %1069 = vmatprep.subr.mxu0 0.0
      %1070 = vmatpush1.msra.mxu0 %v1042
      %1071 = vmatprep.subr.mxu0 0.0
      %1072 = vmatpush1.msra.mxu0 %v1043
      %1073 = vmatprep.subr.mxu0 0.0
      %1074 = vmatpush1.msra.mxu0 %v1044
      %1075 = vmatprep.subr.mxu0 0.0
      %1076 = vmatpush1.msra.mxu0 %v1045
      %1077 = vmatprep.subr.mxu0 0.0
      %1078 = vmatpush1.msra.mxu0 %v1046
      %1079 = vmatprep.subr.mxu0 0.0
      %1080 = vmatpush1.msra.mxu0 0.0
      %1081 = vmatprep.subr.mxu0 0.0
      %1082 = vmatpush1.msra.mxu0 0.0
      %1083 = vmatprep.subr.mxu0 0.0
      %1084 = vmatpush1.msra.mxu0 0.0
      %1085 = vmatprep.subr.mxu0 0.0
      %1086 = vmatpush1.msra.mxu0 0.0
      %1087 = vmatprep.subr.mxu0 0.0
      %1088 = vmatpush1.msra.mxu0 0.0
      %1089 = vmatprep.subr.mxu0 0.0
      %1090 = vmatpush1.msra.mxu0 0.0
      %1091 = vmatprep.subr.mxu0 0.0
      %1092 = vmatpush1.msra.mxu0 0.0
      %1093 = vmatprep.subr.mxu0 0.0
      %1094 = vmatpush1.msra.mxu0 0.0
      %1095 = vmatprep.subr.mxu0 0.0
      %1096 = vmatpush1.msra.mxu0 0.0
      %1097 = vmatprep.subr.mxu0 0.0
      %1098 = vmatpush1.msra.mxu0 0.0
      %1099 = vmatprep.subr.mxu0 0.0
      %1100 = vmatpush1.msra.mxu0 0.0
      %1101 = vmatprep.subr.mxu0 0.0
      %1102 = vmatpush1.msra.mxu0 0.0
      %1103 = vmatprep.subr.mxu0 0.0
      %1104 = vmatpush1.msra.mxu0 0.0
      %1105 = vmatprep.subr.mxu0 0.0
      %1106 = vmatpush1.msra.mxu0 0.0
      %1107 = vmatprep.subr.mxu0 0.0
      %1108 = vmatpush1.msra.mxu0 0.0
      %1109 = vmatprep.subr.mxu0 0.0
      %1110 = vmatpush1.msra.mxu0 0.0
      %1111 = vmatprep.mubr.f32.mxu0 0.0
      %1112 = vmatmul.mubr.f32.gmra.mrb[0].mxu0 %v1014
      %v1113 = vpop.f32.mrb[0].mxu0
      %v1114 = vadd.f32 0.0, %v1113
      %v1115 = vpop.f32.mrb[0].mxu0
      %1116 = vmatprep.mubr.f32.mxu0 0.0
      %1117 = vmatmul.mubr.f32.gmra.mrb[0].mxu0 %v1015
      %v1118 = vpop.f32.mrb[0].mxu0
      %v1119 = vadd.f32 0.0, %v1118
      %v1120 = vpop.f32.mrb[0].mxu0
      %1121 = vmatprep.mubr.f32.mxu0 0.0
      %1122 = vmatmul.mubr.f32.gmra.mrb[0].mxu0 %v1016
      %v1123 = vpop.f32.mrb[0].mxu0
      %v1124 = vadd.f32 0.0, %v1123
      %v1125 = vpop.f32.mrb[0].mxu0
      %1126 = vmatprep.mubr.f32.mxu0 0.0
      %1127 = vmatmul.mubr.f32.gmra.mrb[0].mxu0 %v1017
      %v1128 = vpop.f32.mrb[0].mxu0
      %v1129 = vadd.f32 0.0, %v1128
      %v1130 = vpop.f32.mrb[0].mxu0
      %1131 = vmatprep.mubr.f32.mxu0 0.0
      %1132 = vmatmul.mubr.f32.gmra.mrb[0].mxu0 %v1018
      %v1133 = vpop.f32.mrb[0].mxu0
      %v1134 = vadd.f32 0.0, %v1133
      %v1135 = vpop.f32.mrb[0].mxu0
      %1136 = vmatprep.mubr.f32.mxu0 0.0
      %1137 = vmatmul.mubr.f32.gmra.mrb[0].mxu0 %v1019
      %v1138 = vpop.f32.mrb[0].mxu0
      %v1139 = vadd.f32 0.0, %v1138
      %v1140 = vpop.f32.mrb[0].mxu0
      %1141 = vmatprep.mubr.f32.mxu0 0.0
      %1142 = vmatmul.mubr.f32.gmra.mrb[0].mxu0 %v1020
      %v1143 = vpop.f32.mrb[0].mxu0
      %v1144 = vadd.f32 0.0, %v1143
      %v1145 = vpop.f32.mrb[0].mxu0
      %1146 = vmatprep.mubr.f32.mxu0 0.0
      %1147 = vmatmul.mubr.f32.gmra.mrb[0].mxu0 %v1021
      %v1148 = vpop.f32.mrb[0].mxu0
      %v1149 = vadd.f32 0.0, %v1148
      %v1150 = vpop.f32.mrb[0].mxu0
      %1151 = vdwg.mxu0
      %v1152 = vadd.f32 %v1022, %v1114
      %v1153 = vadd.f32 %v1023, %v1119
      %v1154 = vadd.f32 %v1024, %v1124
      %v1155 = vadd.f32 %v1025, %v1129
      %v1156 = vadd.f32 %v1026, %v1134
      %v1157 = vadd.f32 %v1027, %v1139
      %v1158 = vadd.f32 %v1028, %v1144
      %v1159 = vadd.f32 %v1029, %v1149
      %1160 = vst [vmem:[#allocation2] sm:$0xff] %v1152
      %1161 = vst [vmem:[#allocation2 + $0x8] sm:$0xff] %v1153
      %1162 = vst [vmem:[#allocation2 + $0x10] sm:$0xff] %v1154
      %1163 = vst [vmem:[#allocation2 + $0x18] sm:$0xff] %v1155
      %1164 = vst [vmem:[#allocation2 + $0x20] sm:$0xff] %v1156
      %1165 = vst [vmem:[#allocation2 + $0x28] sm:$0xff] %v1157
      %1166 = vst [vmem:[#allocation2 + $0x30] sm:$0xff] %v1158
      %1167 = vst [vmem:[#allocation2 + $0x38] sm:$0xff] %v1159
      %s1168 = scalar_lea.vmem %s210, 16
      %v1169 = vld [vmem:[%s1168] sm:$0xff]
      %v1170 = vld [vmem:[%s1168 + $0x10] sm:$0xff]
      %v1171 = vld [vmem:[%s1168 + $0x20] sm:$0xff]
      %v1172 = vld [vmem:[%s1168 + $0x30] sm:$0xff]
      %v1173 = vld [vmem:[%s1168 + $0x40] sm:$0xff]
      %v1174 = vld [vmem:[%s1168 + $0x50] sm:$0xff]
      %v1175 = vld [vmem:[%s1168 + $0x60] sm:$0xff]
      %v1176 = vld [vmem:[%s1168 + $0x70] sm:$0xff]
      %v1177 = vld [vmem:[#allocation2] sm:$0xff]
      %v1178 = vld [vmem:[#allocation2 + $0x8] sm:$0xff]
      %v1179 = vld [vmem:[#allocation2 + $0x10] sm:$0xff]
      %v1180 = vld [vmem:[#allocation2 + $0x18] sm:$0xff]
      %v1181 = vld [vmem:[#allocation2 + $0x20] sm:$0xff]
      %v1182 = vld [vmem:[#allocation2 + $0x28] sm:$0xff]
      %v1183 = vld [vmem:[#allocation2 + $0x30] sm:$0xff]
      %v1184 = vld [vmem:[#allocation2 + $0x38] sm:$0xff]
      %s1185 = scalar_lea.vmem %s215, 768
      %v1186 = vld [vmem:[%s1185] sm:$0xff]
      %v1187 = vld [vmem:[%s1185 + $0x8] sm:$0xff]
      %v1188 = vld [vmem:[%s1185 + $0x10] sm:$0xff]
      %v1189 = vld [vmem:[%s1185 + $0x18] sm:$0xff]
      %v1190 = vld [vmem:[%s1185 + $0x20] sm:$0xff]
      %v1191 = vld [vmem:[%s1185 + $0x28] sm:$0xff]
      %v1192 = vld [vmem:[%s1185 + $0x30] sm:$0xff]
      %v1193 = vld [vmem:[%s1185 + $0x38] sm:$0xff]
      %v1194 = vld [vmem:[%s1185 + $0x40] sm:$0xff]
      %v1195 = vld [vmem:[%s1185 + $0x48] sm:$0xff]
      %v1196 = vld [vmem:[%s1185 + $0x50] sm:$0xff]
      %v1197 = vld [vmem:[%s1185 + $0x58] sm:$0xff]
      %v1198 = vld [vmem:[%s1185 + $0x60] sm:$0xff]
      %v1199 = vld [vmem:[%s1185 + $0x68] sm:$0xff]
      %v1200 = vld [vmem:[%s1185 + $0x70] sm:$0xff]
      %v1201 = vld [vmem:[%s1185 + $0x78] sm:$0xff]
      %1202 = vmatprep.subr.mxu0 0.0
      %1203 = vmatpush1.msra.mxu0 %v1186
      %1204 = vmatprep.subr.mxu0 0.0
      %1205 = vmatpush1.msra.mxu0 %v1187
      %1206 = vmatprep.subr.mxu0 0.0
      %1207 = vmatpush1.msra.mxu0 %v1188
      %1208 = vmatprep.subr.mxu0 0.0
      %1209 = vmatpush1.msra.mxu0 %v1189
      %1210 = vmatprep.subr.mxu0 0.0
      %1211 = vmatpush1.msra.mxu0 %v1190
      %1212 = vmatprep.subr.mxu0 0.0
      %1213 = vmatpush1.msra.mxu0 %v1191
      %1214 = vmatprep.subr.mxu0 0.0
      %1215 = vmatpush1.msra.mxu0 %v1192
      %1216 = vmatprep.subr.mxu0 0.0
      %1217 = vmatpush1.msra.mxu0 %v1193
      %1218 = vmatprep.subr.mxu0 0.0
      %1219 = vmatpush1.msra.mxu0 %v1194
      %1220 = vmatprep.subr.mxu0 0.0
      %1221 = vmatpush1.msra.mxu0 %v1195
      %1222 = vmatprep.subr.mxu0 0.0
      %1223 = vmatpush1.msra.mxu0 %v1196
      %1224 = vmatprep.subr.mxu0 0.0
      %1225 = vmatpush1.msra.mxu0 %v1197
      %1226 = vmatprep.subr.mxu0 0.0
      %1227 = vmatpush1.msra.mxu0 %v1198
      %1228 = vmatprep.subr.mxu0 0.0
      %1229 = vmatpush1.msra.mxu0 %v1199
      %1230 = vmatprep.subr.mxu0 0.0
      %1231 = vmatpush1.msra.mxu0 %v1200
      %1232 = vmatprep.subr.mxu0 0.0
      %1233 = vmatpush1.msra.mxu0 %v1201
      %1234 = vmatprep.subr.mxu0 0.0
      %1235 = vmatpush1.msra.mxu0 0.0
      %1236 = vmatprep.subr.mxu0 0.0
      %1237 = vmatpush1.msra.mxu0 0.0
      %1238 = vmatprep.subr.mxu0 0.0
      %1239 = vmatpush1.msra.mxu0 0.0
      %1240 = vmatprep.subr.mxu0 0.0
      %1241 = vmatpush1.msra.mxu0 0.0
      %1242 = vmatprep.subr.mxu0 0.0
      %1243 = vmatpush1.msra.mxu0 0.0
      %1244 = vmatprep.subr.mxu0 0.0
      %1245 = vmatpush1.msra.mxu0 0.0
      %1246 = vmatprep.subr.mxu0 0.0
      %1247 = vmatpush1.msra.mxu0 0.0
      %1248 = vmatprep.subr.mxu0 0.0
      %1249 = vmatpush1.msra.mxu0 0.0
      %1250 = vmatprep.subr.mxu0 0.0
      %1251 = vmatpush1.msra.mxu0 0.0
      %1252 = vmatprep.subr.mxu0 0.0
      %1253 = vmatpush1.msra.mxu0 0.0
      %1254 = vmatprep.subr.mxu0 0.0
      %1255 = vmatpush1.msra.mxu0 0.0
      %1256 = vmatprep.subr.mxu0 0.0
      %1257 = vmatpush1.msra.mxu0 0.0
      %1258 = vmatprep.subr.mxu0 0.0
      %1259 = vmatpush1.msra.mxu0 0.0
      %1260 = vmatprep.subr.mxu0 0.0
      %1261 = vmatpush1.msra.mxu0 0.0
      %1262 = vmatprep.subr.mxu0 0.0
      %1263 = vmatpush1.msra.mxu0 0.0
      %1264 = vmatprep.subr.mxu0 0.0
      %1265 = vmatpush1.msra.mxu0 0.0
      %1266 = vmatprep.mubr.f32.mxu0 0.0
      %1267 = vmatmul.mubr.f32.gmra.mrb[0].mxu0 %v1169
      %v1268 = vpop.f32.mrb[0].mxu0
      %v1269 = vadd.f32 0.0, %v1268
      %v1270 = vpop.f32.mrb[0].mxu0
      %1271 = vmatprep.mubr.f32.mxu0 0.0
      %1272 = vmatmul.mubr.f32.gmra.mrb[0].mxu0 %v1170
      %v1273 = vpop.f32.mrb[0].mxu0
      %v1274 = vadd.f32 0.0, %v1273
      %v1275 = vpop.f32.mrb[0].mxu0
      %1276 = vmatprep.mubr.f32.mxu0 0.0
      %1277 = vmatmul.mubr.f32.gmra.mrb[0].mxu0 %v1171
      %v1278 = vpop.f32.mrb[0].mxu0
      %v1279 = vadd.f32 0.0, %v1278
      %v1280 = vpop.f32.mrb[0].mxu0
      %1281 = vmatprep.mubr.f32.mxu0 0.0
      %1282 = vmatmul.mubr.f32.gmra.mrb[0].mxu0 %v1172
      %v1283 = vpop.f32.mrb[0].mxu0
      %v1284 = vadd.f32 0.0, %v1283
      %v1285 = vpop.f32.mrb[0].mxu0
      %1286 = vmatprep.mubr.f32.mxu0 0.0
      %1287 = vmatmul.mubr.f32.gmra.mrb[0].mxu0 %v1173
      %v1288 = vpop.f32.mrb[0].mxu0
      %v1289 = vadd.f32 0.0, %v1288
      %v1290 = vpop.f32.mrb[0].mxu0
      %1291 = vmatprep.mubr.f32.mxu0 0.0
      %1292 = vmatmul.mubr.f32.gmra.mrb[0].mxu0 %v1174
      %v1293 = vpop.f32.mrb[0].mxu0
      %v1294 = vadd.f32 0.0, %v1293
      %v1295 = vpop.f32.mrb[0].mxu0
      %1296 = vmatprep.mubr.f32.mxu0 0.0
      %1297 = vmatmul.mubr.f32.gmra.mrb[0].mxu0 %v1175
      %v1298 = vpop.f32.mrb[0].mxu0
      %v1299 = vadd.f32 0.0, %v1298
      %v1300 = vpop.f32.mrb[0].mxu0
      %1301 = vmatprep.mubr.f32.mxu0 0.0
      %1302 = vmatmul.mubr.f32.gmra.mrb[0].mxu0 %v1176
      %v1303 = vpop.f32.mrb[0].mxu0
      %v1304 = vadd.f32 0.0, %v1303
      %v1305 = vpop.f32.mrb[0].mxu0
      %1306 = vdwg.mxu0
      %v1307 = vadd.f32 %v1177, %v1269
      %v1308 = vadd.f32 %v1178, %v1274
      %v1309 = vadd.f32 %v1179, %v1279
      %v1310 = vadd.f32 %v1180, %v1284
      %v1311 = vadd.f32 %v1181, %v1289
      %v1312 = vadd.f32 %v1182, %v1294
      %v1313 = vadd.f32 %v1183, %v1299
      %v1314 = vadd.f32 %v1184, %v1304
      %1315 = vst [vmem:[#allocation2] sm:$0xff] %v1307
      %1316 = vst [vmem:[#allocation2 + $0x8] sm:$0xff] %v1308
      %1317 = vst [vmem:[#allocation2 + $0x10] sm:$0xff] %v1309
      %1318 = vst [vmem:[#allocation2 + $0x18] sm:$0xff] %v1310
      %1319 = vst [vmem:[#allocation2 + $0x20] sm:$0xff] %v1311
      %1320 = vst [vmem:[#allocation2 + $0x28] sm:$0xff] %v1312
      %1321 = vst [vmem:[#allocation2 + $0x30] sm:$0xff] %v1313
      %1322 = vst [vmem:[#allocation2 + $0x38] sm:$0xff] %v1314
      %s1323 = scalar_lea.vmem %s210, 160
      %v1324 = vld [vmem:[%s1323] sm:$0xff]
      %v1325 = vld [vmem:[%s1323 + $0x10] sm:$0xff]
      %v1326 = vld [vmem:[%s1323 + $0x20] sm:$0xff]
      %v1327 = vld [vmem:[%s1323 + $0x30] sm:$0xff]
      %v1328 = vld [vmem:[%s1323 + $0x40] sm:$0xff]
      %v1329 = vld [vmem:[%s1323 + $0x50] sm:$0xff]
      %v1330 = vld [vmem:[%s1323 + $0x60] sm:$0xff]
      %v1331 = vld [vmem:[%s1323 + $0x70] sm:$0xff]
      %v1332 = vld [vmem:[#allocation2] sm:$0xff]
      %v1333 = vld [vmem:[#allocation2 + $0x8] sm:$0xff]
      %v1334 = vld [vmem:[#allocation2 + $0x10] sm:$0xff]
      %v1335 = vld [vmem:[#allocation2 + $0x18] sm:$0xff]
      %v1336 = vld [vmem:[#allocation2 + $0x20] sm:$0xff]
      %v1337 = vld [vmem:[#allocation2 + $0x28] sm:$0xff]
      %v1338 = vld [vmem:[#allocation2 + $0x30] sm:$0xff]
      %v1339 = vld [vmem:[#allocation2 + $0x38] sm:$0xff]
      %s1340 = scalar_lea.vmem %s215, 896
      %v1341 = vld [vmem:[%s1340] sm:$0xff]
      %v1342 = vld [vmem:[%s1340 + $0x8] sm:$0xff]
      %v1343 = vld [vmem:[%s1340 + $0x10] sm:$0xff]
      %v1344 = vld [vmem:[%s1340 + $0x18] sm:$0xff]
      %v1345 = vld [vmem:[%s1340 + $0x20] sm:$0xff]
      %v1346 = vld [vmem:[%s1340 + $0x28] sm:$0xff]
      %v1347 = vld [vmem:[%s1340 + $0x30] sm:$0xff]
      %v1348 = vld [vmem:[%s1340 + $0x38] sm:$0xff]
      %v1349 = vld [vmem:[%s1340 + $0x40] sm:$0xff]
      %v1350 = vld [vmem:[%s1340 + $0x48] sm:$0xff]
      %v1351 = vld [vmem:[%s1340 + $0x50] sm:$0xff]
      %v1352 = vld [vmem:[%s1340 + $0x58] sm:$0xff]
      %v1353 = vld [vmem:[%s1340 + $0x60] sm:$0xff]
      %v1354 = vld [vmem:[%s1340 + $0x68] sm:$0xff]
      %v1355 = vld [vmem:[%s1340 + $0x70] sm:$0xff]
      %v1356 = vld [vmem:[%s1340 + $0x78] sm:$0xff]
      %1357 = vmatprep.subr.mxu0 0.0
      %1358 = vmatpush1.msra.mxu0 %v1341
      %1359 = vmatprep.subr.mxu0 0.0
      %1360 = vmatpush1.msra.mxu0 %v1342
      %1361 = vmatprep.subr.mxu0 0.0
      %1362 = vmatpush1.msra.mxu0 %v1343
      %1363 = vmatprep.subr.mxu0 0.0
      %1364 = vmatpush1.msra.mxu0 %v1344
      %1365 = vmatprep.subr.mxu0 0.0
      %1366 = vmatpush1.msra.mxu0 %v1345
      %1367 = vmatprep.subr.mxu0 0.0
      %1368 = vmatpush1.msra.mxu0 %v1346
      %1369 = vmatprep.subr.mxu0 0.0
      %1370 = vmatpush1.msra.mxu0 %v1347
      %1371 = vmatprep.subr.mxu0 0.0
      %1372 = vmatpush1.msra.mxu0 %v1348
      %1373 = vmatprep.subr.mxu0 0.0
      %1374 = vmatpush1.msra.mxu0 %v1349
      %1375 = vmatprep.subr.mxu0 0.0
      %1376 = vmatpush1.msra.mxu0 %v1350
      %1377 = vmatprep.subr.mxu0 0.0
      %1378 = vmatpush1.msra.mxu0 %v1351
      %1379 = vmatprep.subr.mxu0 0.0
      %1380 = vmatpush1.msra.mxu0 %v1352
      %1381 = vmatprep.subr.mxu0 0.0
      %1382 = vmatpush1.msra.mxu0 %v1353
      %1383 = vmatprep.subr.mxu0 0.0
      %1384 = vmatpush1.msra.mxu0 %v1354
      %1385 = vmatprep.subr.mxu0 0.0
      %1386 = vmatpush1.msra.mxu0 %v1355
      %1387 = vmatprep.subr.mxu0 0.0
      %1388 = vmatpush1.msra.mxu0 %v1356
      %1389 = vmatprep.subr.mxu0 0.0
      %1390 = vmatpush1.msra.mxu0 0.0
      %1391 = vmatprep.subr.mxu0 0.0
      %1392 = vmatpush1.msra.mxu0 0.0
      %1393 = vmatprep.subr.mxu0 0.0
      %1394 = vmatpush1.msra.mxu0 0.0
      %1395 = vmatprep.subr.mxu0 0.0
      %1396 = vmatpush1.msra.mxu0 0.0
      %1397 = vmatprep.subr.mxu0 0.0
      %1398 = vmatpush1.msra.mxu0 0.0
      %1399 = vmatprep.subr.mxu0 0.0
      %1400 = vmatpush1.msra.mxu0 0.0
      %1401 = vmatprep.subr.mxu0 0.0
      %1402 = vmatpush1.msra.mxu0 0.0
      %1403 = vmatprep.subr.mxu0 0.0
      %1404 = vmatpush1.msra.mxu0 0.0
      %1405 = vmatprep.subr.mxu0 0.0
      %1406 = vmatpush1.msra.mxu0 0.0
      %1407 = vmatprep.subr.mxu0 0.0
      %1408 = vmatpush1.msra.mxu0 0.0
      %1409 = vmatprep.subr.mxu0 0.0
      %1410 = vmatpush1.msra.mxu0 0.0
      %1411 = vmatprep.subr.mxu0 0.0
      %1412 = vmatpush1.msra.mxu0 0.0
      %1413 = vmatprep.subr.mxu0 0.0
      %1414 = vmatpush1.msra.mxu0 0.0
      %1415 = vmatprep.subr.mxu0 0.0
      %1416 = vmatpush1.msra.mxu0 0.0
      %1417 = vmatprep.subr.mxu0 0.0
      %1418 = vmatpush1.msra.mxu0 0.0
      %1419 = vmatprep.subr.mxu0 0.0
      %1420 = vmatpush1.msra.mxu0 0.0
      %1421 = vmatprep.mubr.f32.mxu0 0.0
      %1422 = vmatmul.mubr.f32.gmra.mrb[0].mxu0 %v1324
      %v1423 = vpop.f32.mrb[0].mxu0
      %v1424 = vadd.f32 0.0, %v1423
      %v1425 = vpop.f32.mrb[0].mxu0
      %1426 = vmatprep.mubr.f32.mxu0 0.0
      %1427 = vmatmul.mubr.f32.gmra.mrb[0].mxu0 %v1325
      %v1428 = vpop.f32.mrb[0].mxu0
      %v1429 = vadd.f32 0.0, %v1428
      %v1430 = vpop.f32.mrb[0].mxu0
      %1431 = vmatprep.mubr.f32.mxu0 0.0
      %1432 = vmatmul.mubr.f32.gmra.mrb[0].mxu0 %v1326
      %v1433 = vpop.f32.mrb[0].mxu0
      %v1434 = vadd.f32 0.0, %v1433
      %v1435 = vpop.f32.mrb[0].mxu0
      %1436 = vmatprep.mubr.f32.mxu0 0.0
      %1437 = vmatmul.mubr.f32.gmra.mrb[0].mxu0 %v1327
      %v1438 = vpop.f32.mrb[0].mxu0
      %v1439 = vadd.f32 0.0, %v1438
      %v1440 = vpop.f32.mrb[0].mxu0
      %1441 = vmatprep.mubr.f32.mxu0 0.0
      %1442 = vmatmul.mubr.f32.gmra.mrb[0].mxu0 %v1328
      %v1443 = vpop.f32.mrb[0].mxu0
      %v1444 = vadd.f32 0.0, %v1443
      %v1445 = vpop.f32.mrb[0].mxu0
      %1446 = vmatprep.mubr.f32.mxu0 0.0
      %1447 = vmatmul.mubr.f32.gmra.mrb[0].mxu0 %v1329
      %v1448 = vpop.f32.mrb[0].mxu0
      %v1449 = vadd.f32 0.0, %v1448
      %v1450 = vpop.f32.mrb[0].mxu0
      %1451 = vmatprep.mubr.f32.mxu0 0.0
      %1452 = vmatmul.mubr.f32.gmra.mrb[0].mxu0 %v1330
      %v1453 = vpop.f32.mrb[0].mxu0
      %v1454 = vadd.f32 0.0, %v1453
      %v1455 = vpop.f32.mrb[0].mxu0
      %1456 = vmatprep.mubr.f32.mxu0 0.0
      %1457 = vmatmul.mubr.f32.gmra.mrb[0].mxu0 %v1331
      %v1458 = vpop.f32.mrb[0].mxu0
      %v1459 = vadd.f32 0.0, %v1458
      %v1460 = vpop.f32.mrb[0].mxu0
      %1461 = vdwg.mxu0
      %v1462 = vadd.f32 %v1332, %v1424
      %v1463 = vadd.f32 %v1333, %v1429
      %v1464 = vadd.f32 %v1334, %v1434
      %v1465 = vadd.f32 %v1335, %v1439
      %v1466 = vadd.f32 %v1336, %v1444
      %v1467 = vadd.f32 %v1337, %v1449
      %v1468 = vadd.f32 %v1338, %v1454
      %v1469 = vadd.f32 %v1339, %v1459
      %1470 = vst [vmem:[#allocation2] sm:$0xff] %v1462
      %1471 = vst [vmem:[#allocation2 + $0x8] sm:$0xff] %v1463
      %1472 = vst [vmem:[#allocation2 + $0x10] sm:$0xff] %v1464
      %1473 = vst [vmem:[#allocation2 + $0x18] sm:$0xff] %v1465
      %1474 = vst [vmem:[#allocation2 + $0x20] sm:$0xff] %v1466
      %1475 = vst [vmem:[#allocation2 + $0x28] sm:$0xff] %v1467
      %1476 = vst [vmem:[#allocation2 + $0x30] sm:$0xff] %v1468
      %1477 = vst [vmem:[#allocation2 + $0x38] sm:$0xff] %v1469
      %v1478 = vld [vmem:[%s1168 + $0x1] sm:$0xff]
      %v1479 = vld [vmem:[%s1168 + $0x11] sm:$0xff]
      %v1480 = vld [vmem:[%s1168 + $0x21] sm:$0xff]
      %v1481 = vld [vmem:[%s1168 + $0x31] sm:$0xff]
      %v1482 = vld [vmem:[%s1168 + $0x41] sm:$0xff]
      %v1483 = vld [vmem:[%s1168 + $0x51] sm:$0xff]
      %v1484 = vld [vmem:[%s1168 + $0x61] sm:$0xff]
      %v1485 = vld [vmem:[%s1168 + $0x71] sm:$0xff]
      %v1486 = vld [vmem:[#allocation2] sm:$0xff]
      %v1487 = vld [vmem:[#allocation2 + $0x8] sm:$0xff]
      %v1488 = vld [vmem:[#allocation2 + $0x10] sm:$0xff]
      %v1489 = vld [vmem:[#allocation2 + $0x18] sm:$0xff]
      %v1490 = vld [vmem:[#allocation2 + $0x20] sm:$0xff]
      %v1491 = vld [vmem:[#allocation2 + $0x28] sm:$0xff]
      %v1492 = vld [vmem:[#allocation2 + $0x30] sm:$0xff]
      %v1493 = vld [vmem:[#allocation2 + $0x38] sm:$0xff]
      %s1494 = scalar_lea.vmem %s215, 1024
      %v1495 = vld [vmem:[%s1494] sm:$0xff]
      %v1496 = vld [vmem:[%s1494 + $0x8] sm:$0xff]
      %v1497 = vld [vmem:[%s1494 + $0x10] sm:$0xff]
      %v1498 = vld [vmem:[%s1494 + $0x18] sm:$0xff]
      %v1499 = vld [vmem:[%s1494 + $0x20] sm:$0xff]
      %v1500 = vld [vmem:[%s1494 + $0x28] sm:$0xff]
      %v1501 = vld [vmem:[%s1494 + $0x30] sm:$0xff]
      %v1502 = vld [vmem:[%s1494 + $0x38] sm:$0xff]
      %v1503 = vld [vmem:[%s1494 + $0x40] sm:$0xff]
      %v1504 = vld [vmem:[%s1494 + $0x48] sm:$0xff]
      %v1505 = vld [vmem:[%s1494 + $0x50] sm:$0xff]
      %v1506 = vld [vmem:[%s1494 + $0x58] sm:$0xff]
      %v1507 = vld [vmem:[%s1494 + $0x60] sm:$0xff]
      %v1508 = vld [vmem:[%s1494 + $0x68] sm:$0xff]
      %v1509 = vld [vmem:[%s1494 + $0x70] sm:$0xff]
      %v1510 = vld [vmem:[%s1494 + $0x78] sm:$0xff]
      %1511 = vmatprep.subr.mxu0 0.0
      %1512 = vmatpush1.msra.mxu0 %v1495
      %1513 = vmatprep.subr.mxu0 0.0
      %1514 = vmatpush1.msra.mxu0 %v1496
      %1515 = vmatprep.subr.mxu0 0.0
      %1516 = vmatpush1.msra.mxu0 %v1497
      %1517 = vmatprep.subr.mxu0 0.0
      %1518 = vmatpush1.msra.mxu0 %v1498
      %1519 = vmatprep.subr.mxu0 0.0
      %1520 = vmatpush1.msra.mxu0 %v1499
      %1521 = vmatprep.subr.mxu0 0.0
      %1522 = vmatpush1.msra.mxu0 %v1500
      %1523 = vmatprep.subr.mxu0 0.0
      %1524 = vmatpush1.msra.mxu0 %v1501
      %1525 = vmatprep.subr.mxu0 0.0
      %1526 = vmatpush1.msra.mxu0 %v1502
      %1527 = vmatprep.subr.mxu0 0.0
      %1528 = vmatpush1.msra.mxu0 %v1503
      %1529 = vmatprep.subr.mxu0 0.0
      %1530 = vmatpush1.msra.mxu0 %v1504
      %1531 = vmatprep.subr.mxu0 0.0
      %1532 = vmatpush1.msra.mxu0 %v1505
      %1533 = vmatprep.subr.mxu0 0.0
      %1534 = vmatpush1.msra.mxu0 %v1506
      %1535 = vmatprep.subr.mxu0 0.0
      %1536 = vmatpush1.msra.mxu0 %v1507
      %1537 = vmatprep.subr.mxu0 0.0
      %1538 = vmatpush1.msra.mxu0 %v1508
      %1539 = vmatprep.subr.mxu0 0.0
      %1540 = vmatpush1.msra.mxu0 %v1509
      %1541 = vmatprep.subr.mxu0 0.0
      %1542 = vmatpush1.msra.mxu0 %v1510
      %1543 = vmatprep.subr.mxu0 0.0
      %1544 = vmatpush1.msra.mxu0 0.0
      %1545 = vmatprep.subr.mxu0 0.0
      %1546 = vmatpush1.msra.mxu0 0.0
      %1547 = vmatprep.subr.mxu0 0.0
      %1548 = vmatpush1.msra.mxu0 0.0
      %1549 = vmatprep.subr.mxu0 0.0
      %1550 = vmatpush1.msra.mxu0 0.0
      %1551 = vmatprep.subr.mxu0 0.0
      %1552 = vmatpush1.msra.mxu0 0.0
      %1553 = vmatprep.subr.mxu0 0.0
      %1554 = vmatpush1.msra.mxu0 0.0
      %1555 = vmatprep.subr.mxu0 0.0
      %1556 = vmatpush1.msra.mxu0 0.0
      %1557 = vmatprep.subr.mxu0 0.0
      %1558 = vmatpush1.msra.mxu0 0.0
      %1559 = vmatprep.subr.mxu0 0.0
      %1560 = vmatpush1.msra.mxu0 0.0
      %1561 = vmatprep.subr.mxu0 0.0
      %1562 = vmatpush1.msra.mxu0 0.0
      %1563 = vmatprep.subr.mxu0 0.0
      %1564 = vmatpush1.msra.mxu0 0.0
      %1565 = vmatprep.subr.mxu0 0.0
      %1566 = vmatpush1.msra.mxu0 0.0
      %1567 = vmatprep.subr.mxu0 0.0
      %1568 = vmatpush1.msra.mxu0 0.0
      %1569 = vmatprep.subr.mxu0 0.0
      %1570 = vmatpush1.msra.mxu0 0.0
      %1571 = vmatprep.subr.mxu0 0.0
      %1572 = vmatpush1.msra.mxu0 0.0
      %1573 = vmatprep.subr.mxu0 0.0
      %1574 = vmatpush1.msra.mxu0 0.0
      %1575 = vmatprep.mubr.f32.mxu0 0.0
      %1576 = vmatmul.mubr.f32.gmra.mrb[0].mxu0 %v1478
      %v1577 = vpop.f32.mrb[0].mxu0
      %v1578 = vadd.f32 0.0, %v1577
      %v1579 = vpop.f32.mrb[0].mxu0
      %1580 = vmatprep.mubr.f32.mxu0 0.0
      %1581 = vmatmul.mubr.f32.gmra.mrb[0].mxu0 %v1479
      %v1582 = vpop.f32.mrb[0].mxu0
      %v1583 = vadd.f32 0.0, %v1582
      %v1584 = vpop.f32.mrb[0].mxu0
      %1585 = vmatprep.mubr.f32.mxu0 0.0
      %1586 = vmatmul.mubr.f32.gmra.mrb[0].mxu0 %v1480
      %v1587 = vpop.f32.mrb[0].mxu0
      %v1588 = vadd.f32 0.0, %v1587
      %v1589 = vpop.f32.mrb[0].mxu0
      %1590 = vmatprep.mubr.f32.mxu0 0.0
      %1591 = vmatmul.mubr.f32.gmra.mrb[0].mxu0 %v1481
      %v1592 = vpop.f32.mrb[0].mxu0
      %v1593 = vadd.f32 0.0, %v1592
      %v1594 = vpop.f32.mrb[0].mxu0
      %1595 = vmatprep.mubr.f32.mxu0 0.0
      %1596 = vmatmul.mubr.f32.gmra.mrb[0].mxu0 %v1482
      %v1597 = vpop.f32.mrb[0].mxu0
      %v1598 = vadd.f32 0.0, %v1597
      %v1599 = vpop.f32.mrb[0].mxu0
      %1600 = vmatprep.mubr.f32.mxu0 0.0
      %1601 = vmatmul.mubr.f32.gmra.mrb[0].mxu0 %v1483
      %v1602 = vpop.f32.mrb[0].mxu0
      %v1603 = vadd.f32 0.0, %v1602
      %v1604 = vpop.f32.mrb[0].mxu0
      %1605 = vmatprep.mubr.f32.mxu0 0.0
      %1606 = vmatmul.mubr.f32.gmra.mrb[0].mxu0 %v1484
      %v1607 = vpop.f32.mrb[0].mxu0
      %v1608 = vadd.f32 0.0, %v1607
      %v1609 = vpop.f32.mrb[0].mxu0
      %1610 = vmatprep.mubr.f32.mxu0 0.0
      %1611 = vmatmul.mubr.f32.gmra.mrb[0].mxu0 %v1485
      %v1612 = vpop.f32.mrb[0].mxu0
      %v1613 = vadd.f32 0.0, %v1612
      %v1614 = vpop.f32.mrb[0].mxu0
      %1615 = vdwg.mxu0
      %v1616 = vadd.f32 %v1486, %v1578
      %v1617 = vadd.f32 %v1487, %v1583
      %v1618 = vadd.f32 %v1488, %v1588
      %v1619 = vadd.f32 %v1489, %v1593
      %v1620 = vadd.f32 %v1490, %v1598
      %v1621 = vadd.f32 %v1491, %v1603
      %v1622 = vadd.f32 %v1492, %v1608
      %v1623 = vadd.f32 %v1493, %v1613
      %1624 = vst [vmem:[#allocation2] sm:$0xff] %v1616
      %1625 = vst [vmem:[#allocation2 + $0x8] sm:$0xff] %v1617
      %1626 = vst [vmem:[#allocation2 + $0x10] sm:$0xff] %v1618
      %1627 = vst [vmem:[#allocation2 + $0x18] sm:$0xff] %v1619
      %1628 = vst [vmem:[#allocation2 + $0x20] sm:$0xff] %v1620
      %1629 = vst [vmem:[#allocation2 + $0x28] sm:$0xff] %v1621
      %1630 = vst [vmem:[#allocation2 + $0x30] sm:$0xff] %v1622
      %1631 = vst [vmem:[#allocation2 + $0x38] sm:$0xff] %v1623
      %v1632 = vld [vmem:[#allocation2] sm:$0xff]
      %v1633 = vld [vmem:[#allocation2 + $0x8] sm:$0xff]
      %v1634 = vld [vmem:[#allocation2 + $0x10] sm:$0xff]
      %v1635 = vld [vmem:[#allocation2 + $0x18] sm:$0xff]
      %v1636 = vld [vmem:[#allocation2 + $0x20] sm:$0xff]
      %v1637 = vld [vmem:[#allocation2 + $0x28] sm:$0xff]
      %v1638 = vld [vmem:[#allocation2 + $0x30] sm:$0xff]
      %v1639 = vld [vmem:[#allocation2 + $0x38] sm:$0xff]
      %v1640 = vmax.f32 %v1632, 0.0
      %v1641 = vmax.f32 %v1633, 0.0
      %v1642 = vmax.f32 %v1634, 0.0
      %v1643 = vmax.f32 %v1635, 0.0
      %v1644 = vmax.f32 %v1636, 0.0
      %v1645 = vmax.f32 %v1637, 0.0
      %v1646 = vmax.f32 %v1638, 0.0
      %v1647 = vmax.f32 %v1639, 0.0
      %1648 = vst [vmem:[%s226] sm:$0xff] %v1640
      %1649 = vst [vmem:[%s226 + $0x8] sm:$0xff] %v1641
      %1650 = vst [vmem:[%s226 + $0x10] sm:$0xff] %v1642
      %1651 = vst [vmem:[%s226 + $0x18] sm:$0xff] %v1643
      %1652 = vst [vmem:[%s226 + $0x20] sm:$0xff] %v1644
      %1653 = vst [vmem:[%s226 + $0x28] sm:$0xff] %v1645
      %1654 = vst [vmem:[%s226 + $0x30] sm:$0xff] %v1646
      %1655 = vst [vmem:[%s226 + $0x38] sm:$0xff] %v1647
      %p1656 = scmp.lt.s32.totalorder %s18, 1
      %s1657 = scalar_select %p1656, %s18, 1
      %p1658 = scmp.lt.s32.totalorder %s19, 0
      %s1659 = scalar_select %p1658, %s19, 0
      %s1660 = smul.addr %s1657, 8
      %s1661 = sadd.s32 %s1659, %s1660
      %s1662 = smul.addr %s1661, 8
      %s1663 = scalar_lea.vmem %s3, %s1662
      // Predicated region
      $region33: #{_lambda_.4} parent=31 // pred_check
        %p1664 = pneg %p124
      $region34: #{_lambda_.4} parent=31 // pred_check_branch
        %1666 = sbr.rel (%p1664) target = $region36
      $region35: #{_lambda_.4} parent=31 // pred_region
        _
      $region36: #{_lambda_.4} parent=31 // pred_fallthru
        _
    $region32: #{_lambda_.4} parent=5 // pred_fallthru
      _
    %p1667 = scmp.le.s32.totalorder 2, %s9
    // Predicated region
    $region37: #{_lambda_.4} parent=5 // pred_check
      %p1668 = pneg %p1667
    $region38: #{_lambda_.4} parent=5 // pred_check_branch
      %1670 = sbr.rel (%p1668) target = $region40
    $region39: #{_lambda_.4} parent=5 // pred_region
      %s1671 = ssub.s32 %s9, 2
      // Predicated region
      $region41: #{_lambda_.4} parent=39 // pred_check
        %p1672 = pneg %p130
      $region42: #{_lambda_.4} parent=39 // pred_check_branch
        %1674 = sbr.rel (%p1672) target = $region44
      $region43: #{_lambda_.4} parent=39 // pred_region
        %p1675 = scmp.lt.s32.totalorder %s20, 1
        %s1676 = scalar_select %p1675, %s20, 1
        %p1677 = scmp.lt.s32.totalorder %s21, 0
        %s1678 = scalar_select %p1677, %s21, 0
        %s1679 = smul.addr %s1676, 8
        %s1680 = sadd.s32 %s1678, %s1679
        %s1681 = smul.addr %s1680, 8
        %s1682 = scalar_lea.vmem %s3, %s1681
      $region44: #{_lambda_.4} parent=39 // pred_fallthru
        _
    $region40: #{_lambda_.4} parent=5 // pred_fallthru
      _
  $region6: #{_lambda_.4} parent=0 // loop_footer
    %s13 = sadd.s32 1, %s9
  $region7: #{_lambda_.4} parent=0 // loop_footer_branch
    %8 = sbr.rel target = $region3
  $region8: #{_lambda_.4} parent=0 // loop_exit
    _

// kernel: _lambda_.5
$region0: #{_lambda_.5}
  #allocation0 [shape = 'u32[]', space=smem, size = 0x4, offset = 0x4, fixed_abs, tag = 'smem constant byte address 0x4 - core index']
  #allocation1 [shape = 'u32[144,128]{1,0:T(1,128)}', space=vmem, size = 0x12000, scoped, tag = 'internal scratch']
  %s0 = inlined_call_operand.vmem [shape: f32[128,128], index: 0, kind: input, shape index: {}]
  %s1 = inlined_call_operand.vmem [shape: f32[128,128], index: 1, kind: input, shape index: {}]
  %s2 = inlined_call_operand.vmem [shape: f32[1,128], index: 2, kind: input, shape index: {}]
  %s3 = inlined_call_operand.vmem [shape: f32[128,128], index: 3, kind: input, shape index: {}]
  %s4 = inlined_call_operand.vmem [shape: f32[128,128], index: 4, kind: input, shape index: {}]
  %s5 = inlined_call_operand.hbm [shape: f32[128,128], index: 5, kind: output, shape index: {}]
  %s6 = sld [smem:[#allocation0]]
  $region30: #{_lambda_.5} parent=0
    _
  %s8 = ssub.s32 1, %s6
  %s9 = scalar_select 0, %s8, %s6
  $region1: #{_lambda_.5} parent=0
    #allocation2 [shape = 'u8[65536]{0}', space=vmem, size = 0x10000, scoped, tag = 'output window, operand 0, single buffered']
    #allocation3 [shape = 's32[1]{0}', space=sflag, size = 0x4, scoped, tag = 'scoped memory for _lambda_.5']
    %10 = vsyncpa [#allocation3], 0
    // Predicated region
    $region2: #{_lambda_.5} parent=1 // pred_check
      _
    $region3: #{_lambda_.5} parent=1 // pred_check_branch
      %12 = sbr.rel (0) target = $region5
    $region4: #{_lambda_.5} parent=1 // pred_region
      _
    $region5: #{_lambda_.5} parent=1 // pred_fallthru
      _
    // Predicated region
    $region6: #{_lambda_.5} parent=1 // pred_check
      _
    $region7: #{_lambda_.5} parent=1 // pred_check_branch
      %14 = sbr.rel (0) target = $region9
    $region8: #{_lambda_.5} parent=1 // pred_region
      _
    $region9: #{_lambda_.5} parent=1 // pred_fallthru
      _
    // Predicated region
    $region10: #{_lambda_.5} parent=1 // pred_check
      _
    $region11: #{_lambda_.5} parent=1 // pred_check_branch
      %16 = sbr.rel (0) target = $region13
    $region12: #{_lambda_.5} parent=1 // pred_region
      _
    $region13: #{_lambda_.5} parent=1 // pred_fallthru
      _
    // Predicated region
    $region14: #{_lambda_.5} parent=1 // pred_check
      _
    $region15: #{_lambda_.5} parent=1 // pred_check_branch
      %18 = sbr.rel (0) target = $region17
    $region16: #{_lambda_.5} parent=1 // pred_region
      _
    $region17: #{_lambda_.5} parent=1 // pred_fallthru
      _
    // Predicated region
    $region18: #{_lambda_.5} parent=1 // pred_check
      _
    $region19: #{_lambda_.5} parent=1 // pred_check_branch
      %20 = sbr.rel (0) target = $region21
    $region20: #{_lambda_.5} parent=1 // pred_region
      _
    $region21: #{_lambda_.5} parent=1 // pred_fallthru
      _
    %v21 = vld [vmem:[%s2] sm:$0x1]
    %v23 = vlaneseq
    %v24 = vshrl.u32 %v23, 7
    %v25 = vsub.s32 0, %v24
    %v26 = vrot.slane %v21, %v25
    %v28 = vld [vmem:[%s3] sm:$0xff]
    %v29 = vld [vmem:[%s3 + $0x8] sm:$0xff]
    %v30 = vld [vmem:[%s3 + $0x10] sm:$0xff]
    %v31 = vld [vmem:[%s3 + $0x18] sm:$0xff]
    %v32 = vld [vmem:[%s3 + $0x20] sm:$0xff]
    %v33 = vld [vmem:[%s3 + $0x28] sm:$0xff]
    %v34 = vld [vmem:[%s3 + $0x30] sm:$0xff]
    %v35 = vld [vmem:[%s3 + $0x38] sm:$0xff]
    %v36 = vld [vmem:[%s3 + $0x40] sm:$0xff]
    %v37 = vld [vmem:[%s3 + $0x48] sm:$0xff]
    %v38 = vld [vmem:[%s3 + $0x50] sm:$0xff]
    %v39 = vld [vmem:[%s3 + $0x58] sm:$0xff]
    %v40 = vld [vmem:[%s3 + $0x60] sm:$0xff]
    %v41 = vld [vmem:[%s3 + $0x68] sm:$0xff]
    %v42 = vld [vmem:[%s3 + $0x70] sm:$0xff]
    %v43 = vld [vmem:[%s3 + $0x78] sm:$0xff]
    %v44 = vld [vmem:[%s4] sm:$0xff]
    %v45 = vld [vmem:[%s4 + $0x8] sm:$0xff]
    %v46 = vld [vmem:[%s4 + $0x10] sm:$0xff]
    %v47 = vld [vmem:[%s4 + $0x18] sm:$0xff]
    %v48 = vld [vmem:[%s4 + $0x20] sm:$0xff]
    %v49 = vld [vmem:[%s4 + $0x28] sm:$0xff]
    %v50 = vld [vmem:[%s4 + $0x30] sm:$0xff]
    %v51 = vld [vmem:[%s4 + $0x38] sm:$0xff]
    %v52 = vld [vmem:[%s4 + $0x40] sm:$0xff]
    %v53 = vld [vmem:[%s4 + $0x48] sm:$0xff]
    %v54 = vld [vmem:[%s4 + $0x50] sm:$0xff]
    %v55 = vld [vmem:[%s4 + $0x58] sm:$0xff]
    %v56 = vld [vmem:[%s4 + $0x60] sm:$0xff]
    %v57 = vld [vmem:[%s4 + $0x68] sm:$0xff]
    %v58 = vld [vmem:[%s4 + $0x70] sm:$0xff]
    %v59 = vld [vmem:[%s4 + $0x78] sm:$0xff]
    %60 = vmatprep.subr.mxu0 0.0
    %61 = vmatpush1.msra.mxu0 %v44
    %62 = vmatprep.subr.mxu0 0.0
    %63 = vmatpush1.msra.mxu0 %v45
    %64 = vmatprep.subr.mxu0 0.0
    %65 = vmatpush1.msra.mxu0 %v46
    %66 = vmatprep.subr.mxu0 0.0
    %67 = vmatpush1.msra.mxu0 %v47
    %68 = vmatprep.subr.mxu0 0.0
    %69 = vmatpush1.msra.mxu0 %v48
    %70 = vmatprep.subr.mxu0 0.0
    %71 = vmatpush1.msra.mxu0 %v49
    %72 = vmatprep.subr.mxu0 0.0
    %73 = vmatpush1.msra.mxu0 %v50
    %74 = vmatprep.subr.mxu0 0.0
    %75 = vmatpush1.msra.mxu0 %v51
    %76 = vmatprep.subr.mxu0 0.0
    %77 = vmatpush1.msra.mxu0 %v52
    %78 = vmatprep.subr.mxu0 0.0
    %79 = vmatpush1.msra.mxu0 %v53
    %80 = vmatprep.subr.mxu0 0.0
    %81 = vmatpush1.msra.mxu0 %v54
    %82 = vmatprep.subr.mxu0 0.0
    %83 = vmatpush1.msra.mxu0 %v55
    %84 = vmatprep.subr.mxu0 0.0
    %85 = vmatpush1.msra.mxu0 %v56
    %86 = vmatprep.subr.mxu0 0.0
    %87 = vmatpush1.msra.mxu0 %v57
    %88 = vmatprep.subr.mxu0 0.0
    %89 = vmatpush1.msra.mxu0 %v58
    %90 = vmatprep.subr.mxu0 0.0
    %91 = vmatpush1.msra.mxu0 %v59
    %92 = vmatprep.subr.mxu0 0.0
    %93 = vmatpush1.msra.mxu0 0.0
    %94 = vmatprep.subr.mxu0 0.0
    %95 = vmatpush1.msra.mxu0 0.0
    %96 = vmatprep.subr.mxu0 0.0
    %97 = vmatpush1.msra.mxu0 0.0
    %98 = vmatprep.subr.mxu0 0.0
    %99 = vmatpush1.msra.mxu0 0.0
    %100 = vmatprep.subr.mxu0 0.0
    %101 = vmatpush1.msra.mxu0 0.0
    %102 = vmatprep.subr.mxu0 0.0
    %103 = vmatpush1.msra.mxu0 0.0
    %104 = vmatprep.subr.mxu0 0.0
    %105 = vmatpush1.msra.mxu0 0.0
    %106 = vmatprep.subr.mxu0 0.0
    %107 = vmatpush1.msra.mxu0 0.0
    %108 = vmatprep.subr.mxu0 0.0
    %109 = vmatpush1.msra.mxu0 0.0
    %110 = vmatprep.subr.mxu0 0.0
    %111 = vmatpush1.msra.mxu0 0.0
    %112 = vmatprep.subr.mxu0 0.0
    %113 = vmatpush1.msra.mxu0 0.0
    %114 = vmatprep.subr.mxu0 0.0
    %115 = vmatpush1.msra.mxu0 0.0
    %116 = vmatprep.subr.mxu0 0.0
    %117 = vmatpush1.msra.mxu0 0.0
    %118 = vmatprep.subr.mxu0 0.0
    %119 = vmatpush1.msra.mxu0 0.0
    %120 = vmatprep.subr.mxu0 0.0
    %121 = vmatpush1.msra.mxu0 0.0
    %122 = vmatprep.subr.mxu0 0.0
    %123 = vmatpush1.msra.mxu0 0.0
    %124 = vmatprep.mubr.f32.mxu0 0.0
    %125 = vmatmul.mubr.f32.gmra.mrb[0].mxu0 %v28
    %v126 = vpop.f32.mrb[0].mxu0
    %v127 = vadd.f32 0.0, %v126
    %v128 = vpop.f32.mrb[0].mxu0
    %129 = vmatprep.mubr.f32.mxu0 0.0
    %130 = vmatmul.mubr.f32.gmra.mrb[0].mxu0 %v29
    %v131 = vpop.f32.mrb[0].mxu0
    %v132 = vadd.f32 0.0, %v131
    %v133 = vpop.f32.mrb[0].mxu0
    %134 = vmatprep.mubr.f32.mxu0 0.0
    %135 = vmatmul.mubr.f32.gmra.mrb[0].mxu0 %v30
    %v136 = vpop.f32.mrb[0].mxu0
    %v137 = vadd.f32 0.0, %v136
    %v138 = vpop.f32.mrb[0].mxu0
    %139 = vmatprep.mubr.f32.mxu0 0.0
    %140 = vmatmul.mubr.f32.gmra.mrb[0].mxu0 %v31
    %v141 = vpop.f32.mrb[0].mxu0
    %v142 = vadd.f32 0.0, %v141
    %v143 = vpop.f32.mrb[0].mxu0
    %144 = vmatprep.mubr.f32.mxu0 0.0
    %145 = vmatmul.mubr.f32.gmra.mrb[0].mxu0 %v32
    %v146 = vpop.f32.mrb[0].mxu0
    %v147 = vadd.f32 0.0, %v146
    %v148 = vpop.f32.mrb[0].mxu0
    %149 = vmatprep.mubr.f32.mxu0 0.0
    %150 = vmatmul.mubr.f32.gmra.mrb[0].mxu0 %v33
    %v151 = vpop.f32.mrb[0].mxu0
    %v152 = vadd.f32 0.0, %v151
    %v153 = vpop.f32.mrb[0].mxu0
    %154 = vmatprep.mubr.f32.mxu0 0.0
    %155 = vmatmul.mubr.f32.gmra.mrb[0].mxu0 %v34
    %v156 = vpop.f32.mrb[0].mxu0
    %v157 = vadd.f32 0.0, %v156
    %v158 = vpop.f32.mrb[0].mxu0
    %159 = vmatprep.mubr.f32.mxu0 0.0
    %160 = vmatmul.mubr.f32.gmra.mrb[0].mxu0 %v35
    %v161 = vpop.f32.mrb[0].mxu0
    %v162 = vadd.f32 0.0, %v161
    %v163 = vpop.f32.mrb[0].mxu0
    %164 = vmatprep.mubr.f32.mxu0 0.0
    %165 = vmatmul.mubr.f32.gmra.mrb[0].mxu0 %v36
    %v166 = vpop.f32.mrb[0].mxu0
    %v167 = vadd.f32 0.0, %v166
    %v168 = vpop.f32.mrb[0].mxu0
    %169 = vmatprep.mubr.f32.mxu0 0.0
    %170 = vmatmul.mubr.f32.gmra.mrb[0].mxu0 %v37
    %v171 = vpop.f32.mrb[0].mxu0
    %v172 = vadd.f32 0.0, %v171
    %v173 = vpop.f32.mrb[0].mxu0
    %174 = vmatprep.mubr.f32.mxu0 0.0
    %175 = vmatmul.mubr.f32.gmra.mrb[0].mxu0 %v38
    %v176 = vpop.f32.mrb[0].mxu0
    %v177 = vadd.f32 0.0, %v176
    %v178 = vpop.f32.mrb[0].mxu0
    %179 = vmatprep.mubr.f32.mxu0 0.0
    %180 = vmatmul.mubr.f32.gmra.mrb[0].mxu0 %v39
    %v181 = vpop.f32.mrb[0].mxu0
    %v182 = vadd.f32 0.0, %v181
    %v183 = vpop.f32.mrb[0].mxu0
    %184 = vmatprep.mubr.f32.mxu0 0.0
    %185 = vmatmul.mubr.f32.gmra.mrb[0].mxu0 %v40
    %v186 = vpop.f32.mrb[0].mxu0
    %v187 = vadd.f32 0.0, %v186
    %v188 = vpop.f32.mrb[0].mxu0
    %189 = vmatprep.mubr.f32.mxu0 0.0
    %190 = vmatmul.mubr.f32.gmra.mrb[0].mxu0 %v41
    %v191 = vpop.f32.mrb[0].mxu0
    %v192 = vadd.f32 0.0, %v191
    %v193 = vpop.f32.mrb[0].mxu0
    %194 = vmatprep.mubr.f32.mxu0 0.0
    %195 = vmatmul.mubr.f32.gmra.mrb[0].mxu0 %v42
    %v196 = vpop.f32.mrb[0].mxu0
    %v197 = vadd.f32 0.0, %v196
    %v198 = vpop.f32.mrb[0].mxu0
    %199 = vmatprep.mubr.f32.mxu0 0.0
    %200 = vmatmul.mubr.f32.gmra.mrb[0].mxu0 %v43
    %v201 = vpop.f32.mrb[0].mxu0
    %v202 = vadd.f32 0.0, %v201
    %v203 = vpop.f32.mrb[0].mxu0
    %204 = vdwg.mxu0
    %v205 = vadd.f32 %v26, %v127
    %v206 = vadd.f32 %v26, %v132
    %v207 = vadd.f32 %v26, %v137
    %v208 = vadd.f32 %v26, %v142
    %v209 = vadd.f32 %v26, %v147
    %v210 = vadd.f32 %v26, %v152
    %v211 = vadd.f32 %v26, %v157
    %v212 = vadd.f32 %v26, %v162
    %v213 = vadd.f32 %v26, %v167
    %v214 = vadd.f32 %v26, %v172
    %v215 = vadd.f32 %v26, %v177
    %v216 = vadd.f32 %v26, %v182
    %v217 = vadd.f32 %v26, %v187
    %v218 = vadd.f32 %v26, %v192
    %v219 = vadd.f32 %v26, %v197
    %v220 = vadd.f32 %v26, %v202
    %v221 = vld [vmem:[%s0] sm:$0xff]
    %v222 = vld [vmem:[%s0 + $0x8] sm:$0xff]
    %v223 = vld [vmem:[%s0 + $0x10] sm:$0xff]
    %v224 = vld [vmem:[%s0 + $0x18] sm:$0xff]
    %v225 = vld [vmem:[%s0 + $0x20] sm:$0xff]
    %v226 = vld [vmem:[%s0 + $0x28] sm:$0xff]
    %v227 = vld [vmem:[%s0 + $0x30] sm:$0xff]
    %v228 = vld [vmem:[%s0 + $0x38] sm:$0xff]
    %v229 = vld [vmem:[%s0 + $0x40] sm:$0xff]
    %v230 = vld [vmem:[%s0 + $0x48] sm:$0xff]
    %v231 = vld [vmem:[%s0 + $0x50] sm:$0xff]
    %v232 = vld [vmem:[%s0 + $0x58] sm:$0xff]
    %v233 = vld [vmem:[%s0 + $0x60] sm:$0xff]
    %v234 = vld [vmem:[%s0 + $0x68] sm:$0xff]
    %v235 = vld [vmem:[%s0 + $0x70] sm:$0xff]
    %v236 = vld [vmem:[%s0 + $0x78] sm:$0xff]
    %v237 = vld [vmem:[%s1] sm:$0xff]
    %v238 = vld [vmem:[%s1 + $0x8] sm:$0xff]
    %v239 = vld [vmem:[%s1 + $0x10] sm:$0xff]
    %v240 = vld [vmem:[%s1 + $0x18] sm:$0xff]
    %v241 = vld [vmem:[%s1 + $0x20] sm:$0xff]
    %v242 = vld [vmem:[%s1 + $0x28] sm:$0xff]
    %v243 = vld [vmem:[%s1 + $0x30] sm:$0xff]
    %v244 = vld [vmem:[%s1 + $0x38] sm:$0xff]
    %v245 = vld [vmem:[%s1 + $0x40] sm:$0xff]
    %v246 = vld [vmem:[%s1 + $0x48] sm:$0xff]
    %v247 = vld [vmem:[%s1 + $0x50] sm:$0xff]
    %v248 = vld [vmem:[%s1 + $0x58] sm:$0xff]
    %v249 = vld [vmem:[%s1 + $0x60] sm:$0xff]
    %v250 = vld [vmem:[%s1 + $0x68] sm:$0xff]
    %v251 = vld [vmem:[%s1 + $0x70] sm:$0xff]
    %v252 = vld [vmem:[%s1 + $0x78] sm:$0xff]
    %253 = vmatprep.subr.mxu0 0.0
    %254 = vmatpush1.msra.mxu0 %v237
    %255 = vmatprep.subr.mxu0 0.0
    %256 = vmatpush1.msra.mxu0 %v238
    %257 = vmatprep.subr.mxu0 0.0
    %258 = vmatpush1.msra.mxu0 %v239
    %259 = vmatprep.subr.mxu0 0.0
    %260 = vmatpush1.msra.mxu0 %v240
    %261 = vmatprep.subr.mxu0 0.0
    %262 = vmatpush1.msra.mxu0 %v241
    %263 = vmatprep.subr.mxu0 0.0
    %264 = vmatpush1.msra.mxu0 %v242
    %265 = vmatprep.subr.mxu0 0.0
    %266 = vmatpush1.msra.mxu0 %v243
    %267 = vmatprep.subr.mxu0 0.0
    %268 = vmatpush1.msra.mxu0 %v244
    %269 = vmatprep.subr.mxu0 0.0
    %270 = vmatpush1.msra.mxu0 %v245
    %271 = vmatprep.subr.mxu0 0.0
    %272 = vmatpush1.msra.mxu0 %v246
    %273 = vmatprep.subr.mxu0 0.0
    %274 = vmatpush1.msra.mxu0 %v247
    %275 = vmatprep.subr.mxu0 0.0
    %276 = vmatpush1.msra.mxu0 %v248
    %277 = vmatprep.subr.mxu0 0.0
    %278 = vmatpush1.msra.mxu0 %v249
    %279 = vmatprep.subr.mxu0 0.0
    %280 = vmatpush1.msra.mxu0 %v250
    %281 = vmatprep.subr.mxu0 0.0
    %282 = vmatpush1.msra.mxu0 %v251
    %283 = vmatprep.subr.mxu0 0.0
    %284 = vmatpush1.msra.mxu0 %v252
    %285 = vmatprep.subr.mxu0 0.0
    %286 = vmatpush1.msra.mxu0 0.0
    %287 = vmatprep.subr.mxu0 0.0
    %288 = vmatpush1.msra.mxu0 0.0
    %289 = vmatprep.subr.mxu0 0.0
    %290 = vmatpush1.msra.mxu0 0.0
    %291 = vmatprep.subr.mxu0 0.0
    %292 = vmatpush1.msra.mxu0 0.0
    %293 = vmatprep.subr.mxu0 0.0
    %294 = vmatpush1.msra.mxu0 0.0
    %295 = vmatprep.subr.mxu0 0.0
    %296 = vmatpush1.msra.mxu0 0.0
    %297 = vmatprep.subr.mxu0 0.0
    %298 = vmatpush1.msra.mxu0 0.0
    %299 = vmatprep.subr.mxu0 0.0
    %300 = vmatpush1.msra.mxu0 0.0
    %301 = vmatprep.subr.mxu0 0.0
    %302 = vmatpush1.msra.mxu0 0.0
    %303 = vmatprep.subr.mxu0 0.0
    %304 = vmatpush1.msra.mxu0 0.0
    %305 = vmatprep.subr.mxu0 0.0
    %306 = vmatpush1.msra.mxu0 0.0
    %307 = vmatprep.subr.mxu0 0.0
    %308 = vmatpush1.msra.mxu0 0.0
    %309 = vmatprep.subr.mxu0 0.0
    %310 = vmatpush1.msra.mxu0 0.0
    %311 = vmatprep.subr.mxu0 0.0
    %312 = vmatpush1.msra.mxu0 0.0
    %313 = vmatprep.subr.mxu0 0.0
    %314 = vmatpush1.msra.mxu0 0.0
    %315 = vmatprep.subr.mxu0 0.0
    %316 = vmatpush1.msra.mxu0 0.0
    %317 = vmatprep.mubr.f32.mxu0 0.0
    %318 = vmatmul.mubr.f32.gmra.mrb[0].mxu0 %v221
    %v319 = vpop.f32.mrb[0].mxu0
    %v320 = vadd.f32 0.0, %v319
    %v321 = vpop.f32.mrb[0].mxu0
    %322 = vmatprep.mubr.f32.mxu0 0.0
    %323 = vmatmul.mubr.f32.gmra.mrb[0].mxu0 %v222
    %v324 = vpop.f32.mrb[0].mxu0
    %v325 = vadd.f32 0.0, %v324
    %v326 = vpop.f32.mrb[0].mxu0
    %327 = vmatprep.mubr.f32.mxu0 0.0
    %328 = vmatmul.mubr.f32.gmra.mrb[0].mxu0 %v223
    %v329 = vpop.f32.mrb[0].mxu0
    %v330 = vadd.f32 0.0, %v329
    %v331 = vpop.f32.mrb[0].mxu0
    %332 = vmatprep.mubr.f32.mxu0 0.0
    %333 = vmatmul.mubr.f32.gmra.mrb[0].mxu0 %v224
    %v334 = vpop.f32.mrb[0].mxu0
    %v335 = vadd.f32 0.0, %v334
    %v336 = vpop.f32.mrb[0].mxu0
    %337 = vmatprep.mubr.f32.mxu0 0.0
    %338 = vmatmul.mubr.f32.gmra.mrb[0].mxu0 %v225
    %v339 = vpop.f32.mrb[0].mxu0
    %v340 = vadd.f32 0.0, %v339
    %v341 = vpop.f32.mrb[0].mxu0
    %342 = vmatprep.mubr.f32.mxu0 0.0
    %343 = vmatmul.mubr.f32.gmra.mrb[0].mxu0 %v226
    %v344 = vpop.f32.mrb[0].mxu0
    %v345 = vadd.f32 0.0, %v344
    %v346 = vpop.f32.mrb[0].mxu0
    %347 = vmatprep.mubr.f32.mxu0 0.0
    %348 = vmatmul.mubr.f32.gmra.mrb[0].mxu0 %v227
    %v349 = vpop.f32.mrb[0].mxu0
    %v350 = vadd.f32 0.0, %v349
    %v351 = vpop.f32.mrb[0].mxu0
    %352 = vmatprep.mubr.f32.mxu0 0.0
    %353 = vmatmul.mubr.f32.gmra.mrb[0].mxu0 %v228
    %v354 = vpop.f32.mrb[0].mxu0
    %v355 = vadd.f32 0.0, %v354
    %v356 = vpop.f32.mrb[0].mxu0
    %357 = vmatprep.mubr.f32.mxu0 0.0
    %358 = vmatmul.mubr.f32.gmra.mrb[0].mxu0 %v229
    %v359 = vpop.f32.mrb[0].mxu0
    %v360 = vadd.f32 0.0, %v359
    %v361 = vpop.f32.mrb[0].mxu0
    %362 = vmatprep.mubr.f32.mxu0 0.0
    %363 = vmatmul.mubr.f32.gmra.mrb[0].mxu0 %v230
    %v364 = vpop.f32.mrb[0].mxu0
    %v365 = vadd.f32 0.0, %v364
    %v366 = vpop.f32.mrb[0].mxu0
    %367 = vmatprep.mubr.f32.mxu0 0.0
    %368 = vmatmul.mubr.f32.gmra.mrb[0].mxu0 %v231
    %v369 = vpop.f32.mrb[0].mxu0
    %v370 = vadd.f32 0.0, %v369
    %v371 = vpop.f32.mrb[0].mxu0
    %372 = vmatprep.mubr.f32.mxu0 0.0
    %373 = vmatmul.mubr.f32.gmra.mrb[0].mxu0 %v232
    %v374 = vpop.f32.mrb[0].mxu0
    %v375 = vadd.f32 0.0, %v374
    %v376 = vpop.f32.mrb[0].mxu0
    %377 = vmatprep.mubr.f32.mxu0 0.0
    %378 = vmatmul.mubr.f32.gmra.mrb[0].mxu0 %v233
    %v379 = vpop.f32.mrb[0].mxu0
    %v380 = vadd.f32 0.0, %v379
    %v381 = vpop.f32.mrb[0].mxu0
    %382 = vmatprep.mubr.f32.mxu0 0.0
    %383 = vmatmul.mubr.f32.gmra.mrb[0].mxu0 %v234
    %v384 = vpop.f32.mrb[0].mxu0
    %v385 = vadd.f32 0.0, %v384
    %v386 = vpop.f32.mrb[0].mxu0
    %387 = vmatprep.mubr.f32.mxu0 0.0
    %388 = vmatmul.mubr.f32.gmra.mrb[0].mxu0 %v235
    %v389 = vpop.f32.mrb[0].mxu0
    %v390 = vadd.f32 0.0, %v389
    %v391 = vpop.f32.mrb[0].mxu0
    %392 = vmatprep.mubr.f32.mxu0 0.0
    %393 = vmatmul.mubr.f32.gmra.mrb[0].mxu0 %v236
    %v394 = vpop.f32.mrb[0].mxu0
    %v395 = vadd.f32 0.0, %v394
    %v396 = vpop.f32.mrb[0].mxu0
    %397 = vdwg.mxu0
    %v398 = vadd.f32 %v205, %v320
    %v399 = vadd.f32 %v206, %v325
    %v400 = vadd.f32 %v207, %v330
    %v401 = vadd.f32 %v208, %v335
    %v402 = vadd.f32 %v209, %v340
    %v403 = vadd.f32 %v210, %v345
    %v404 = vadd.f32 %v211, %v350
    %v405 = vadd.f32 %v212, %v355
    %v406 = vadd.f32 %v213, %v360
    %v407 = vadd.f32 %v214, %v365
    %v408 = vadd.f32 %v215, %v370
    %v409 = vadd.f32 %v216, %v375
    %v410 = vadd.f32 %v217, %v380
    %v411 = vadd.f32 %v218, %v385
    %v412 = vadd.f32 %v219, %v390
    %v413 = vadd.f32 %v220, %v395
    %v414 = vmax.f32 %v398, 0.0
    %v415 = vmax.f32 %v399, 0.0
    %v416 = vmax.f32 %v400, 0.0
    %v417 = vmax.f32 %v401, 0.0
    %v418 = vmax.f32 %v402, 0.0
    %v419 = vmax.f32 %v403, 0.0
    %v420 = vmax.f32 %v404, 0.0
    %v421 = vmax.f32 %v405, 0.0
    %v422 = vmax.f32 %v406, 0.0
    %v423 = vmax.f32 %v407, 0.0
    %v424 = vmax.f32 %v408, 0.0
    %v425 = vmax.f32 %v409, 0.0
    %v426 = vmax.f32 %v410, 0.0
    %v427 = vmax.f32 %v411, 0.0
    %v428 = vmax.f32 %v412, 0.0
    %v429 = vmax.f32 %v413, 0.0
    %430 = vst [vmem:[#allocation2] sm:$0xff] %v414
    %431 = vst [vmem:[#allocation2 + $0x8] sm:$0xff] %v415
    %432 = vst [vmem:[#allocation2 + $0x10] sm:$0xff] %v416
    %433 = vst [vmem:[#allocation2 + $0x18] sm:$0xff] %v417
    %434 = vst [vmem:[#allocation2 + $0x20] sm:$0xff] %v418
    %435 = vst [vmem:[#allocation2 + $0x28] sm:$0xff] %v419
    %436 = vst [vmem:[#allocation2 + $0x30] sm:$0xff] %v420
    %437 = vst [vmem:[#allocation2 + $0x38] sm:$0xff] %v421
    %438 = vst [vmem:[#allocation2 + $0x40] sm:$0xff] %v422
    %439 = vst [vmem:[#allocation2 + $0x48] sm:$0xff] %v423
    %440 = vst [vmem:[#allocation2 + $0x50] sm:$0xff] %v424
    %441 = vst [vmem:[#allocation2 + $0x58] sm:$0xff] %v425
    %442 = vst [vmem:[#allocation2 + $0x60] sm:$0xff] %v426
    %443 = vst [vmem:[#allocation2 + $0x68] sm:$0xff] %v427
    %444 = vst [vmem:[#allocation2 + $0x70] sm:$0xff] %v428
    %445 = vst [vmem:[#allocation2 + $0x78] sm:$0xff] %v429
    // Predicated region
    $region22: #{_lambda_.5} parent=1 // pred_check
      _
    $region23: #{_lambda_.5} parent=1 // pred_check_branch
      %447 = sbr.rel (0) target = $region25
    $region24: #{_lambda_.5} parent=1 // pred_region
      %s449 = ssub.s32 2048, 2048
      %450 = vsyncadd [#allocation3], %s449
      %s451 = sshll.u32 [#allocation2], 4
      %s452 = int_to_ptr.vmem [resolvable:$true] %s451
      %457 = dma.vmem_to_hbm [thread:$0]  %s452, 2048, %s5, [#allocation3], 128, 128, 8
    $region25: #{_lambda_.5} parent=1 // pred_fallthru
      _
    // Predicated region
    $region26: #{_lambda_.5} parent=1 // pred_check
      _
    $region27: #{_lambda_.5} parent=1 // pred_check_branch
      %459 = sbr.rel (0) target = $region29
    $region28: #{_lambda_.5} parent=1 // pred_region
      %460 = dma.done [#allocation3], 2048
    $region29: #{_lambda_.5} parent=1 // pred_fallthru
      _
    %461 = vsyncpa [#allocation3], 1

</llo_original>
